<compile_context>
chip_gen: v7x
topology: tpu7x:2x2x1
jax: 0.10.0
libtpu: 0.0.40
codegen_flags: <defaults>
</compile_context>

<pallas_src>
import functools

import jax
import jax.numpy as jnp
from jax import lax
from jax.experimental import pallas as pl
from jax.experimental.pallas import tpu as pltpu

BN_EPS = 1e-5


# ---------------------------------------------------------------------------
# Fused Pallas kernel
# ---------------------------------------------------------------------------
def _bottleneck_kernel(x_ref, xtop_ref, xbot_ref,
                       w1_ref, w2_ref, w3_ref,
                       b1_ref, b2_ref, b3_ref,
                       o_ref, y1_ref, *, valid_rows_last):
    # x_ref   : (1, th, W, Cin)        bf16  center row tile
    # xtop_ref: (1, 1,  W, Cin)        bf16  row above the tile (clamped)
    # xbot_ref: (1, 1,  W, Cin)        bf16  row below the tile (clamped)
    # w1_ref  : (Cin, planes)          bf16  BN1 scale folded in
    # w2_ref  : (3, 3, planes, planes) bf16  HWIO, BN2 scale folded in
    # w3_ref  : (planes, Cexp)         bf16  BN3 scale folded in
    # b*_ref  : (1, C)                 f32   folded BN bias
    # o_ref   : (1, th, W, Cexp)       bf16
    # y1_ref  : ((th+2)*W, planes)     f32   conv1 output rows incl. halo rows
    # valid_rows_last: static number of valid image rows in the LAST row tile.
    _, th, W, Cin = x_ref.shape
    planes = w1_ref.shape[1]
    Cexp = w3_ref.shape[1]
    M = th * W
    Mall = (th + 2) * W
    r = pl.program_id(1)
    nr = pl.num_programs(1)

    w1 = w1_ref[...]
    b1 = b1_ref[...]

    # ---- stage 1: 1x1 conv (folded BN1) + bias + ReLU ----------------------
    x_c = x_ref[0].reshape(M, Cin)                                  # bf16
    y1c = jnp.dot(x_c, w1, preferred_element_type=jnp.float32)
    y1c = jnp.maximum(y1c + b1, 0.0)
    y1_ref[W:(th + 1) * W, :] = y1c

    x_h = jnp.concatenate([xtop_ref[0, 0], xbot_ref[0, 0]], axis=0)  # (2W, Cin)
    y1h = jnp.dot(x_h, w1, preferred_element_type=jnp.float32)
    y1h = jnp.maximum(y1h + b1, 0.0)
    y1_ref[0:W, :] = y1h[:W]
    y1_ref[(th + 1) * W:Mall, :] = y1h[W:]

    # padding=1 along H: the padded conv2 *input* (= conv1 output) is zero
    # above the image top and below the image bottom.  For a partial last row
    # tile this also zeroes the garbage tail rows (rows >= valid_rows_last).
    @pl.when(r == 0)
    def _():
        y1_ref[0:W, :] = jnp.zeros((W, planes), jnp.float32)

    @pl.when(r == nr - 1)
    def _():
        start = (valid_rows_last + 1) * W
        y1_ref[start:Mall, :] = jnp.zeros((Mall - start, planes), jnp.float32)

    # ---- stage 2: 3x3 conv as 9 matmuls over sublane-shifted slabs ---------
    flat = y1_ref[...]                                    # (Mall, planes) f32
    # left / right neighbour along W; the only cross-row leakage of a flat
    # +-1 sublane rotate lands exactly on the columns that must see zero
    # padding, which the column mask below removes (wrap-around included).
    lef = pltpu.roll(flat, shift=1, axis=0)               # value at w-1
    rig = pltpu.roll(flat, shift=Mall - 1, axis=0)        # value at w+1

    colw = lax.broadcasted_iota(jnp.int32, (1, W, 1), 1)  # tiny per-row mask
    cen_b = flat.reshape(th + 2, W, planes).astype(jnp.bfloat16)
    lef_b = jnp.where(colw == 0, 0.0,
                      lef.reshape(th + 2, W, planes)).astype(jnp.bfloat16)
    rig_b = jnp.where(colw == W - 1, 0.0,
                      rig.reshape(th + 2, W, planes)).astype(jnp.bfloat16)
    taps = (lef_b, cen_b, rig_b)                          # kx = 0, 1, 2

    acc = None
    for ky in range(3):
        for kx in range(3):
            src = taps[kx][ky:ky + th].reshape(M, planes)
            part = jnp.dot(src, w2_ref[ky, kx],
                           preferred_element_type=jnp.float32)
            acc = part if acc is None else acc + part

    z2 = jnp.maximum(acc + b2_ref[...], 0.0).astype(jnp.bfloat16)

    # ---- stage 3: 1x1 conv (folded BN3) + bias + residual + ReLU -----------
    y3 = jnp.dot(z2, w3_ref[...], preferred_element_type=jnp.float32)
    res = x_c.astype(jnp.float32)                         # identity residual
    out = jnp.maximum(y3 + b3_ref[...] + res, 0.0)
    o_ref[...] = out.reshape(1, th, W, Cexp).astype(o_ref.dtype)


# ---------------------------------------------------------------------------
# Parameter preparation (BN scale folded into weights, f32 fold -> bf16 cast)
# ---------------------------------------------------------------------------
def _prepare_folded_params(params):
    def fold(gamma, beta, mean, var):
        scale = (gamma / jnp.sqrt(var + BN_EPS)).astype(jnp.float32)
        bias = (beta - mean * scale).astype(jnp.float32)
        return scale, bias

    s1, b1 = fold(params["g1"], params["b1"], params["m1"], params["v1"])
    s2, b2 = fold(params["g2"], params["b2"], params["m2"], params["v2"])
    s3, b3 = fold(params["g3"], params["b3"], params["m3"], params["v3"])

    w1 = (params["w1"].astype(jnp.float32) * s1[None, :]).astype(jnp.bfloat16)
    w2 = (params["w2"].astype(jnp.float32)
          * s2[None, None, None, :]).astype(jnp.bfloat16)     # (3,3,planes,planes) HWIO
    w3 = (params["w3"].astype(jnp.float32) * s3[None, :]).astype(jnp.bfloat16)
    return (w1, w2, w3,
            b1.reshape(1, -1), b2.reshape(1, -1), b3.reshape(1, -1))


# ---------------------------------------------------------------------------
# Tiling (TPU-generation aware)
# ---------------------------------------------------------------------------
def _vmem_capacity_bytes():
    try:
        return int(pltpu.get_tpu_info().vmem_capacity_bytes)
    except Exception:
        return 64 << 20            # conservative (v7x-sized) fallback


def _pick_tile_height(N, H, W, cin, planes, cexp, tile_budget):
    def lane_pad(c):
        return -(-c // 128) * 128

    cin_p, p_p, cx_p = lane_pad(cin), lane_pad(planes), lane_pad(cexp)
    per_row = (
        2 * 2 * W * cin_p          # x tile, bf16, double-buffered
        + 2 * 2 * W * cx_p         # out tile, bf16, double-buffered
        + 4 * W * p_p              # y1 scratch (f32)
        + W * (3 * 2 * p_p         # three bf16 tap slabs
               + 2 * 4 * p_p       # f32 roll temps / accumulator
               + 4 * cx_p          # stage-3 f32 epilogue
               + 2 * cx_p))        # misc headroom
    max_rows = max(1, tile_budget // per_row)
    cap = min(H, max_rows)

    # Prefer a divisor of H (no masked tail work) unless it wastes >2x tile.
    divs = [d for d in range(1, cap + 1) if H % d == 0]
    th = cap
    if divs and 2 * max(divs) >= cap:
        th = max(divs)
    # Keep >= 2 total grid steps when possible (pipelining / megacore).
    if N * (-(-H // th)) < 2 and H > 1:
        th = -(-H // 2)
    return th


# ---------------------------------------------------------------------------
# Wrapper
# ---------------------------------------------------------------------------
def bottleneck_forward_nhwc(x_nhwc, params):
    """Fused Bottleneck (stride=1, downsample=None) on NHWC input. Returns bf16."""
    N, H, W, Cin = x_nhwc.shape
    planes = params["w1"].shape[1]
    Cexp = params["w3"].shape[1]
    if Cin != Cexp:
        raise ValueError(
            "stride=1 / downsample=None Bottleneck requires inplanes == "
            f"planes * expansion; got inplanes={Cin}, planes*expansion={Cexp}")

    w1, w2, w3, b1, b2, b3 = _prepare_folded_params(params)

    vmem_cap = _vmem_capacity_bytes()
    tile_budget = max(vmem_cap // 4, 8 << 20)     # ~32 MiB on 128 MiB chips, ~16 MiB on v7x
    vmem_limit = (vmem_cap // 4) * 3              # ~96 MiB / ~48 MiB compiler limit

    th = _pick_tile_height(N, H, W, Cin, planes, Cexp, tile_budget)
    grid_rows = -(-H // th)
    valid_last = H - (grid_rows - 1) * th         # valid rows in the last tile (static)

    xb = x_nhwc.astype(jnp.bfloat16)

    def center_map(n, r):
        return (n, r, 0, 0)

    def top_map(n, r):
        return (n, jnp.maximum(r * th - 1, 0), 0, 0)

    def bot_map(n, r):
        return (n, jnp.minimum(r * th + th, H - 1), 0, 0)

    def bcast2(n, r):
        return (0, 0)

    def bcast4(n, r):
        return (0, 0, 0, 0)

    kernel = functools.partial(_bottleneck_kernel, valid_rows_last=valid_last)

    return pl.pallas_call(
        kernel,
        out_shape=jax.ShapeDtypeStruct((N, H, W, Cexp), jnp.bfloat16),
        grid=(N, grid_rows),
        in_specs=[
            pl.BlockSpec((1, th, W, Cin), center_map),
            pl.BlockSpec((1, 1, W, Cin), top_map),
            pl.BlockSpec((1, 1, W, Cin), bot_map),
            pl.BlockSpec((Cin, planes), bcast2),            # w1
            pl.BlockSpec((3, 3, planes, planes), bcast4),   # w2
            pl.BlockSpec((planes, Cexp), bcast2),           # w3
            pl.BlockSpec((1, planes), bcast2),              # b1
            pl.BlockSpec((1, planes), bcast2),              # b2
            pl.BlockSpec((1, Cexp), bcast2),                # b3
        ],
        out_specs=pl.BlockSpec((1, th, W, Cexp), center_map),
        scratch_shapes=[pltpu.VMEM(((th + 2) * W, planes), jnp.float32)],
        compiler_params=pltpu.CompilerParams(
            dimension_semantics=("parallel", "parallel"),
            vmem_limit_bytes=vmem_limit),
    )(xb, xb, xb, w1, w2, w3, b1, b2, b3)


@jax.jit
def bottleneck_forward(x_nchw, params):
    """PyTorch-compatible NCHW interface; returns bf16 NCHW.

    TODO(synk): keep the surrounding model in NHWC to drop these two
    full-array transpose passes; they exist only to match PyTorch's layout.
    """
    x = jnp.transpose(x_nchw.astype(jnp.bfloat16), (0, 2, 3, 1))   # bf16 NHWC
    out = bottleneck_forward_nhwc(x, params)                       # bf16 NHWC
    return jnp.transpose(out, (0, 3, 1, 2))                        # bf16 NCHW


# ---------------------------------------------------------------------------
# Pure-JAX reference (same folded weights / bf16 operand rounding as kernel)
# ---------------------------------------------------------------------------
def reference_forward(x_nchw, params):
    w1, w2, w3, b1, b2, b3 = _prepare_folded_params(params)
    w1f, w2f, w3f = (w.astype(jnp.float32) for w in (w1, w2, w3))

    x = jnp.transpose(x_nchw, (0, 2, 3, 1)).astype(jnp.float32)
    xq = x.astype(jnp.bfloat16).astype(jnp.float32)

    y = jnp.maximum(jnp.einsum("nhwc,cd->nhwd", xq, w1f) + b1[0], 0.0)
    y = y.astype(jnp.bfloat16).astype(jnp.float32)
    y = lax.conv_general_dilated(
        y, w2f, window_strides=(1, 1), padding="SAME",
        dimension_numbers=("NHWC", "HWIO", "NHWC"))
    y = jnp.maximum(y + b2[0], 0.0)
    y = y.astype(jnp.bfloat16).astype(jnp.float32)
    y = jnp.einsum("nhwc,cd->nhwd", y, w3f) + b3[0] + xq
    y = jnp.maximum(y, 0.0)
    return jnp.transpose(y, (0, 3, 1, 2))                          # f32 NCHW


# ---------------------------------------------------------------------------
# Parameter construction (deterministic, synthetic)
# ---------------------------------------------------------------------------
def make_params(key, inplanes, planes, expansion=4):
    ks = jax.random.split(key, 16)
    cexp = planes * expansion

    def bn_params(k, c):
        k1, k2, k3, k4 = jax.random.split(k, 4)
        return (jax.random.uniform(k1, (c,), jnp.float32, 0.5, 1.5),   # gamma
                jax.random.normal(k2, (c,), jnp.float32) * 0.1,        # beta
                jax.random.normal(k3, (c,), jnp.float32) * 0.1,        # running_mean
                jax.random.uniform(k4, (c,), jnp.float32, 0.5, 1.5))   # running_var

    g1, b1, m1, v1 = bn_params(ks[0], planes)
    g2, b2, m2, v2 = bn_params(ks[1], planes)
    g3, b3, m3, v3 = bn_params(ks[2], cexp)

    return {
        # conv weights stored as (Cin, Cout) / (kh, kw, Cin, Cout) (HWIO)
        "w1": jax.random.normal(ks[3], (inplanes, planes), jnp.float32) * 0.1,
        "w2": jax.random.normal(ks[4], (3, 3, planes, planes), jnp.float32) * 0.1,
        "w3": jax.random.normal(ks[5], (planes, cexp), jnp.float32) * 0.1,
        "g1": g1, "b1": b1, "m1": m1, "v1": v1,
        "g2": g2, "b2": b2, "m2": m2, "v2": v2,
        "g3": g3, "b3": b3, "m3": m3, "v3": v3,
    }


if __name__ == "__main__":
    key = jax.random.PRNGKey(0)
    k_x, k_p = jax.random.split(key)

    # Small shapes: batch=2, inplanes=16, planes=4 (expansion 4 -> 16), 16x16.
    N, inplanes, planes, H, W = 2, 16, 4, 16, 16
    x = jax.random.normal(k_x, (N, inplanes, H, W), jnp.float32)   # NCHW like PyTorch
    params = make_params(k_p, inplanes, planes)

    out = jax.block_until_ready(bottleneck_forward(x, params))
    ref = jax.block_until_ready(reference_forward(x, params))

    assert out.shape == (N, planes * 4, H, W), out.shape
    out32 = out.astype(jnp.float32)
    # mixed abs/rel metric: the only systematic difference is the kernel's
    # bf16 output quantization (<= ~0.2% relative) + f32 accumulation order.
    err = float(jnp.max(jnp.abs(out32 - ref) / (1.0 + jnp.abs(ref))))
    assert err < 1e-2, f"max mixed abs/rel err = {err}"

    print("KERNEL_OK")
</pallas_src>

<mosaic_0001>
module attributes {stable_mosaic.version = 11 : i64} {
  func.func @_bottleneck_kernel(%arg0: i32, %arg1: i32, %arg2: memref<1x16x16x16xbf16, #tpu.memory_space<vmem>>, %arg3: memref<1x1x16x16xbf16, #tpu.memory_space<vmem>>, %arg4: memref<1x1x16x16xbf16, #tpu.memory_space<vmem>>, %arg5: memref<16x4xbf16, #tpu.memory_space<vmem>>, %arg6: memref<3x3x4x4xbf16, #tpu.memory_space<vmem>>, %arg7: memref<4x16xbf16, #tpu.memory_space<vmem>>, %arg8: memref<1x4xf32, #tpu.memory_space<vmem>>, %arg9: memref<1x4xf32, #tpu.memory_space<vmem>>, %arg10: memref<1x16xf32, #tpu.memory_space<vmem>>, %arg11: memref<1x16x16x16xbf16, #tpu.memory_space<vmem>>, %arg12: memref<288x4xf32, #tpu.memory_space<vmem>>) attributes {dimension_semantics = [#tpu.dimension_semantics<parallel>, #tpu.dimension_semantics<parallel>], iteration_bounds = array<i64: 2, 1>, scalar_prefetch = 0 : i64, scratch_operands = 1 : i64, tpu.core_type = #tpu.core_type<tc>, window_params = [{transform_indices = @transform_0, window_bounds = array<i64: 1, 16, 16, 16>}, {transform_indices = @transform_1, window_bounds = array<i64: 1, 1, 16, 16>}, {transform_indices = @transform_2, window_bounds = array<i64: 1, 1, 16, 16>}, {pipeline_mode = #tpu.pipeline_mode<synchronous>, transform_indices = @transform_3, window_bounds = array<i64: 16, 4>}, {pipeline_mode = #tpu.pipeline_mode<synchronous>, transform_indices = @transform_4, window_bounds = array<i64: 3, 3, 4, 4>}, {pipeline_mode = #tpu.pipeline_mode<synchronous>, transform_indices = @transform_5, window_bounds = array<i64: 4, 16>}, {pipeline_mode = #tpu.pipeline_mode<synchronous>, transform_indices = @transform_6, window_bounds = array<i64: 1, 4>}, {pipeline_mode = #tpu.pipeline_mode<synchronous>, transform_indices = @transform_7, window_bounds = array<i64: 1, 4>}, {pipeline_mode = #tpu.pipeline_mode<synchronous>, transform_indices = @transform_8, window_bounds = array<i64: 1, 16>}, {transform_indices = @transform_9, window_bounds = array<i64: 1, 16, 16, 16>}]} {
    %c0 = arith.constant 0 : index
    %c0_0 = arith.constant 0 : index
    %0 = vector.load %arg5[%c0, %c0_0] : memref<16x4xbf16, #tpu.memory_space<vmem>>, vector<16x4xbf16>
    %c0_1 = arith.constant 0 : index
    %c0_2 = arith.constant 0 : index
    %1 = vector.load %arg8[%c0_1, %c0_2] : memref<1x4xf32, #tpu.memory_space<vmem>>, vector<1x4xf32>
    %c0_3 = arith.constant 0 : index
    %c0_4 = arith.constant 0 : index
    %c0_5 = arith.constant 0 : index
    %c0_6 = arith.constant 0 : index
    %2 = vector.load %arg2[%c0_3, %c0_4, %c0_5, %c0_6] : memref<1x16x16x16xbf16, #tpu.memory_space<vmem>>, vector<1x16x16x16xbf16>
    %3 = vector.shape_cast %2 : vector<1x16x16x16xbf16> to vector<16x16x16xbf16>
    %4 = vector.shape_cast %3 : vector<16x16x16xbf16> to vector<256x16xbf16>
    %cst = arith.constant dense<0.000000e+00> : vector<256x4xf32>
    %5 = tpu.matmul %4, %0, %cst {dimension_numbers = #tpu.dot_dimension_numbers<[1], [0], [0], [1], [0, 0, 1, 1], [], []>} : vector<256x16xbf16>, vector<16x4xbf16>, vector<256x4xf32> -> vector<256x4xf32>
    %6 = vector.broadcast %1 : vector<1x4xf32> to vector<256x4xf32>
    %7 = arith.addf %5, %6 : vector<256x4xf32>
    %cst_7 = arith.constant 0.000000e+00 : f32
    %8 = vector.broadcast %cst_7 : f32 to vector<256x4xf32>
    %9 = arith.maximumf %7, %8 : vector<256x4xf32>
    %c16 = arith.constant 16 : index
    %c0_8 = arith.constant 0 : index
    %10 = vector.load %arg12[%c16, %c0_8] : memref<288x4xf32, #tpu.memory_space<vmem>>, vector<256x4xf32>
    tpu.vector_store %arg12[%c16, %c0_8], %9 {strides = array<i32>} : memref<288x4xf32, #tpu.memory_space<vmem>>, vector<256x4xf32>,
    %c0_9 = arith.constant 0 : index
    %c0_10 = arith.constant 0 : index
    %c0_11 = arith.constant 0 : index
    %c0_12 = arith.constant 0 : index
    %11 = vector.load %arg3[%c0_9, %c0_10, %c0_11, %c0_12] : memref<1x1x16x16xbf16, #tpu.memory_space<vmem>>, vector<1x1x16x16xbf16>
    %12 = vector.shape_cast %11 : vector<1x1x16x16xbf16> to vector<16x16xbf16>
    %c0_13 = arith.constant 0 : index
    %c0_14 = arith.constant 0 : index
    %c0_15 = arith.constant 0 : index
    %c0_16 = arith.constant 0 : index
    %13 = vector.load %arg4[%c0_13, %c0_14, %c0_15, %c0_16] : memref<1x1x16x16xbf16, #tpu.memory_space<vmem>>, vector<1x1x16x16xbf16>
    %14 = vector.shape_cast %13 : vector<1x1x16x16xbf16> to vector<16x16xbf16>
    %15 = tpu.concatenate %12, %14 in 0 : vector<16x16xbf16>, vector<16x16xbf16> -> vector<32x16xbf16>
    %cst_17 = arith.constant dense<0.000000e+00> : vector<32x4xf32>
    %16 = tpu.matmul %15, %0, %cst_17 {dimension_numbers = #tpu.dot_dimension_numbers<[1], [0], [0], [1], [0, 0, 1, 1], [], []>} : vector<32x16xbf16>, vector<16x4xbf16>, vector<32x4xf32> -> vector<32x4xf32>
    %17 = vector.broadcast %1 : vector<1x4xf32> to vector<32x4xf32>
    %18 = arith.addf %16, %17 : vector<32x4xf32>
    %cst_18 = arith.constant 0.000000e+00 : f32
    %19 = vector.broadcast %cst_18 : f32 to vector<32x4xf32>
    %20 = arith.maximumf %18, %19 : vector<32x4xf32>
    %21 = vector.extract_strided_slice %20 {offsets = [0, 0], sizes = [16, 4], strides = [1, 1]} : vector<32x4xf32> to vector<16x4xf32>
    %c0_19 = arith.constant 0 : index
    %c0_20 = arith.constant 0 : index
    %22 = vector.load %arg12[%c0_19, %c0_20] : memref<288x4xf32, #tpu.memory_space<vmem>>, vector<16x4xf32>
    tpu.vector_store %arg12[%c0_19, %c0_20], %21 {strides = array<i32>} : memref<288x4xf32, #tpu.memory_space<vmem>>, vector<16x4xf32>,
    %23 = vector.extract_strided_slice %20 {offsets = [16, 0], sizes = [16, 4], strides = [1, 1]} : vector<32x4xf32> to vector<16x4xf32>
    %c272 = arith.constant 272 : index
    %c0_21 = arith.constant 0 : index
    %24 = vector.load %arg12[%c272, %c0_21] : memref<288x4xf32, #tpu.memory_space<vmem>>, vector<16x4xf32>
    tpu.vector_store %arg12[%c272, %c0_21], %23 {strides = array<i32>} : memref<288x4xf32, #tpu.memory_space<vmem>>, vector<16x4xf32>,
    %c0_i32 = arith.constant 0 : i32
    %25 = arith.cmpi eq, %arg1, %c0_i32 : i32
    %26 = arith.extui %25 : i1 to i32
    %c0_i32_22 = arith.constant 0 : i32
    %27 = arith.cmpi ne, %26, %c0_i32_22 : i32
    scf.if %27 {
      %cst_86 = arith.constant 0.000000e+00 : f32
      %124 = vector.broadcast %cst_86 : f32 to vector<16x4xf32>
      %c0_87 = arith.constant 0 : index
      %c0_88 = arith.constant 0 : index
      %125 = vector.load %arg12[%c0_87, %c0_88] : memref<288x4xf32, #tpu.memory_space<vmem>>, vector<16x4xf32>
      tpu.vector_store %arg12[%c0_87, %c0_88], %124 {strides = array<i32>} : memref<288x4xf32, #tpu.memory_space<vmem>>, vector<16x4xf32>,
    } else {
    }
    %c0_i32_23 = arith.constant 0 : i32
    %28 = arith.cmpi eq, %arg1, %c0_i32_23 : i32
    %29 = arith.extui %28 : i1 to i32
    %c0_i32_24 = arith.constant 0 : i32
    %30 = arith.cmpi ne, %29, %c0_i32_24 : i32
    scf.if %30 {
      %cst_86 = arith.constant 0.000000e+00 : f32
      %124 = vector.broadcast %cst_86 : f32 to vector<16x4xf32>
      %c272_87 = arith.constant 272 : index
      %c0_88 = arith.constant 0 : index
      %125 = vector.load %arg12[%c272_87, %c0_88] : memref<288x4xf32, #tpu.memory_space<vmem>>, vector<16x4xf32>
      tpu.vector_store %arg12[%c272_87, %c0_88], %124 {strides = array<i32>} : memref<288x4xf32, #tpu.memory_space<vmem>>, vector<16x4xf32>,
    } else {
    }
    %c0_25 = arith.constant 0 : index
    %c0_26 = arith.constant 0 : index
    %31 = vector.load %arg12[%c0_25, %c0_26] : memref<288x4xf32, #tpu.memory_space<vmem>>, vector<288x4xf32>
    %c1_i32 = arith.constant 1 : i32
    %32 = tpu.dynamic_rotate %31 by %c1_i32 dim 0 : vector<288x4xf32>, i32 -> vector<288x4xf32>
    %c287_i32 = arith.constant 287 : i32
    %33 = tpu.dynamic_rotate %31 by %c287_i32 dim 0 : vector<288x4xf32>, i32 -> vector<288x4xf32>
    %34 = tpu.iota {dimensions = array<i32: 1>} : vector<1x16x1xi32>
    %35 = vector.shape_cast %31 : vector<288x4xf32> to vector<18x16x4xf32>
    %36 = arith.truncf %35 : vector<18x16x4xf32> to vector<18x16x4xbf16>
    %c0_i32_27 = arith.constant 0 : i32
    %37 = vector.broadcast %c0_i32_27 : i32 to vector<1x16x1xi32>
    %38 = arith.cmpi eq, %34, %37 : vector<1x16x1xi32>
    %39 = vector.shape_cast %32 : vector<288x4xf32> to vector<18x16x4xf32>
    %cst_28 = arith.constant 0.000000e+00 : f32
    %40 = vector.shape_cast %38 : vector<1x16x1xi1> to vector<1x16x1xi1>
    %41 = vector.broadcast %40 : vector<1x16x1xi1> to vector<18x16x4xi1>
    %42 = vector.broadcast %cst_28 : f32 to vector<18x16x4xf32>
    %43 = arith.select %41, %42, %39 : vector<18x16x4xi1>, vector<18x16x4xf32>
    %44 = arith.truncf %43 : vector<18x16x4xf32> to vector<18x16x4xbf16>
    %c15_i32 = arith.constant 15 : i32
    %45 = vector.broadcast %c15_i32 : i32 to vector<1x16x1xi32>
    %46 = arith.cmpi eq, %34, %45 : vector<1x16x1xi32>
    %47 = vector.shape_cast %33 : vector<288x4xf32> to vector<18x16x4xf32>
    %cst_29 = arith.constant 0.000000e+00 : f32
    %48 = vector.shape_cast %46 : vector<1x16x1xi1> to vector<1x16x1xi1>
    %49 = vector.broadcast %48 : vector<1x16x1xi1> to vector<18x16x4xi1>
    %50 = vector.broadcast %cst_29 : f32 to vector<18x16x4xf32>
    %51 = arith.select %49, %50, %47 : vector<18x16x4xi1>, vector<18x16x4xf32>
    %52 = arith.truncf %51 : vector<18x16x4xf32> to vector<18x16x4xbf16>
    %53 = vector.extract_strided_slice %44 {offsets = [0, 0, 0], sizes = [16, 16, 4], strides = [1, 1, 1]} : vector<18x16x4xbf16> to vector<16x16x4xbf16>
    %54 = vector.shape_cast %53 : vector<16x16x4xbf16> to vector<256x4xbf16>
    %c0_30 = arith.constant 0 : index
    %c0_31 = arith.constant 0 : index
    %c0_32 = arith.constant 0 : index
    %c0_33 = arith.constant 0 : index
    %55 = vector.load %arg6[%c0_30, %c0_31, %c0_32, %c0_33] : memref<3x3x4x4xbf16, #tpu.memory_space<vmem>>, vector<1x1x4x4xbf16>
    %56 = vector.shape_cast %55 : vector<1x1x4x4xbf16> to vector<4x4xbf16>
    %cst_34 = arith.constant dense<0.000000e+00> : vector<256x4xf32>
    %57 = tpu.matmul %54, %56, %cst_34 {dimension_numbers = #tpu.dot_dimension_numbers<[1], [0], [0], [1], [0, 0, 1, 1], [], []>} : vector<256x4xbf16>, vector<4x4xbf16>, vector<256x4xf32> -> vector<256x4xf32>
    %58 = vector.extract_strided_slice %36 {offsets = [0, 0, 0], sizes = [16, 16, 4], strides = [1, 1, 1]} : vector<18x16x4xbf16> to vector<16x16x4xbf16>
    %59 = vector.shape_cast %58 : vector<16x16x4xbf16> to vector<256x4xbf16>
    %c0_35 = arith.constant 0 : index
    %c1 = arith.constant 1 : index
    %c0_36 = arith.constant 0 : index
    %c0_37 = arith.constant 0 : index
    %60 = vector.load %arg6[%c0_35, %c1, %c0_36, %c0_37] : memref<3x3x4x4xbf16, #tpu.memory_space<vmem>>, vector<1x1x4x4xbf16>
    %61 = vector.shape_cast %60 : vector<1x1x4x4xbf16> to vector<4x4xbf16>
    %cst_38 = arith.constant dense<0.000000e+00> : vector<256x4xf32>
    %62 = tpu.matmul %59, %61, %cst_38 {dimension_numbers = #tpu.dot_dimension_numbers<[1], [0], [0], [1], [0, 0, 1, 1], [], []>} : vector<256x4xbf16>, vector<4x4xbf16>, vector<256x4xf32> -> vector<256x4xf32>
    %63 = arith.addf %57, %62 : vector<256x4xf32>
    %64 = vector.extract_strided_slice %52 {offsets = [0, 0, 0], sizes = [16, 16, 4], strides = [1, 1, 1]} : vector<18x16x4xbf16> to vector<16x16x4xbf16>
    %65 = vector.shape_cast %64 : vector<16x16x4xbf16> to vector<256x4xbf16>
    %c0_39 = arith.constant 0 : index
    %c2 = arith.constant 2 : index
    %c0_40 = arith.constant 0 : index
    %c0_41 = arith.constant 0 : index
    %66 = vector.load %arg6[%c0_39, %c2, %c0_40, %c0_41] : memref<3x3x4x4xbf16, #tpu.memory_space<vmem>>, vector<1x1x4x4xbf16>
    %67 = vector.shape_cast %66 : vector<1x1x4x4xbf16> to vector<4x4xbf16>
    %cst_42 = arith.constant dense<0.000000e+00> : vector<256x4xf32>
    %68 = tpu.matmul %65, %67, %cst_42 {dimension_numbers = #tpu.dot_dimension_numbers<[1], [0], [0], [1], [0, 0, 1, 1], [], []>} : vector<256x4xbf16>, vector<4x4xbf16>, vector<256x4xf32> -> vector<256x4xf32>
    %69 = arith.addf %63, %68 : vector<256x4xf32>
    %70 = vector.extract_strided_slice %44 {offsets = [1, 0, 0], sizes = [16, 16, 4], strides = [1, 1, 1]} : vector<18x16x4xbf16> to vector<16x16x4xbf16>
    %71 = vector.shape_cast %70 : vector<16x16x4xbf16> to vector<256x4xbf16>
    %c1_43 = arith.constant 1 : index
    %c0_44 = arith.constant 0 : index
    %c0_45 = arith.constant 0 : index
    %c0_46 = arith.constant 0 : index
    %72 = vector.load %arg6[%c1_43, %c0_44, %c0_45, %c0_46] : memref<3x3x4x4xbf16, #tpu.memory_space<vmem>>, vector<1x1x4x4xbf16>
    %73 = vector.shape_cast %72 : vector<1x1x4x4xbf16> to vector<4x4xbf16>
    %cst_47 = arith.constant dense<0.000000e+00> : vector<256x4xf32>
    %74 = tpu.matmul %71, %73, %cst_47 {dimension_numbers = #tpu.dot_dimension_numbers<[1], [0], [0], [1], [0, 0, 1, 1], [], []>} : vector<256x4xbf16>, vector<4x4xbf16>, vector<256x4xf32> -> vector<256x4xf32>
    %75 = arith.addf %69, %74 : vector<256x4xf32>
    %76 = vector.extract_strided_slice %36 {offsets = [1, 0, 0], sizes = [16, 16, 4], strides = [1, 1, 1]} : vector<18x16x4xbf16> to vector<16x16x4xbf16>
    %77 = vector.shape_cast %76 : vector<16x16x4xbf16> to vector<256x4xbf16>
    %c1_48 = arith.constant 1 : index
    %c1_49 = arith.constant 1 : index
    %c0_50 = arith.constant 0 : index
    %c0_51 = arith.constant 0 : index
    %78 = vector.load %arg6[%c1_48, %c1_49, %c0_50, %c0_51] : memref<3x3x4x4xbf16, #tpu.memory_space<vmem>>, vector<1x1x4x4xbf16>
    %79 = vector.shape_cast %78 : vector<1x1x4x4xbf16> to vector<4x4xbf16>
    %cst_52 = arith.constant dense<0.000000e+00> : vector<256x4xf32>
    %80 = tpu.matmul %77, %79, %cst_52 {dimension_numbers = #tpu.dot_dimension_numbers<[1], [0], [0], [1], [0, 0, 1, 1], [], []>} : vector<256x4xbf16>, vector<4x4xbf16>, vector<256x4xf32> -> vector<256x4xf32>
    %81 = arith.addf %75, %80 : vector<256x4xf32>
    %82 = vector.extract_strided_slice %52 {offsets = [1, 0, 0], sizes = [16, 16, 4], strides = [1, 1, 1]} : vector<18x16x4xbf16> to vector<16x16x4xbf16>
    %83 = vector.shape_cast %82 : vector<16x16x4xbf16> to vector<256x4xbf16>
    %c1_53 = arith.constant 1 : index
    %c2_54 = arith.constant 2 : index
    %c0_55 = arith.constant 0 : index
    %c0_56 = arith.constant 0 : index
    %84 = vector.load %arg6[%c1_53, %c2_54, %c0_55, %c0_56] : memref<3x3x4x4xbf16, #tpu.memory_space<vmem>>, vector<1x1x4x4xbf16>
    %85 = vector.shape_cast %84 : vector<1x1x4x4xbf16> to vector<4x4xbf16>
    %cst_57 = arith.constant dense<0.000000e+00> : vector<256x4xf32>
    %86 = tpu.matmul %83, %85, %cst_57 {dimension_numbers = #tpu.dot_dimension_numbers<[1], [0], [0], [1], [0, 0, 1, 1], [], []>} : vector<256x4xbf16>, vector<4x4xbf16>, vector<256x4xf32> -> vector<256x4xf32>
    %87 = arith.addf %81, %86 : vector<256x4xf32>
    %88 = vector.extract_strided_slice %44 {offsets = [2, 0, 0], sizes = [16, 16, 4], strides = [1, 1, 1]} : vector<18x16x4xbf16> to vector<16x16x4xbf16>
    %89 = vector.shape_cast %88 : vector<16x16x4xbf16> to vector<256x4xbf16>
    %c2_58 = arith.constant 2 : index
    %c0_59 = arith.constant 0 : index
    %c0_60 = arith.constant 0 : index
    %c0_61 = arith.constant 0 : index
    %90 = vector.load %arg6[%c2_58, %c0_59, %c0_60, %c0_61] : memref<3x3x4x4xbf16, #tpu.memory_space<vmem>>, vector<1x1x4x4xbf16>
    %91 = vector.shape_cast %90 : vector<1x1x4x4xbf16> to vector<4x4xbf16>
    %cst_62 = arith.constant dense<0.000000e+00> : vector<256x4xf32>
    %92 = tpu.matmul %89, %91, %cst_62 {dimension_numbers = #tpu.dot_dimension_numbers<[1], [0], [0], [1], [0, 0, 1, 1], [], []>} : vector<256x4xbf16>, vector<4x4xbf16>, vector<256x4xf32> -> vector<256x4xf32>
    %93 = arith.addf %87, %92 : vector<256x4xf32>
    %94 = vector.extract_strided_slice %36 {offsets = [2, 0, 0], sizes = [16, 16, 4], strides = [1, 1, 1]} : vector<18x16x4xbf16> to vector<16x16x4xbf16>
    %95 = vector.shape_cast %94 : vector<16x16x4xbf16> to vector<256x4xbf16>
    %c2_63 = arith.constant 2 : index
    %c1_64 = arith.constant 1 : index
    %c0_65 = arith.constant 0 : index
    %c0_66 = arith.constant 0 : index
    %96 = vector.load %arg6[%c2_63, %c1_64, %c0_65, %c0_66] : memref<3x3x4x4xbf16, #tpu.memory_space<vmem>>, vector<1x1x4x4xbf16>
    %97 = vector.shape_cast %96 : vector<1x1x4x4xbf16> to vector<4x4xbf16>
    %cst_67 = arith.constant dense<0.000000e+00> : vector<256x4xf32>
    %98 = tpu.matmul %95, %97, %cst_67 {dimension_numbers = #tpu.dot_dimension_numbers<[1], [0], [0], [1], [0, 0, 1, 1], [], []>} : vector<256x4xbf16>, vector<4x4xbf16>, vector<256x4xf32> -> vector<256x4xf32>
    %99 = arith.addf %93, %98 : vector<256x4xf32>
    %100 = vector.extract_strided_slice %52 {offsets = [2, 0, 0], sizes = [16, 16, 4], strides = [1, 1, 1]} : vector<18x16x4xbf16> to vector<16x16x4xbf16>
    %101 = vector.shape_cast %100 : vector<16x16x4xbf16> to vector<256x4xbf16>
    %c2_68 = arith.constant 2 : index
    %c2_69 = arith.constant 2 : index
    %c0_70 = arith.constant 0 : index
    %c0_71 = arith.constant 0 : index
    %102 = vector.load %arg6[%c2_68, %c2_69, %c0_70, %c0_71] : memref<3x3x4x4xbf16, #tpu.memory_space<vmem>>, vector<1x1x4x4xbf16>
    %103 = vector.shape_cast %102 : vector<1x1x4x4xbf16> to vector<4x4xbf16>
    %cst_72 = arith.constant dense<0.000000e+00> : vector<256x4xf32>
    %104 = tpu.matmul %101, %103, %cst_72 {dimension_numbers = #tpu.dot_dimension_numbers<[1], [0], [0], [1], [0, 0, 1, 1], [], []>} : vector<256x4xbf16>, vector<4x4xbf16>, vector<256x4xf32> -> vector<256x4xf32>
    %105 = arith.addf %99, %104 : vector<256x4xf32>
    %c0_73 = arith.constant 0 : index
    %c0_74 = arith.constant 0 : index
    %106 = vector.load %arg9[%c0_73, %c0_74] : memref<1x4xf32, #tpu.memory_space<vmem>>, vector<1x4xf32>
    %107 = vector.broadcast %106 : vector<1x4xf32> to vector<256x4xf32>
    %108 = arith.addf %105, %107 : vector<256x4xf32>
    %cst_75 = arith.constant 0.000000e+00 : f32
    %109 = vector.broadcast %cst_75 : f32 to vector<256x4xf32>
    %110 = arith.maximumf %108, %109 : vector<256x4xf32>
    %111 = arith.truncf %110 : vector<256x4xf32> to vector<256x4xbf16>
    %c0_76 = arith.constant 0 : index
    %c0_77 = arith.constant 0 : index
    %112 = vector.load %arg7[%c0_76, %c0_77] : memref<4x16xbf16, #tpu.memory_space<vmem>>, vector<4x16xbf16>
    %cst_78 = arith.constant dense<0.000000e+00> : vector<256x16xf32>
    %113 = tpu.matmul %111, %112, %cst_78 {dimension_numbers = #tpu.dot_dimension_numbers<[1], [0], [0], [1], [0, 0, 1, 1], [], []>} : vector<256x4xbf16>, vector<4x16xbf16>, vector<256x16xf32> -> vector<256x16xf32>
    %114 = arith.extf %4 : vector<256x16xbf16> to vector<256x16xf32>
    %c0_79 = arith.constant 0 : index
    %c0_80 = arith.constant 0 : index
    %115 = vector.load %arg10[%c0_79, %c0_80] : memref<1x16xf32, #tpu.memory_space<vmem>>, vector<1x16xf32>
    %116 = vector.broadcast %115 : vector<1x16xf32> to vector<256x16xf32>
    %117 = arith.addf %113, %116 : vector<256x16xf32>
    %118 = arith.addf %117, %114 : vector<256x16xf32>
    %cst_81 = arith.constant 0.000000e+00 : f32
    %119 = vector.broadcast %cst_81 : f32 to vector<256x16xf32>
    %120 = arith.maximumf %118, %119 : vector<256x16xf32>
    %121 = vector.shape_cast %120 : vector<256x16xf32> to vector<1x16x16x16xf32>
    %122 = arith.truncf %121 : vector<1x16x16x16xf32> to vector<1x16x16x16xbf16>
    %c0_82 = arith.constant 0 : index
    %c0_83 = arith.constant 0 : index
    %c0_84 = arith.constant 0 : index
    %c0_85 = arith.constant 0 : index
    %123 = vector.load %arg11[%c0_82, %c0_83, %c0_84, %c0_85] : memref<1x16x16x16xbf16, #tpu.memory_space<vmem>>, vector<1x16x16x16xbf16>
    tpu.vector_store %arg11[%c0_82, %c0_83, %c0_84, %c0_85], %122 {strides = array<i32>} : memref<1x16x16x16xbf16, #tpu.memory_space<vmem>>, vector<1x16x16x16xbf16>,
    return
  }
  func.func @transform_0(%arg0: i32, %arg1: i32) -> (i32, i32, i32, i32) {
    %c0_i32 = arith.constant 0 : i32
    %c0_i32_0 = arith.constant 0 : i32
    %c0_i32_1 = arith.constant 0 : i32
    return %arg0, %arg1, %c0_i32, %c0_i32_0 : i32, i32, i32, i32
  }
  func.func @transform_1(%arg0: i32, %arg1: i32) -> (i32, i32, i32, i32) {
    %c16_i32 = arith.constant 16 : i32
    %0 = arith.muli %arg1, %c16_i32 : i32
    %c1_i32 = arith.constant 1 : i32
    %1 = arith.subi %0, %c1_i32 : i32
    %c0_i32 = arith.constant 0 : i32
    %2 = arith.maxsi %1, %c0_i32 : i32
    %c0_i32_0 = arith.constant 0 : i32
    %c0_i32_1 = arith.constant 0 : i32
    %c0_i32_2 = arith.constant 0 : i32
    return %arg0, %2, %c0_i32_0, %c0_i32_1 : i32, i32, i32, i32
  }
  func.func @transform_2(%arg0: i32, %arg1: i32) -> (i32, i32, i32, i32) {
    %c16_i32 = arith.constant 16 : i32
    %0 = arith.muli %arg1, %c16_i32 : i32
    %c16_i32_0 = arith.constant 16 : i32
    %1 = arith.addi %0, %c16_i32_0 : i32
    %c15_i32 = arith.constant 15 : i32
    %2 = arith.minsi %1, %c15_i32 : i32
    %c0_i32 = arith.constant 0 : i32
    %c0_i32_1 = arith.constant 0 : i32
    %c0_i32_2 = arith.constant 0 : i32
    return %arg0, %2, %c0_i32, %c0_i32_1 : i32, i32, i32, i32
  }
  func.func @transform_3(%arg0: i32, %arg1: i32) -> (i32, i32) {
    %c0_i32 = arith.constant 0 : i32
    %c0_i32_0 = arith.constant 0 : i32
    %c0_i32_1 = arith.constant 0 : i32
    return %c0_i32, %c0_i32_0 : i32, i32
  }
  func.func @transform_4(%arg0: i32, %arg1: i32) -> (i32, i32, i32, i32) {
    %c0_i32 = arith.constant 0 : i32
    %c0_i32_0 = arith.constant 0 : i32
    %c0_i32_1 = arith.constant 0 : i32
    %c0_i32_2 = arith.constant 0 : i32
    %c0_i32_3 = arith.constant 0 : i32
    return %c0_i32, %c0_i32_0, %c0_i32_1, %c0_i32_2 : i32, i32, i32, i32
  }
  func.func @transform_5(%arg0: i32, %arg1: i32) -> (i32, i32) {
    %c0_i32 = arith.constant 0 : i32
    %c0_i32_0 = arith.constant 0 : i32
    %c0_i32_1 = arith.constant 0 : i32
    return %c0_i32, %c0_i32_0 : i32, i32
  }
  func.func @transform_6(%arg0: i32, %arg1: i32) -> (i32, i32) {
    %c0_i32 = arith.constant 0 : i32
    %c0_i32_0 = arith.constant 0 : i32
    %c0_i32_1 = arith.constant 0 : i32
    return %c0_i32, %c0_i32_0 : i32, i32
  }
  func.func @transform_7(%arg0: i32, %arg1: i32) -> (i32, i32) {
    %c0_i32 = arith.constant 0 : i32
    %c0_i32_0 = arith.constant 0 : i32
    %c0_i32_1 = arith.constant 0 : i32
    return %c0_i32, %c0_i32_0 : i32, i32
  }
  func.func @transform_8(%arg0: i32, %arg1: i32) -> (i32, i32) {
    %c0_i32 = arith.constant 0 : i32
    %c0_i32_0 = arith.constant 0 : i32
    %c0_i32_1 = arith.constant 0 : i32
    return %c0_i32, %c0_i32_0 : i32, i32
  }
  func.func @transform_9(%arg0: i32, %arg1: i32) -> (i32, i32, i32, i32) {
    %c0_i32 = arith.constant 0 : i32
    %c0_i32_0 = arith.constant 0 : i32
    %c0_i32_1 = arith.constant 0 : i32
    return %arg0, %arg1, %c0_i32, %c0_i32_0 : i32, i32, i32, i32
  }
}

</mosaic_0001>

<llo_original>
// kernel: bottleneck_forward.1
$region0: #{bottleneck_forward.1}
  #allocation0 [shape = 'u32[]', space=smem, size = 0x4, offset = 0x4, fixed_abs, tag = 'smem constant byte address 0x4 - core index']
  #allocation1 [shape = 'u32[144,128]{1,0:T(1,128)}', space=vmem, size = 0x12000, scoped, tag = 'internal scratch']
  #allocation2 [shape = 'f32[288,4]{1,0:T(8,128)}', space=vmem, size = 0x24000, scoped, tag = 'scratch operand']
  %s0 = inlined_call_operand.vmem [shape: bf16[2,16,16,16], index: 0, kind: input, shape index: {}, may-alias: {0,1,2}]
  %s1 = inlined_call_operand.vmem [shape: bf16[2,16,16,16], index: 1, kind: input, shape index: {}, may-alias: {0,1,2}]
  %s2 = inlined_call_operand.vmem [shape: bf16[2,16,16,16], index: 2, kind: input, shape index: {}, may-alias: {0,1,2}]
  %s3 = inlined_call_operand.vmem [shape: bf16[16,4], index: 3, kind: input, shape index: {}]
  %s4 = inlined_call_operand.vmem [shape: bf16[3,3,4,4], index: 4, kind: input, shape index: {}]
  %s5 = inlined_call_operand.vmem [shape: bf16[4,16], index: 5, kind: input, shape index: {}]
  %s6 = inlined_call_operand.vmem [shape: f32[1,4], index: 6, kind: input, shape index: {}]
  %s7 = inlined_call_operand.vmem [shape: f32[1,4], index: 7, kind: input, shape index: {}]
  %s8 = inlined_call_operand.vmem [shape: f32[1,16], index: 8, kind: input, shape index: {}]
  %s9 = inlined_call_operand.vmem [shape: bf16[2,16,16,16], index: 9, kind: output, shape index: {}]
  %s10 = sld [smem:[#allocation0]]
  $region73: #{bottleneck_forward.1} parent=0
    _
  %s12 = ssub.s32 1, %s10
  %s13 = scalar_select 0, %s12, %s10
  loop: start=0, step=1, limit=4
  $region2: #{bottleneck_forward.1} parent=0 // loop_pre_header
    _
  $region3: #{bottleneck_forward.1} parent=0 // loop_header
    %s15 = sphi 0, %s19
    %p16 = scmp.ge.s32.totalorder %s15, 4
    %s22 = sphi 0, %s34
    %s23 = sphi 0, %s30
    %s24 = sphi 0, %s22
    %s25 = sphi 0, %s23
    %s26 = sphi 0, %s24
    %s27 = sphi 0, %s25
    %s39 = sphi 0, %s41
    %s42 = sphi 0, %s39
    %s43 = sphi 0, %s42
    %s59 = sphi 0, %s43
    %s75 = sphi 0, %s77
    %s78 = sphi 0, %s75
    %s79 = sphi 0, %s78
    %s95 = sphi 0, %s79
    %s111 = sphi 0, %s113
    %s114 = sphi 0, %s111
    %s115 = sphi 0, %s114
    %s131 = sphi 0, %s115
    %s135 = sphi 0, %s135
    %s137 = sphi 0, %s135
    %s138 = sphi 0, %s137
    %s152 = sphi 0, %s138
    %s156 = sphi 0, %s156
    %s158 = sphi 0, %s156
    %s159 = sphi 0, %s158
    %s173 = sphi 0, %s159
    %s177 = sphi 0, %s177
    %s179 = sphi 0, %s177
    %s180 = sphi 0, %s179
    %s194 = sphi 0, %s180
    %s198 = sphi 0, %s198
    %s200 = sphi 0, %s198
    %s201 = sphi 0, %s200
    %s215 = sphi 0, %s201
    %s219 = sphi 0, %s219
    %s221 = sphi 0, %s219
    %s222 = sphi 0, %s221
    %s236 = sphi 0, %s222
    %s240 = sphi 0, %s240
    %s242 = sphi 0, %s240
    %s243 = sphi 0, %s242
    %s257 = sphi 0, %s243
    %s265 = sphi 0, %s267
    %s268 = sphi 0, %s265
    %s269 = sphi 0, %s268
    %s285 = sphi 0, %s269
  $region4: #{bottleneck_forward.1} parent=0 // loop_header_branch
    %18 = sbr.rel (%p16) target = $region8
  $region5: #{bottleneck_forward.1} parent=0 // loop_body
    %s20 = ssub.s32 %s15, 1
    %s21 = ssub.s32 %s15, 2
    %s28 = sadd.s32 1, %s23
    %p29 = scmp.ge.s32.totalorder %s28, 1
    %s30 = scalar_select %p29, 0, %s28
    %s31 = sadd.s32 1, %s22
    %s32 = scalar_select %p29, %s31, %s22
    %p33 = scmp.ge.s32.totalorder %s32, 2
    %s34 = scalar_select %p33, 0, %s32
    %s35 = ssub.s32 %s22, %s34
    %s36 = ssub.s32 %s23, %s30
    %s37 = sor.u32 %s35, %s36
    %p38 = scmp.eq.s32.totalorder %s37, 0
    %s40 = sadd.s32 %s39, 1
    %s41 = scalar_select %p38, %s39, %s40
    %p44 = pneg %p38
    %p45 = scmp.eq.s32.totalorder %s15, 1
    %p46 = por %p44, %p45
    %p47 = scmp.ne.s32.totalorder %s39, %s42
    %p48 = scmp.eq.s32.totalorder %s15, 0
    %p49 = por %p47, %p48
    %p50 = scmp.ne.s32.totalorder %s39, %s42
    %p51 = scmp.eq.s32.totalorder %s20, 1
    %p52 = por %p50, %p51
    %p53 = scmp.ne.s32.totalorder %s42, %s43
    %p54 = scmp.eq.s32.totalorder %s20, 0
    %p55 = por %p53, %p54
    %p56 = scmp.ne.s32.totalorder %s42, %s43
    %p57 = scmp.eq.s32.totalorder %s21, 1
    %p58 = por %p56, %p57
    %p60 = scmp.ne.s32.totalorder %s43, %s59
    %p61 = scmp.eq.s32.totalorder %s21, 0
    %p62 = por %p60, %p61
    %s63 = smul.u32 %s23, 16
    %s64 = ssub.s32 %s63, 1
    %p65 = scmp.gt.s32.totalorder %s64, 0
    %s66 = scalar_select %p65, %s64, 0
    %s67 = smul.u32 %s30, 16
    %s68 = ssub.s32 %s67, 1
    %p69 = scmp.gt.s32.totalorder %s68, 0
    %s70 = scalar_select %p69, %s68, 0
    %s71 = ssub.s32 %s22, %s34
    %s72 = ssub.s32 %s66, %s70
    %s73 = sor.u32 %s71, %s72
    %p74 = scmp.eq.s32.totalorder %s73, 0
    %s76 = sadd.s32 %s75, 1
    %s77 = scalar_select %p74, %s75, %s76
    %p80 = pneg %p74
    %p81 = scmp.eq.s32.totalorder %s15, 1
    %p82 = por %p80, %p81
    %p83 = scmp.ne.s32.totalorder %s75, %s78
    %p84 = scmp.eq.s32.totalorder %s15, 0
    %p85 = por %p83, %p84
    %p86 = scmp.ne.s32.totalorder %s75, %s78
    %p87 = scmp.eq.s32.totalorder %s20, 1
    %p88 = por %p86, %p87
    %p89 = scmp.ne.s32.totalorder %s78, %s79
    %p90 = scmp.eq.s32.totalorder %s20, 0
    %p91 = por %p89, %p90
    %p92 = scmp.ne.s32.totalorder %s78, %s79
    %p93 = scmp.eq.s32.totalorder %s21, 1
    %p94 = por %p92, %p93
    %p96 = scmp.ne.s32.totalorder %s79, %s95
    %p97 = scmp.eq.s32.totalorder %s21, 0
    %p98 = por %p96, %p97
    %s99 = smul.u32 %s23, 16
    %s100 = sadd.s32 %s99, 16
    %p101 = scmp.lt.s32.totalorder %s100, 15
    %s102 = scalar_select %p101, %s100, 15
    %s103 = smul.u32 %s30, 16
    %s104 = sadd.s32 %s103, 16
    %p105 = scmp.lt.s32.totalorder %s104, 15
    %s106 = scalar_select %p105, %s104, 15
    %s107 = ssub.s32 %s22, %s34
    %s108 = ssub.s32 %s102, %s106
    %s109 = sor.u32 %s107, %s108
    %p110 = scmp.eq.s32.totalorder %s109, 0
    %s112 = sadd.s32 %s111, 1
    %s113 = scalar_select %p110, %s111, %s112
    %p116 = pneg %p110
    %p117 = scmp.eq.s32.totalorder %s15, 1
    %p118 = por %p116, %p117
    %p119 = scmp.ne.s32.totalorder %s111, %s114
    %p120 = scmp.eq.s32.totalorder %s15, 0
    %p121 = por %p119, %p120
    %p122 = scmp.ne.s32.totalorder %s111, %s114
    %p123 = scmp.eq.s32.totalorder %s20, 1
    %p124 = por %p122, %p123
    %p125 = scmp.ne.s32.totalorder %s114, %s115
    %p126 = scmp.eq.s32.totalorder %s20, 0
    %p127 = por %p125, %p126
    %p128 = scmp.ne.s32.totalorder %s114, %s115
    %p129 = scmp.eq.s32.totalorder %s21, 1
    %p130 = por %p128, %p129
    %p132 = scmp.ne.s32.totalorder %s115, %s131
    %p133 = scmp.eq.s32.totalorder %s21, 0
    %p134 = por %p132, %p133
    %s136 = sadd.s32 %s135, 1
    %p139 = scmp.eq.s32.totalorder %s15, 1
    %p140 = scmp.ne.s32.totalorder %s135, %s137
    %p141 = scmp.eq.s32.totalorder %s15, 0
    %p142 = por %p140, %p141
    %p143 = scmp.ne.s32.totalorder %s135, %s137
    %p144 = scmp.eq.s32.totalorder %s20, 1
    %p145 = por %p143, %p144
    %p146 = scmp.ne.s32.totalorder %s137, %s138
    %p147 = scmp.eq.s32.totalorder %s20, 0
    %p148 = por %p146, %p147
    %p149 = scmp.ne.s32.totalorder %s137, %s138
    %p150 = scmp.eq.s32.totalorder %s21, 1
    %p151 = por %p149, %p150
    %p153 = scmp.ne.s32.totalorder %s138, %s152
    %p154 = scmp.eq.s32.totalorder %s21, 0
    %p155 = por %p153, %p154
    %s157 = sadd.s32 %s156, 1
    %p160 = scmp.eq.s32.totalorder %s15, 1
    %p161 = scmp.ne.s32.totalorder %s156, %s158
    %p162 = scmp.eq.s32.totalorder %s15, 0
    %p163 = por %p161, %p162
    %p164 = scmp.ne.s32.totalorder %s156, %s158
    %p165 = scmp.eq.s32.totalorder %s20, 1
    %p166 = por %p164, %p165
    %p167 = scmp.ne.s32.totalorder %s158, %s159
    %p168 = scmp.eq.s32.totalorder %s20, 0
    %p169 = por %p167, %p168
    %p170 = scmp.ne.s32.totalorder %s158, %s159
    %p171 = scmp.eq.s32.totalorder %s21, 1
    %p172 = por %p170, %p171
    %p174 = scmp.ne.s32.totalorder %s159, %s173
    %p175 = scmp.eq.s32.totalorder %s21, 0
    %p176 = por %p174, %p175
    %s178 = sadd.s32 %s177, 1
    %p181 = scmp.eq.s32.totalorder %s15, 1
    %p182 = scmp.ne.s32.totalorder %s177, %s179
    %p183 = scmp.eq.s32.totalorder %s15, 0
    %p184 = por %p182, %p183
    %p185 = scmp.ne.s32.totalorder %s177, %s179
    %p186 = scmp.eq.s32.totalorder %s20, 1
    %p187 = por %p185, %p186
    %p188 = scmp.ne.s32.totalorder %s179, %s180
    %p189 = scmp.eq.s32.totalorder %s20, 0
    %p190 = por %p188, %p189
    %p191 = scmp.ne.s32.totalorder %s179, %s180
    %p192 = scmp.eq.s32.totalorder %s21, 1
    %p193 = por %p191, %p192
    %p195 = scmp.ne.s32.totalorder %s180, %s194
    %p196 = scmp.eq.s32.totalorder %s21, 0
    %p197 = por %p195, %p196
    %s199 = sadd.s32 %s198, 1
    %p202 = scmp.eq.s32.totalorder %s15, 1
    %p203 = scmp.ne.s32.totalorder %s198, %s200
    %p204 = scmp.eq.s32.totalorder %s15, 0
    %p205 = por %p203, %p204
    %p206 = scmp.ne.s32.totalorder %s198, %s200
    %p207 = scmp.eq.s32.totalorder %s20, 1
    %p208 = por %p206, %p207
    %p209 = scmp.ne.s32.totalorder %s200, %s201
    %p210 = scmp.eq.s32.totalorder %s20, 0
    %p211 = por %p209, %p210
    %p212 = scmp.ne.s32.totalorder %s200, %s201
    %p213 = scmp.eq.s32.totalorder %s21, 1
    %p214 = por %p212, %p213
    %p216 = scmp.ne.s32.totalorder %s201, %s215
    %p217 = scmp.eq.s32.totalorder %s21, 0
    %p218 = por %p216, %p217
    %s220 = sadd.s32 %s219, 1
    %p223 = scmp.eq.s32.totalorder %s15, 1
    %p224 = scmp.ne.s32.totalorder %s219, %s221
    %p225 = scmp.eq.s32.totalorder %s15, 0
    %p226 = por %p224, %p225
    %p227 = scmp.ne.s32.totalorder %s219, %s221
    %p228 = scmp.eq.s32.totalorder %s20, 1
    %p229 = por %p227, %p228
    %p230 = scmp.ne.s32.totalorder %s221, %s222
    %p231 = scmp.eq.s32.totalorder %s20, 0
    %p232 = por %p230, %p231
    %p233 = scmp.ne.s32.totalorder %s221, %s222
    %p234 = scmp.eq.s32.totalorder %s21, 1
    %p235 = por %p233, %p234
    %p237 = scmp.ne.s32.totalorder %s222, %s236
    %p238 = scmp.eq.s32.totalorder %s21, 0
    %p239 = por %p237, %p238
    %s241 = sadd.s32 %s240, 1
    %p244 = scmp.eq.s32.totalorder %s15, 1
    %p245 = scmp.ne.s32.totalorder %s240, %s242
    %p246 = scmp.eq.s32.totalorder %s15, 0
    %p247 = por %p245, %p246
    %p248 = scmp.ne.s32.totalorder %s240, %s242
    %p249 = scmp.eq.s32.totalorder %s20, 1
    %p250 = por %p248, %p249
    %p251 = scmp.ne.s32.totalorder %s242, %s243
    %p252 = scmp.eq.s32.totalorder %s20, 0
    %p253 = por %p251, %p252
    %p254 = scmp.ne.s32.totalorder %s242, %s243
    %p255 = scmp.eq.s32.totalorder %s21, 1
    %p256 = por %p254, %p255
    %p258 = scmp.ne.s32.totalorder %s243, %s257
    %p259 = scmp.eq.s32.totalorder %s21, 0
    %p260 = por %p258, %p259
    %s261 = ssub.s32 %s22, %s34
    %s262 = ssub.s32 %s23, %s30
    %s263 = sor.u32 %s261, %s262
    %p264 = scmp.eq.s32.totalorder %s263, 0
    %s266 = sadd.s32 %s265, 1
    %s267 = scalar_select %p264, %s265, %s266
    %p270 = pneg %p264
    %p271 = scmp.eq.s32.totalorder %s15, 1
    %p272 = por %p270, %p271
    %p273 = scmp.ne.s32.totalorder %s265, %s268
    %p274 = scmp.eq.s32.totalorder %s15, 0
    %p275 = por %p273, %p274
    %p276 = scmp.ne.s32.totalorder %s265, %s268
    %p277 = scmp.eq.s32.totalorder %s20, 1
    %p278 = por %p276, %p277
    %p279 = scmp.ne.s32.totalorder %s268, %s269
    %p280 = scmp.eq.s32.totalorder %s20, 0
    %p281 = por %p279, %p280
    %p282 = scmp.ne.s32.totalorder %s268, %s269
    %p283 = scmp.eq.s32.totalorder %s21, 1
    %p284 = por %p282, %p283
    %p286 = scmp.ne.s32.totalorder %s269, %s285
    %p287 = scmp.eq.s32.totalorder %s21, 0
    %p288 = por %p286, %p287
    %p289 = scmp.le.s32.totalorder 1, %s15
    %p290 = scmp.lt.s32.totalorder %s15, 3
    %p291 = pnand %p289, %p290
    %p292 = pneg %p291
    // Predicated region
    $region9: #{bottleneck_forward.1} parent=5 // pred_check
      _
    $region10: #{bottleneck_forward.1} parent=5 // pred_check_branch
      %294 = sbr.rel (%p291) target = $region12
    $region11: #{bottleneck_forward.1} parent=5 // pred_region
      %s295 = ssub.s32 %s15, 1
      // Predicated region
      $region13: #{bottleneck_forward.1} parent=11 // pred_check
        %p296 = pneg %p148
      $region14: #{bottleneck_forward.1} parent=11 // pred_check_branch
        %298 = sbr.rel (%p296) target = $region16
      $region15: #{bottleneck_forward.1} parent=11 // pred_region
        _
      $region16: #{bottleneck_forward.1} parent=11 // pred_fallthru
        _
      // Predicated region
      $region17: #{bottleneck_forward.1} parent=11 // pred_check
        %p299 = pneg %p169
      $region18: #{bottleneck_forward.1} parent=11 // pred_check_branch
        %301 = sbr.rel (%p299) target = $region20
      $region19: #{bottleneck_forward.1} parent=11 // pred_region
        _
      $region20: #{bottleneck_forward.1} parent=11 // pred_fallthru
        _
      // Predicated region
      $region21: #{bottleneck_forward.1} parent=11 // pred_check
        %p302 = pneg %p190
      $region22: #{bottleneck_forward.1} parent=11 // pred_check_branch
        %304 = sbr.rel (%p302) target = $region24
      $region23: #{bottleneck_forward.1} parent=11 // pred_region
        _
      $region24: #{bottleneck_forward.1} parent=11 // pred_fallthru
        _
      // Predicated region
      $region25: #{bottleneck_forward.1} parent=11 // pred_check
        %p305 = pneg %p211
      $region26: #{bottleneck_forward.1} parent=11 // pred_check_branch
        %307 = sbr.rel (%p305) target = $region28
      $region27: #{bottleneck_forward.1} parent=11 // pred_region
        _
      $region28: #{bottleneck_forward.1} parent=11 // pred_fallthru
        _
      // Predicated region
      $region29: #{bottleneck_forward.1} parent=11 // pred_check
        %p308 = pneg %p232
      $region30: #{bottleneck_forward.1} parent=11 // pred_check_branch
        %310 = sbr.rel (%p308) target = $region32
      $region31: #{bottleneck_forward.1} parent=11 // pred_region
        _
      $region32: #{bottleneck_forward.1} parent=11 // pred_fallthru
        _
      // Predicated region
      $region33: #{bottleneck_forward.1} parent=11 // pred_check
        %p311 = pneg %p253
      $region34: #{bottleneck_forward.1} parent=11 // pred_check_branch
        %313 = sbr.rel (%p311) target = $region36
      $region35: #{bottleneck_forward.1} parent=11 // pred_region
        _
      $region36: #{bottleneck_forward.1} parent=11 // pred_fallthru
        _
    $region12: #{bottleneck_forward.1} parent=5 // pred_fallthru
      _
    %p314 = scmp.lt.s32.totalorder %s15, 2
    // Predicated region
    $region37: #{bottleneck_forward.1} parent=5 // pred_check
      %p315 = pneg %p314
    $region38: #{bottleneck_forward.1} parent=5 // pred_check_branch
      %317 = sbr.rel (%p315) target = $region40
    $region39: #{bottleneck_forward.1} parent=5 // pred_region
      // Predicated region
      $region41: #{bottleneck_forward.1} parent=39 // pred_check
        %p318 = pneg %p49
      $region42: #{bottleneck_forward.1} parent=39 // pred_check_branch
        %320 = sbr.rel (%p318) target = $region44
      $region43: #{bottleneck_forward.1} parent=39 // pred_region
        %s321 = smul.u32 16, %s23
        %p322 = scmp.lt.s32.totalorder %s22, 1
        %s323 = scalar_select %p322, %s22, 1
        %p324 = scmp.lt.s32.totalorder %s321, 15
        %s325 = scalar_select %p324, %s321, 15
        %s326 = smul.addr %s325, 2
        %s327 = smul.addr %s323, 32
        %s328 = sadd.s32 %s326, %s327
        %s329 = smul.addr %s328, 4
        %s330 = scalar_lea.vmem %s0, %s329
        %s331 = smul.u32 16, %s23
      $region44: #{bottleneck_forward.1} parent=39 // pred_fallthru
        _
      // Predicated region
      $region45: #{bottleneck_forward.1} parent=39 // pred_check
        %p332 = pneg %p85
      $region46: #{bottleneck_forward.1} parent=39 // pred_check_branch
        %334 = sbr.rel (%p332) target = $region48
      $region47: #{bottleneck_forward.1} parent=39 // pred_region
        %s335 = smul.u32 %s23, 16
        %s336 = ssub.s32 %s335, 1
        %p337 = scmp.gt.s32.totalorder %s336, 0
        %s338 = scalar_select %p337, %s336, 0
        %p339 = scmp.lt.s32.totalorder %s22, 1
        %s340 = scalar_select %p339, %s22, 1
        %p341 = scmp.lt.s32.totalorder %s338, 15
        %s342 = scalar_select %p341, %s338, 15
        %s343 = smul.addr %s342, 2
        %s344 = smul.addr %s340, 32
        %s345 = sadd.s32 %s343, %s344
        %s346 = smul.addr %s345, 4
        %s347 = scalar_lea.vmem %s1, %s346
        %s348 = smul.u32 %s23, 16
        %s349 = ssub.s32 %s348, 1
        %p350 = scmp.gt.s32.totalorder %s349, 0
        %s351 = scalar_select %p350, %s349, 0
      $region48: #{bottleneck_forward.1} parent=39 // pred_fallthru
        _
      // Predicated region
      $region49: #{bottleneck_forward.1} parent=39 // pred_check
        %p352 = pneg %p121
      $region50: #{bottleneck_forward.1} parent=39 // pred_check_branch
        %354 = sbr.rel (%p352) target = $region52
      $region51: #{bottleneck_forward.1} parent=39 // pred_region
        %s355 = smul.u32 %s23, 16
        %s356 = sadd.s32 %s355, 16
        %p357 = scmp.lt.s32.totalorder %s356, 15
        %s358 = scalar_select %p357, %s356, 15
        %p359 = scmp.lt.s32.totalorder %s22, 1
        %s360 = scalar_select %p359, %s22, 1
        %p361 = scmp.lt.s32.totalorder %s358, 15
        %s362 = scalar_select %p361, %s358, 15
        %s363 = smul.addr %s362, 2
        %s364 = smul.addr %s360, 32
        %s365 = sadd.s32 %s363, %s364
        %s366 = smul.addr %s365, 4
        %s367 = scalar_lea.vmem %s2, %s366
        %s368 = smul.u32 %s23, 16
        %s369 = sadd.s32 %s368, 16
        %p370 = scmp.lt.s32.totalorder %s369, 15
        %s371 = scalar_select %p370, %s369, 15
      $region52: #{bottleneck_forward.1} parent=39 // pred_fallthru
        _
    $region40: #{bottleneck_forward.1} parent=5 // pred_fallthru
      _
    %p372 = scmp.le.s32.totalorder 1, %s15
    %p373 = scmp.lt.s32.totalorder %s15, 3
    %p374 = pnand %p372, %p373
    %p375 = pneg %p374
    // Predicated region
    $region53: #{bottleneck_forward.1} parent=5 // pred_check
      _
    $region54: #{bottleneck_forward.1} parent=5 // pred_check_branch
      %377 = sbr.rel (%p374) target = $region56
    $region55: #{bottleneck_forward.1} parent=5 // pred_region
      %s378 = ssub.s32 %s15, 1
      %s379 = smul.u32 16, %s25
      %p380 = scmp.lt.s32.totalorder %s24, 1
      %s381 = scalar_select %p380, %s24, 1
      %p382 = scmp.lt.s32.totalorder %s379, 15
      %s383 = scalar_select %p382, %s379, 15
      %s384 = smul.addr %s383, 2
      %s385 = smul.addr %s381, 32
      %s386 = sadd.s32 %s384, %s385
      %s387 = smul.addr %s386, 4
      %s388 = scalar_lea.vmem %s0, %s387
      %p389 = pneg %p55
      %p390 = pneg %p52
      %s391 = smul.u32 %s25, 16
      %s392 = ssub.s32 %s391, 1
      %p393 = scmp.gt.s32.totalorder %s392, 0
      %s394 = scalar_select %p393, %s392, 0
      %p395 = scmp.lt.s32.totalorder %s24, 1
      %s396 = scalar_select %p395, %s24, 1
      %p397 = scmp.lt.s32.totalorder %s394, 15
      %s398 = scalar_select %p397, %s394, 15
      %s399 = smul.addr %s398, 2
      %s400 = smul.addr %s396, 32
      %s401 = sadd.s32 %s399, %s400
      %s402 = smul.addr %s401, 4
      %s403 = scalar_lea.vmem %s1, %s402
      %p404 = pneg %p91
      %p405 = pneg %p88
      %s406 = smul.u32 %s25, 16
      %s407 = sadd.s32 %s406, 16
      %p408 = scmp.lt.s32.totalorder %s407, 15
      %s409 = scalar_select %p408, %s407, 15
      %p410 = scmp.lt.s32.totalorder %s24, 1
      %s411 = scalar_select %p410, %s24, 1
      %p412 = scmp.lt.s32.totalorder %s409, 15
      %s413 = scalar_select %p412, %s409, 15
      %s414 = smul.addr %s413, 2
      %s415 = smul.addr %s411, 32
      %s416 = sadd.s32 %s414, %s415
      %s417 = smul.addr %s416, 4
      %s418 = scalar_lea.vmem %s2, %s417
      %p419 = pneg %p127
      %p420 = pneg %p124
      %p421 = pneg %p148
      %p422 = pneg %p145
      %p423 = pneg %p169
      %p424 = pneg %p166
      %p425 = pneg %p190
      %p426 = pneg %p187
      %p427 = pneg %p211
      %p428 = pneg %p208
      %p429 = pneg %p232
      %p430 = pneg %p229
      %p431 = pneg %p253
      %p432 = pneg %p250
      %p433 = pneg %p281
      %p434 = pneg %p278
      %s435 = smul.u32 16, %s25
      %p436 = scmp.lt.s32.totalorder %s24, 1
      %s437 = scalar_select %p436, %s24, 1
      %p438 = scmp.lt.s32.totalorder %s435, 15
      %s439 = scalar_select %p438, %s435, 15
      %s440 = smul.addr %s439, 2
      %s441 = smul.addr %s437, 32
      %s442 = sadd.s32 %s440, %s441
      %s443 = smul.addr %s442, 4
      %s444 = scalar_lea.vmem %s9, %s443
      %s445 = smul.u32 16, %s25
      %p446 = scmp.lt.s32.totalorder %s24, 1
      %s447 = scalar_select %p446, %s24, 1
      %p448 = scmp.lt.s32.totalorder %s445, 15
      %s449 = scalar_select %p448, %s445, 15
      %s450 = smul.addr %s449, 2
      %s451 = smul.addr %s447, 32
      %s452 = sadd.s32 %s450, %s451
      %s453 = smul.addr %s452, 4
      %s454 = scalar_lea.vmem %s0, %s453
      %s455 = smul.u32 16, %s25
      %s456 = smul.u32 %s25, 16
      %s457 = ssub.s32 %s456, 1
      %p458 = scmp.gt.s32.totalorder %s457, 0
      %s459 = scalar_select %p458, %s457, 0
      %p460 = scmp.lt.s32.totalorder %s24, 1
      %s461 = scalar_select %p460, %s24, 1
      %p462 = scmp.lt.s32.totalorder %s459, 15
      %s463 = scalar_select %p462, %s459, 15
      %s464 = smul.addr %s463, 2
      %s465 = smul.addr %s461, 32
      %s466 = sadd.s32 %s464, %s465
      %s467 = smul.addr %s466, 4
      %s468 = scalar_lea.vmem %s1, %s467
      %s469 = smul.u32 %s25, 16
      %s470 = ssub.s32 %s469, 1
      %p471 = scmp.gt.s32.totalorder %s470, 0
      %s472 = scalar_select %p471, %s470, 0
      %s473 = smul.u32 %s25, 16
      %s474 = sadd.s32 %s473, 16
      %p475 = scmp.lt.s32.totalorder %s474, 15
      %s476 = scalar_select %p475, %s474, 15
      %p477 = scmp.lt.s32.totalorder %s24, 1
      %s478 = scalar_select %p477, %s24, 1
      %p479 = scmp.lt.s32.totalorder %s476, 15
      %s480 = scalar_select %p479, %s476, 15
      %s481 = smul.addr %s480, 2
      %s482 = smul.addr %s478, 32
      %s483 = sadd.s32 %s481, %s482
      %s484 = smul.addr %s483, 4
      %s485 = scalar_lea.vmem %s2, %s484
      %s486 = smul.u32 %s25, 16
      %s487 = sadd.s32 %s486, 16
      %p488 = scmp.lt.s32.totalorder %s487, 15
      %s489 = scalar_select %p488, %s487, 15
      %s490 = smul.u32 16, %s25
      %p491 = scmp.lt.s32.totalorder %s24, 1
      %s492 = scalar_select %p491, %s24, 1
      %p493 = scmp.lt.s32.totalorder %s490, 15
      %s494 = scalar_select %p493, %s490, 15
      %s495 = smul.addr %s494, 2
      %s496 = smul.addr %s492, 32
      %s497 = sadd.s32 %s495, %s496
      %s498 = smul.addr %s497, 4
      %s499 = scalar_lea.vmem %s9, %s498
      %s500 = smul.u32 16, %s25
      %v502 = vld [vmem:[%s3] sm:$0xf]
      %v503 = vld [vmem:[%s3 + $0x4] sm:$0xf]
      %v504 = vld [vmem:[%s6] sm:$0x1]
      %v505 = vld [vmem:[%s454] sm:$0xf]
      %v506 = vld [vmem:[%s454 + $0x4] sm:$0xf]
      %v507 = vld [vmem:[%s454 + $0x8] sm:$0xf]
      %v508 = vld [vmem:[%s454 + $0xc] sm:$0xf]
      %v509 = vld [vmem:[%s454 + $0x10] sm:$0xf]
      %v510 = vld [vmem:[%s454 + $0x14] sm:$0xf]
      %v511 = vld [vmem:[%s454 + $0x18] sm:$0xf]
      %v512 = vld [vmem:[%s454 + $0x1c] sm:$0xf]
      %v513 = vld [vmem:[%s454 + $0x20] sm:$0xf]
      %v514 = vld [vmem:[%s454 + $0x24] sm:$0xf]
      %v515 = vld [vmem:[%s454 + $0x28] sm:$0xf]
      %v516 = vld [vmem:[%s454 + $0x2c] sm:$0xf]
      %v517 = vld [vmem:[%s454 + $0x30] sm:$0xf]
      %v518 = vld [vmem:[%s454 + $0x34] sm:$0xf]
      %v519 = vld [vmem:[%s454 + $0x38] sm:$0xf]
      %v520 = vld [vmem:[%s454 + $0x3c] sm:$0xf]
      %v521 = vld [vmem:[%s454 + $0x40] sm:$0xf]
      %v522 = vld [vmem:[%s454 + $0x44] sm:$0xf]
      %v523 = vld [vmem:[%s454 + $0x48] sm:$0xf]
      %v524 = vld [vmem:[%s454 + $0x4c] sm:$0xf]
      %v525 = vld [vmem:[%s454 + $0x50] sm:$0xf]
      %v526 = vld [vmem:[%s454 + $0x54] sm:$0xf]
      %v527 = vld [vmem:[%s454 + $0x58] sm:$0xf]
      %v528 = vld [vmem:[%s454 + $0x5c] sm:$0xf]
      %v529 = vld [vmem:[%s454 + $0x60] sm:$0xf]
      %v530 = vld [vmem:[%s454 + $0x64] sm:$0xf]
      %v531 = vld [vmem:[%s454 + $0x68] sm:$0xf]
      %v532 = vld [vmem:[%s454 + $0x6c] sm:$0xf]
      %v533 = vld [vmem:[%s454 + $0x70] sm:$0xf]
      %v534 = vld [vmem:[%s454 + $0x74] sm:$0xf]
      %v535 = vld [vmem:[%s454 + $0x78] sm:$0xf]
      %v536 = vld [vmem:[%s454 + $0x7c] sm:$0xf]
      %v538 = vlaneseq
      %v539 = vshrl.u32 %v538, 7
      %v540 = vsub.s32 0, %v539
      %v541 = vrot.slane %v504, %v540
      %v575 = vunpack.c.l.b16 %v505
      %v576 = vunpack.c.l.b16 %v506
      %v577 = vunpack.c.l.b16 %v507
      %v578 = vunpack.c.l.b16 %v508
      %v579 = vunpack.c.l.b16 %v509
      %v580 = vunpack.c.l.b16 %v510
      %v581 = vunpack.c.l.b16 %v511
      %v582 = vunpack.c.l.b16 %v512
      %v583 = vunpack.c.l.b16 %v513
      %v584 = vunpack.c.l.b16 %v514
      %v585 = vunpack.c.l.b16 %v515
      %v586 = vunpack.c.l.b16 %v516
      %v587 = vunpack.c.l.b16 %v517
      %v588 = vunpack.c.l.b16 %v518
      %v589 = vunpack.c.l.b16 %v519
      %v590 = vunpack.c.l.b16 %v520
      %v591 = vunpack.c.l.b16 %v521
      %v592 = vunpack.c.l.b16 %v522
      %v593 = vunpack.c.l.b16 %v523
      %v594 = vunpack.c.l.b16 %v524
      %v595 = vunpack.c.l.b16 %v525
      %v596 = vunpack.c.l.b16 %v526
      %v597 = vunpack.c.l.b16 %v527
      %v598 = vunpack.c.l.b16 %v528
      %v599 = vunpack.c.l.b16 %v529
      %v600 = vunpack.c.l.b16 %v530
      %v601 = vunpack.c.l.b16 %v531
      %v602 = vunpack.c.l.b16 %v532
      %v603 = vunpack.c.l.b16 %v533
      %v604 = vunpack.c.l.b16 %v534
      %v605 = vunpack.c.l.b16 %v535
      %v606 = vunpack.c.l.b16 %v536
      %v607 = vpack.c.b16 %v576, %v575
      %v608 = vpack.c.b16 %v578, %v577
      %v609 = vpack.c.b16 %v580, %v579
      %v610 = vpack.c.b16 %v582, %v581
      %v611 = vpack.c.b16 %v584, %v583
      %v612 = vpack.c.b16 %v586, %v585
      %v613 = vpack.c.b16 %v588, %v587
      %v614 = vpack.c.b16 %v590, %v589
      %v615 = vpack.c.b16 %v592, %v591
      %v616 = vpack.c.b16 %v594, %v593
      %v617 = vpack.c.b16 %v596, %v595
      %v618 = vpack.c.b16 %v598, %v597
      %v619 = vpack.c.b16 %v600, %v599
      %v620 = vpack.c.b16 %v602, %v601
      %v621 = vpack.c.b16 %v604, %v603
      %v622 = vpack.c.b16 %v606, %v605
      %v625 = vunpack.c.l.b16 %v502
      %v626 = vunpack.c.l.b16 %v503
      %v627 = vpack.c.b16 %v626, %v625
      %vm629 = vcmask 130048
      %v631 = vsel %vm629, %v607, 0
      %v634 = vsel %vm629, %v608, 0
      %v637 = vsel %vm629, %v609, 0
      %v640 = vsel %vm629, %v610, 0
      %v643 = vsel %vm629, %v611, 0
      %v646 = vsel %vm629, %v612, 0
      %v649 = vsel %vm629, %v613, 0
      %v652 = vsel %vm629, %v614, 0
      %v655 = vsel %vm629, %v615, 0
      %v658 = vsel %vm629, %v616, 0
      %v661 = vsel %vm629, %v617, 0
      %v664 = vsel %vm629, %v618, 0
      %v667 = vsel %vm629, %v619, 0
      %v670 = vsel %vm629, %v620, 0
      %v673 = vsel %vm629, %v621, 0
      %v676 = vsel %vm629, %v622, 0
      %678 = vmatprep.subr.bf16.mxu0 0
      %679 = vmatpush1.bf16.msra.mxu0 %v627
      %680 = vmatprep.subr.bf16.mxu0 0
      %681 = vmatpush1.bf16.msra.mxu0 0
      %682 = vmatprep.subr.bf16.mxu0 0
      %683 = vmatpush1.bf16.msra.mxu0 0
      %684 = vmatprep.subr.bf16.mxu0 0
      %685 = vmatpush1.bf16.msra.mxu0 0
      %686 = vmatprep.subr.bf16.mxu0 0
      %687 = vmatpush1.bf16.msra.mxu0 0
      %688 = vmatprep.subr.bf16.mxu0 0
      %689 = vmatpush1.bf16.msra.mxu0 0
      %690 = vmatprep.subr.bf16.mxu0 0
      %691 = vmatpush1.bf16.msra.mxu0 0
      %692 = vmatprep.subr.bf16.mxu0 0
      %693 = vmatpush1.bf16.msra.mxu0 0
      %694 = vmatprep.subr.bf16.mxu0 0
      %695 = vmatpush1.bf16.msra.mxu0 0
      %696 = vmatprep.subr.bf16.mxu0 0
      %697 = vmatpush1.bf16.msra.mxu0 0
      %698 = vmatprep.subr.bf16.mxu0 0
      %699 = vmatpush1.bf16.msra.mxu0 0
      %700 = vmatprep.subr.bf16.mxu0 0
      %701 = vmatpush1.bf16.msra.mxu0 0
      %702 = vmatprep.subr.bf16.mxu0 0
      %703 = vmatpush1.bf16.msra.mxu0 0
      %704 = vmatprep.subr.bf16.mxu0 0
      %705 = vmatpush1.bf16.msra.mxu0 0
      %706 = vmatprep.subr.bf16.mxu0 0
      %707 = vmatpush1.bf16.msra.mxu0 0
      %708 = vmatprep.subr.bf16.mxu0 0
      %709 = vmatpush1.bf16.msra.mxu0 0
      %710 = vmatprep.mubr.bf16.mxu0 0
      %711 = vmatmul.mubr.bf16.gmra.mrb[0].mxu0 %v631
      %v712 = vpop.f32.mrb[0].mxu0
      %v713 = vadd.f32 %v541, %v712
      %v714 = vpop.f32.mrb[0].mxu0
      %v715 = vpop.f32.mrb[0].mxu0
      %v716 = vadd.f32 %v541, %v715
      %v717 = vpop.f32.mrb[0].mxu0
      %718 = vmatprep.mubr.bf16.mxu0 0
      %719 = vmatmul.mubr.bf16.gmra.mrb[0].mxu0 %v634
      %v720 = vpop.f32.mrb[0].mxu0
      %v721 = vadd.f32 %v541, %v720
      %v722 = vpop.f32.mrb[0].mxu0
      %v723 = vpop.f32.mrb[0].mxu0
      %v724 = vadd.f32 %v541, %v723
      %v725 = vpop.f32.mrb[0].mxu0
      %726 = vmatprep.mubr.bf16.mxu0 0
      %727 = vmatmul.mubr.bf16.gmra.mrb[0].mxu0 %v637
      %v728 = vpop.f32.mrb[0].mxu0
      %v729 = vadd.f32 %v541, %v728
      %v730 = vpop.f32.mrb[0].mxu0
      %v731 = vpop.f32.mrb[0].mxu0
      %v732 = vadd.f32 %v541, %v731
      %v733 = vpop.f32.mrb[0].mxu0
      %734 = vmatprep.mubr.bf16.mxu0 0
      %735 = vmatmul.mubr.bf16.gmra.mrb[0].mxu0 %v640
      %v736 = vpop.f32.mrb[0].mxu0
      %v737 = vadd.f32 %v541, %v736
      %v738 = vpop.f32.mrb[0].mxu0
      %v739 = vpop.f32.mrb[0].mxu0
      %v740 = vadd.f32 %v541, %v739
      %v741 = vpop.f32.mrb[0].mxu0
      %742 = vmatprep.mubr.bf16.mxu0 0
      %743 = vmatmul.mubr.bf16.gmra.mrb[0].mxu0 %v643
      %v744 = vpop.f32.mrb[0].mxu0
      %v745 = vadd.f32 %v541, %v744
      %v746 = vpop.f32.mrb[0].mxu0
      %v747 = vpop.f32.mrb[0].mxu0
      %v748 = vadd.f32 %v541, %v747
      %v749 = vpop.f32.mrb[0].mxu0
      %750 = vmatprep.mubr.bf16.mxu0 0
      %751 = vmatmul.mubr.bf16.gmra.mrb[0].mxu0 %v646
      %v752 = vpop.f32.mrb[0].mxu0
      %v753 = vadd.f32 %v541, %v752
      %v754 = vpop.f32.mrb[0].mxu0
      %v755 = vpop.f32.mrb[0].mxu0
      %v756 = vadd.f32 %v541, %v755
      %v757 = vpop.f32.mrb[0].mxu0
      %758 = vmatprep.mubr.bf16.mxu0 0
      %759 = vmatmul.mubr.bf16.gmra.mrb[0].mxu0 %v649
      %v760 = vpop.f32.mrb[0].mxu0
      %v761 = vadd.f32 %v541, %v760
      %v762 = vpop.f32.mrb[0].mxu0
      %v763 = vpop.f32.mrb[0].mxu0
      %v764 = vadd.f32 %v541, %v763
      %v765 = vpop.f32.mrb[0].mxu0
      %766 = vmatprep.mubr.bf16.mxu0 0
      %767 = vmatmul.mubr.bf16.gmra.mrb[0].mxu0 %v652
      %v768 = vpop.f32.mrb[0].mxu0
      %v769 = vadd.f32 %v541, %v768
      %v770 = vpop.f32.mrb[0].mxu0
      %v771 = vpop.f32.mrb[0].mxu0
      %v772 = vadd.f32 %v541, %v771
      %v773 = vpop.f32.mrb[0].mxu0
      %774 = vmatprep.mubr.bf16.mxu0 0
      %775 = vmatmul.mubr.bf16.gmra.mrb[0].mxu0 %v655
      %v776 = vpop.f32.mrb[0].mxu0
      %v777 = vadd.f32 %v541, %v776
      %v778 = vpop.f32.mrb[0].mxu0
      %v779 = vpop.f32.mrb[0].mxu0
      %v780 = vadd.f32 %v541, %v779
      %v781 = vpop.f32.mrb[0].mxu0
      %782 = vmatprep.mubr.bf16.mxu0 0
      %783 = vmatmul.mubr.bf16.gmra.mrb[0].mxu0 %v658
      %v784 = vpop.f32.mrb[0].mxu0
      %v785 = vadd.f32 %v541, %v784
      %v786 = vpop.f32.mrb[0].mxu0
      %v787 = vpop.f32.mrb[0].mxu0
      %v788 = vadd.f32 %v541, %v787
      %v789 = vpop.f32.mrb[0].mxu0
      %790 = vmatprep.mubr.bf16.mxu0 0
      %791 = vmatmul.mubr.bf16.gmra.mrb[0].mxu0 %v661
      %v792 = vpop.f32.mrb[0].mxu0
      %v793 = vadd.f32 %v541, %v792
      %v794 = vpop.f32.mrb[0].mxu0
      %v795 = vpop.f32.mrb[0].mxu0
      %v796 = vadd.f32 %v541, %v795
      %v797 = vpop.f32.mrb[0].mxu0
      %798 = vmatprep.mubr.bf16.mxu0 0
      %799 = vmatmul.mubr.bf16.gmra.mrb[0].mxu0 %v664
      %v800 = vpop.f32.mrb[0].mxu0
      %v801 = vadd.f32 %v541, %v800
      %v802 = vpop.f32.mrb[0].mxu0
      %v803 = vpop.f32.mrb[0].mxu0
      %v804 = vadd.f32 %v541, %v803
      %v805 = vpop.f32.mrb[0].mxu0
      %806 = vmatprep.mubr.bf16.mxu0 0
      %807 = vmatmul.mubr.bf16.gmra.mrb[0].mxu0 %v667
      %v808 = vpop.f32.mrb[0].mxu0
      %v809 = vadd.f32 %v541, %v808
      %v810 = vpop.f32.mrb[0].mxu0
      %v811 = vpop.f32.mrb[0].mxu0
      %v812 = vadd.f32 %v541, %v811
      %v813 = vpop.f32.mrb[0].mxu0
      %814 = vmatprep.mubr.bf16.mxu0 0
      %815 = vmatmul.mubr.bf16.gmra.mrb[0].mxu0 %v670
      %v816 = vpop.f32.mrb[0].mxu0
      %v817 = vadd.f32 %v541, %v816
      %v818 = vpop.f32.mrb[0].mxu0
      %v819 = vpop.f32.mrb[0].mxu0
      %v820 = vadd.f32 %v541, %v819
      %v821 = vpop.f32.mrb[0].mxu0
      %822 = vmatprep.mubr.bf16.mxu0 0
      %823 = vmatmul.mubr.bf16.gmra.mrb[0].mxu0 %v673
      %v824 = vpop.f32.mrb[0].mxu0
      %v825 = vadd.f32 %v541, %v824
      %v826 = vpop.f32.mrb[0].mxu0
      %v827 = vpop.f32.mrb[0].mxu0
      %v828 = vadd.f32 %v541, %v827
      %v829 = vpop.f32.mrb[0].mxu0
      %830 = vmatprep.mubr.bf16.mxu0 0
      %831 = vmatmul.mubr.bf16.gmra.mrb[0].mxu0 %v676
      %v832 = vpop.f32.mrb[0].mxu0
      %v833 = vadd.f32 %v541, %v832
      %v834 = vpop.f32.mrb[0].mxu0
      %v835 = vpop.f32.mrb[0].mxu0
      %v836 = vadd.f32 %v541, %v835
      %v837 = vpop.f32.mrb[0].mxu0
      %838 = vdwg.mxu0
      %v839 = vmax.f32 %v713, 0.0
      %v840 = vmax.f32 %v716, 0.0
      %v841 = vmax.f32 %v721, 0.0
      %v842 = vmax.f32 %v724, 0.0
      %v843 = vmax.f32 %v729, 0.0
      %v844 = vmax.f32 %v732, 0.0
      %v845 = vmax.f32 %v737, 0.0
      %v846 = vmax.f32 %v740, 0.0
      %v847 = vmax.f32 %v745, 0.0
      %v848 = vmax.f32 %v748, 0.0
      %v849 = vmax.f32 %v753, 0.0
      %v850 = vmax.f32 %v756, 0.0
      %v851 = vmax.f32 %v761, 0.0
      %v852 = vmax.f32 %v764, 0.0
      %v853 = vmax.f32 %v769, 0.0
      %v854 = vmax.f32 %v772, 0.0
      %v855 = vmax.f32 %v777, 0.0
      %v856 = vmax.f32 %v780, 0.0
      %v857 = vmax.f32 %v785, 0.0
      %v858 = vmax.f32 %v788, 0.0
      %v859 = vmax.f32 %v793, 0.0
      %v860 = vmax.f32 %v796, 0.0
      %v861 = vmax.f32 %v801, 0.0
      %v862 = vmax.f32 %v804, 0.0
      %v863 = vmax.f32 %v809, 0.0
      %v864 = vmax.f32 %v812, 0.0
      %v865 = vmax.f32 %v817, 0.0
      %v866 = vmax.f32 %v820, 0.0
      %v867 = vmax.f32 %v825, 0.0
      %v868 = vmax.f32 %v828, 0.0
      %v869 = vmax.f32 %v833, 0.0
      %v870 = vmax.f32 %v836, 0.0
      %vm871 = vcmask 31744
      %872 = vst.msk [vmem:[#allocation2 + $0x10] sm:$0xff] %vm871, %v839
      %873 = vst.msk [vmem:[#allocation2 + $0x18] sm:$0xff] %vm871, %v840
      %874 = vst.msk [vmem:[#allocation2 + $0x20] sm:$0xff] %vm871, %v841
      %875 = vst.msk [vmem:[#allocation2 + $0x28] sm:$0xff] %vm871, %v842
      %876 = vst.msk [vmem:[#allocation2 + $0x30] sm:$0xff] %vm871, %v843
      %877 = vst.msk [vmem:[#allocation2 + $0x38] sm:$0xff] %vm871, %v844
      %878 = vst.msk [vmem:[#allocation2 + $0x40] sm:$0xff] %vm871, %v845
      %879 = vst.msk [vmem:[#allocation2 + $0x48] sm:$0xff] %vm871, %v846
      %880 = vst.msk [vmem:[#allocation2 + $0x50] sm:$0xff] %vm871, %v847
      %881 = vst.msk [vmem:[#allocation2 + $0x58] sm:$0xff] %vm871, %v848
      %882 = vst.msk [vmem:[#allocation2 + $0x60] sm:$0xff] %vm871, %v849
      %883 = vst.msk [vmem:[#allocation2 + $0x68] sm:$0xff] %vm871, %v850
      %884 = vst.msk [vmem:[#allocation2 + $0x70] sm:$0xff] %vm871, %v851
      %885 = vst.msk [vmem:[#allocation2 + $0x78] sm:$0xff] %vm871, %v852
      %886 = vst.msk [vmem:[#allocation2 + $0x80] sm:$0xff] %vm871, %v853
      %887 = vst.msk [vmem:[#allocation2 + $0x88] sm:$0xff] %vm871, %v854
      %888 = vst.msk [vmem:[#allocation2 + $0x90] sm:$0xff] %vm871, %v855
      %889 = vst.msk [vmem:[#allocation2 + $0x98] sm:$0xff] %vm871, %v856
      %890 = vst.msk [vmem:[#allocation2 + $0xa0] sm:$0xff] %vm871, %v857
      %891 = vst.msk [vmem:[#allocation2 + $0xa8] sm:$0xff] %vm871, %v858
      %892 = vst.msk [vmem:[#allocation2 + $0xb0] sm:$0xff] %vm871, %v859
      %893 = vst.msk [vmem:[#allocation2 + $0xb8] sm:$0xff] %vm871, %v860
      %894 = vst.msk [vmem:[#allocation2 + $0xc0] sm:$0xff] %vm871, %v861
      %895 = vst.msk [vmem:[#allocation2 + $0xc8] sm:$0xff] %vm871, %v862
      %896 = vst.msk [vmem:[#allocation2 + $0xd0] sm:$0xff] %vm871, %v863
      %897 = vst.msk [vmem:[#allocation2 + $0xd8] sm:$0xff] %vm871, %v864
      %898 = vst.msk [vmem:[#allocation2 + $0xe0] sm:$0xff] %vm871, %v865
      %899 = vst.msk [vmem:[#allocation2 + $0xe8] sm:$0xff] %vm871, %v866
      %900 = vst.msk [vmem:[#allocation2 + $0xf0] sm:$0xff] %vm871, %v867
      %901 = vst.msk [vmem:[#allocation2 + $0xf8] sm:$0xff] %vm871, %v868
      %902 = vst.msk [vmem:[#allocation2 + $0x100] sm:$0xff] %vm871, %v869
      %903 = vst.msk [vmem:[#allocation2 + $0x108] sm:$0xff] %vm871, %v870
      %v904 = vld [vmem:[%s468] sm:$0xf]
      %v905 = vld [vmem:[%s468 + $0x4] sm:$0xf]
      %v906 = vld [vmem:[%s485] sm:$0xf]
      %v907 = vld [vmem:[%s485 + $0x4] sm:$0xf]
      %v910 = vunpack.c.l.b16 %v904
      %v911 = vunpack.c.l.b16 %v905
      %v912 = vpack.c.b16 %v911, %v910
      %v915 = vunpack.c.l.b16 %v906
      %v916 = vunpack.c.l.b16 %v907
      %v917 = vpack.c.b16 %v916, %v915
      %v919 = vsel %vm629, %v912, 0
      %v922 = vsel %vm629, %v917, 0
      %924 = vmatprep.subr.bf16.mxu0 0
      %925 = vmatpush1.bf16.msra.mxu0 %v627
      %926 = vmatprep.subr.bf16.mxu0 0
      %927 = vmatpush1.bf16.msra.mxu0 0
      %928 = vmatprep.subr.bf16.mxu0 0
      %929 = vmatpush1.bf16.msra.mxu0 0
      %930 = vmatprep.subr.bf16.mxu0 0
      %931 = vmatpush1.bf16.msra.mxu0 0
      %932 = vmatprep.subr.bf16.mxu0 0
      %933 = vmatpush1.bf16.msra.mxu0 0
      %934 = vmatprep.subr.bf16.mxu0 0
      %935 = vmatpush1.bf16.msra.mxu0 0
      %936 = vmatprep.subr.bf16.mxu0 0
      %937 = vmatpush1.bf16.msra.mxu0 0
      %938 = vmatprep.subr.bf16.mxu0 0
      %939 = vmatpush1.bf16.msra.mxu0 0
      %940 = vmatprep.subr.bf16.mxu0 0
      %941 = vmatpush1.bf16.msra.mxu0 0
      %942 = vmatprep.subr.bf16.mxu0 0
      %943 = vmatpush1.bf16.msra.mxu0 0
      %944 = vmatprep.subr.bf16.mxu0 0
      %945 = vmatpush1.bf16.msra.mxu0 0
      %946 = vmatprep.subr.bf16.mxu0 0
      %947 = vmatpush1.bf16.msra.mxu0 0
      %948 = vmatprep.subr.bf16.mxu0 0
      %949 = vmatpush1.bf16.msra.mxu0 0
      %950 = vmatprep.subr.bf16.mxu0 0
      %951 = vmatpush1.bf16.msra.mxu0 0
      %952 = vmatprep.subr.bf16.mxu0 0
      %953 = vmatpush1.bf16.msra.mxu0 0
      %954 = vmatprep.subr.bf16.mxu0 0
      %955 = vmatpush1.bf16.msra.mxu0 0
      %956 = vmatprep.mubr.bf16.mxu0 0
      %957 = vmatmul.mubr.bf16.gmra.mrb[0].mxu0 %v919
      %v958 = vpop.f32.mrb[0].mxu0
      %v959 = vadd.f32 %v541, %v958
      %v960 = vpop.f32.mrb[0].mxu0
      %v961 = vpop.f32.mrb[0].mxu0
      %v962 = vadd.f32 %v541, %v961
      %v963 = vpop.f32.mrb[0].mxu0
      %964 = vmatprep.mubr.bf16.mxu0 0
      %965 = vmatmul.mubr.bf16.gmra.mrb[0].mxu0 %v922
      %v966 = vpop.f32.mrb[0].mxu0
      %v967 = vadd.f32 %v541, %v966
      %v968 = vpop.f32.mrb[0].mxu0
      %v969 = vpop.f32.mrb[0].mxu0
      %v970 = vadd.f32 %v541, %v969
      %v971 = vpop.f32.mrb[0].mxu0
      %972 = vdwg.mxu0
      %v973 = vmax.f32 %v959, 0.0
      %v974 = vmax.f32 %v962, 0.0
      %v975 = vmax.f32 %v967, 0.0
      %v976 = vmax.f32 %v970, 0.0
      %977 = vst.msk [vmem:[#allocation2] sm:$0xff] %vm871, %v973
      %978 = vst.msk [vmem:[#allocation2 + $0x8] sm:$0xff] %vm871, %v974
      %979 = vst.msk [vmem:[#allocation2 + $0x110] sm:$0xff] %vm871, %v975
      %980 = vst.msk [vmem:[#allocation2 + $0x118] sm:$0xff] %vm871, %v976
      %p981 = scmp.eq.s32.totalorder %s25, 0
      // Predicated region
      $region57: #{bottleneck_forward.1} parent=55 // pred_check
        %p982 = pneg %p981
      $region58: #{bottleneck_forward.1} parent=55 // pred_check_branch
        %984 = sbr.rel (%p982) target = $region60
      $region59: #{bottleneck_forward.1} parent=55 // pred_region
        %985 = vst.msk [vmem:[#allocation2] sm:$0xff] %vm871, 0.0
        %986 = vst.msk [vmem:[#allocation2 + $0x8] sm:$0xff] %vm871, 0.0
        %987 = vst.msk [vmem:[#allocation2 + $0x110] sm:$0xff] %vm871, 0.0
        %988 = vst.msk [vmem:[#allocation2 + $0x118] sm:$0xff] %vm871, 0.0
      $region60: #{bottleneck_forward.1} parent=55 // pred_fallthru
        _
      %v989 = vld [vmem:[#allocation2] sm:$0xff]
      %v990 = vld [vmem:[#allocation2 + $0x8] sm:$0xff]
      %v991 = vld [vmem:[#allocation2 + $0x10] sm:$0xff]
      %v992 = vld [vmem:[#allocation2 + $0x18] sm:$0xff]
      %v993 = vld [vmem:[#allocation2 + $0x20] sm:$0xff]
      %v994 = vld [vmem:[#allocation2 + $0x28] sm:$0xff]
      %v995 = vld [vmem:[#allocation2 + $0x30] sm:$0xff]
      %v996 = vld [vmem:[#allocation2 + $0x38] sm:$0xff]
      %v997 = vld [vmem:[#allocation2 + $0x40] sm:$0xff]
      %v998 = vld [vmem:[#allocation2 + $0x48] sm:$0xff]
      %v999 = vld [vmem:[#allocation2 + $0x50] sm:$0xff]
      %v1000 = vld [vmem:[#allocation2 + $0x58] sm:$0xff]
      %v1001 = vld [vmem:[#allocation2 + $0x60] sm:$0xff]
      %v1002 = vld [vmem:[#allocation2 + $0x68] sm:$0xff]
      %v1003 = vld [vmem:[#allocation2 + $0x70] sm:$0xff]
      %v1004 = vld [vmem:[#allocation2 + $0x78] sm:$0xff]
      %v1005 = vld [vmem:[#allocation2 + $0x80] sm:$0xff]
      %v1006 = vld [vmem:[#allocation2 + $0x88] sm:$0xff]
      %v1007 = vld [vmem:[#allocation2 + $0x90] sm:$0xff]
      %v1008 = vld [vmem:[#allocation2 + $0x98] sm:$0xff]
      %v1009 = vld [vmem:[#allocation2 + $0xa0] sm:$0xff]
      %v1010 = vld [vmem:[#allocation2 + $0xa8] sm:$0xff]
      %v1011 = vld [vmem:[#allocation2 + $0xb0] sm:$0xff]
      %v1012 = vld [vmem:[#allocation2 + $0xb8] sm:$0xff]
      %v1013 = vld [vmem:[#allocation2 + $0xc0] sm:$0xff]
      %v1014 = vld [vmem:[#allocation2 + $0xc8] sm:$0xff]
      %v1015 = vld [vmem:[#allocation2 + $0xd0] sm:$0xff]
      %v1016 = vld [vmem:[#allocation2 + $0xd8] sm:$0xff]
      %v1017 = vld [vmem:[#allocation2 + $0xe0] sm:$0xff]
      %v1018 = vld [vmem:[#allocation2 + $0xe8] sm:$0xff]
      %v1019 = vld [vmem:[#allocation2 + $0xf0] sm:$0xff]
      %v1020 = vld [vmem:[#allocation2 + $0xf8] sm:$0xff]
      %v1021 = vld [vmem:[#allocation2 + $0x100] sm:$0xff]
      %v1022 = vld [vmem:[#allocation2 + $0x108] sm:$0xff]
      %v1023 = vld [vmem:[#allocation2 + $0x110] sm:$0xff]
      %v1024 = vld [vmem:[#allocation2 + $0x118] sm:$0xff]
      %v1025 = vrot.slane %v989, 7
      %v1026 = vrot.slane %v990, 7
      %v1027 = vrot.slane %v991, 7
      %v1028 = vrot.slane %v992, 7
      %v1029 = vrot.slane %v993, 7
      %v1030 = vrot.slane %v994, 7
      %v1031 = vrot.slane %v995, 7
      %v1032 = vrot.slane %v996, 7
      %v1033 = vrot.slane %v997, 7
      %v1034 = vrot.slane %v998, 7
      %v1035 = vrot.slane %v999, 7
      %v1036 = vrot.slane %v1000, 7
      %v1037 = vrot.slane %v1001, 7
      %v1038 = vrot.slane %v1002, 7
      %v1039 = vrot.slane %v1003, 7
      %v1040 = vrot.slane %v1004, 7
      %v1041 = vrot.slane %v1005, 7
      %v1042 = vrot.slane %v1006, 7
      %v1043 = vrot.slane %v1007, 7
      %v1044 = vrot.slane %v1008, 7
      %v1045 = vrot.slane %v1009, 7
      %v1046 = vrot.slane %v1010, 7
      %v1047 = vrot.slane %v1011, 7
      %v1048 = vrot.slane %v1012, 7
      %v1049 = vrot.slane %v1013, 7
      %v1050 = vrot.slane %v1014, 7
      %v1051 = vrot.slane %v1015, 7
      %v1052 = vrot.slane %v1016, 7
      %v1053 = vrot.slane %v1017, 7
      %v1054 = vrot.slane %v1018, 7
      %v1055 = vrot.slane %v1019, 7
      %v1056 = vrot.slane %v1020, 7
      %v1057 = vrot.slane %v1021, 7
      %v1058 = vrot.slane %v1022, 7
      %v1059 = vrot.slane %v1023, 7
      %v1060 = vrot.slane %v1024, 7
      %v1061 = vlaneseq
      %v1062 = vshrl.u32 %v1061, 7
      %vm1063 = vcmp.lt.s32.totalorder %v1062, 1
      %v1064 = vsel %vm1063, %v1059, %v1060
      %v1065 = vsel %vm1063, %v1058, %v1059
      %v1066 = vsel %vm1063, %v1057, %v1058
      %v1067 = vsel %vm1063, %v1056, %v1057
      %v1068 = vsel %vm1063, %v1055, %v1056
      %v1069 = vsel %vm1063, %v1054, %v1055
      %v1070 = vsel %vm1063, %v1053, %v1054
      %v1071 = vsel %vm1063, %v1052, %v1053
      %v1072 = vsel %vm1063, %v1051, %v1052
      %v1073 = vsel %vm1063, %v1050, %v1051
      %v1074 = vsel %vm1063, %v1049, %v1050
      %v1075 = vsel %vm1063, %v1048, %v1049
      %v1076 = vsel %vm1063, %v1047, %v1048
      %v1077 = vsel %vm1063, %v1046, %v1047
      %v1078 = vsel %vm1063, %v1045, %v1046
      %v1079 = vsel %vm1063, %v1044, %v1045
      %v1080 = vsel %vm1063, %v1043, %v1044
      %v1081 = vsel %vm1063, %v1042, %v1043
      %v1082 = vsel %vm1063, %v1041, %v1042
      %v1083 = vsel %vm1063, %v1040, %v1041
      %v1084 = vsel %vm1063, %v1039, %v1040
      %v1085 = vsel %vm1063, %v1038, %v1039
      %v1086 = vsel %vm1063, %v1037, %v1038
      %v1087 = vsel %vm1063, %v1036, %v1037
      %v1088 = vsel %vm1063, %v1035, %v1036
      %v1089 = vsel %vm1063, %v1034, %v1035
      %v1090 = vsel %vm1063, %v1033, %v1034
      %v1091 = vsel %vm1063, %v1032, %v1033
      %v1092 = vsel %vm1063, %v1031, %v1032
      %v1093 = vsel %vm1063, %v1030, %v1031
      %v1094 = vsel %vm1063, %v1029, %v1030
      %v1095 = vsel %vm1063, %v1028, %v1029
      %v1096 = vsel %vm1063, %v1027, %v1028
      %v1097 = vsel %vm1063, %v1026, %v1027
      %v1098 = vsel %vm1063, %v1025, %v1026
      %v1099 = vsel %vm1063, %v1060, %v1025
      %v1100 = vrot.slane %v989, 1
      %v1101 = vrot.slane %v990, 1
      %v1102 = vrot.slane %v991, 1
      %v1103 = vrot.slane %v992, 1
      %v1104 = vrot.slane %v993, 1
      %v1105 = vrot.slane %v994, 1
      %v1106 = vrot.slane %v995, 1
      %v1107 = vrot.slane %v996, 1
      %v1108 = vrot.slane %v997, 1
      %v1109 = vrot.slane %v998, 1
      %v1110 = vrot.slane %v999, 1
      %v1111 = vrot.slane %v1000, 1
      %v1112 = vrot.slane %v1001, 1
      %v1113 = vrot.slane %v1002, 1
      %v1114 = vrot.slane %v1003, 1
      %v1115 = vrot.slane %v1004, 1
      %v1116 = vrot.slane %v1005, 1
      %v1117 = vrot.slane %v1006, 1
      %v1118 = vrot.slane %v1007, 1
      %v1119 = vrot.slane %v1008, 1
      %v1120 = vrot.slane %v1009, 1
      %v1121 = vrot.slane %v1010, 1
      %v1122 = vrot.slane %v1011, 1
      %v1123 = vrot.slane %v1012, 1
      %v1124 = vrot.slane %v1013, 1
      %v1125 = vrot.slane %v1014, 1
      %v1126 = vrot.slane %v1015, 1
      %v1127 = vrot.slane %v1016, 1
      %v1128 = vrot.slane %v1017, 1
      %v1129 = vrot.slane %v1018, 1
      %v1130 = vrot.slane %v1019, 1
      %v1131 = vrot.slane %v1020, 1
      %v1132 = vrot.slane %v1021, 1
      %v1133 = vrot.slane %v1022, 1
      %v1134 = vrot.slane %v1023, 1
      %v1135 = vrot.slane %v1024, 1
      %vm1136 = vcmp.lt.s32.totalorder %v1062, 7
      %v1137 = vsel %vm1136, %v1134, %v1135
      %v1138 = vsel %vm1136, %v1133, %v1134
      %v1139 = vsel %vm1136, %v1132, %v1133
      %v1140 = vsel %vm1136, %v1131, %v1132
      %v1141 = vsel %vm1136, %v1130, %v1131
      %v1142 = vsel %vm1136, %v1129, %v1130
      %v1143 = vsel %vm1136, %v1128, %v1129
      %v1144 = vsel %vm1136, %v1127, %v1128
      %v1145 = vsel %vm1136, %v1126, %v1127
      %v1146 = vsel %vm1136, %v1125, %v1126
      %v1147 = vsel %vm1136, %v1124, %v1125
      %v1148 = vsel %vm1136, %v1123, %v1124
      %v1149 = vsel %vm1136, %v1122, %v1123
      %v1150 = vsel %vm1136, %v1121, %v1122
      %v1151 = vsel %vm1136, %v1120, %v1121
      %v1152 = vsel %vm1136, %v1119, %v1120
      %v1153 = vsel %vm1136, %v1118, %v1119
      %v1154 = vsel %vm1136, %v1117, %v1118
      %v1155 = vsel %vm1136, %v1116, %v1117
      %v1156 = vsel %vm1136, %v1115, %v1116
      %v1157 = vsel %vm1136, %v1114, %v1115
      %v1158 = vsel %vm1136, %v1113, %v1114
      %v1159 = vsel %vm1136, %v1112, %v1113
      %v1160 = vsel %vm1136, %v1111, %v1112
      %v1161 = vsel %vm1136, %v1110, %v1111
      %v1162 = vsel %vm1136, %v1109, %v1110
      %v1163 = vsel %vm1136, %v1108, %v1109
      %v1164 = vsel %vm1136, %v1107, %v1108
      %v1165 = vsel %vm1136, %v1106, %v1107
      %v1166 = vsel %vm1136, %v1105, %v1106
      %v1167 = vsel %vm1136, %v1104, %v1105
      %v1168 = vsel %vm1136, %v1103, %v1104
      %v1169 = vsel %vm1136, %v1102, %v1103
      %v1170 = vsel %vm1136, %v1101, %v1102
      %v1171 = vsel %vm1136, %v1100, %v1101
      %v1172 = vsel %vm1136, %v1135, %v1100
      %v1173 = vadd.s32 %v1062, 8
      %v1174 = vpack.c.bf16 %v990, %v989
      %v1175 = vpack.c.bf16 %v992, %v991
      %v1176 = vpack.c.bf16 %v994, %v993
      %v1177 = vpack.c.bf16 %v996, %v995
      %v1178 = vpack.c.bf16 %v998, %v997
      %v1179 = vpack.c.bf16 %v1000, %v999
      %v1180 = vpack.c.bf16 %v1002, %v1001
      %v1181 = vpack.c.bf16 %v1004, %v1003
      %v1182 = vpack.c.bf16 %v1006, %v1005
      %v1183 = vpack.c.bf16 %v1008, %v1007
      %v1184 = vpack.c.bf16 %v1010, %v1009
      %v1185 = vpack.c.bf16 %v1012, %v1011
      %v1186 = vpack.c.bf16 %v1014, %v1013
      %v1187 = vpack.c.bf16 %v1016, %v1015
      %v1188 = vpack.c.bf16 %v1018, %v1017
      %v1189 = vpack.c.bf16 %v1020, %v1019
      %v1190 = vpack.c.bf16 %v1022, %v1021
      %v1191 = vpack.c.bf16 %v1024, %v1023
      %vm1192 = vcmp.eq.s32.totalorder %v1062, 0
      %vm1193 = vcmp.eq.s32.totalorder %v1173, 0
      %v1194 = vsel %vm1192, 1, 0
      %v1195 = vsel %vm1193, 1, 0
      %vm1196 = vcmp.eq.s32.totalorder %v1194, 1
      %vm1197 = vcmp.eq.s32.totalorder %v1195, 1
      %v1198 = vsel %vm1196, 0.0, %v1099
      %v1199 = vsel %vm1197, 0.0, %v1098
      %v1200 = vsel %vm1196, 0.0, %v1097
      %v1201 = vsel %vm1197, 0.0, %v1096
      %v1202 = vsel %vm1196, 0.0, %v1095
      %v1203 = vsel %vm1197, 0.0, %v1094
      %v1204 = vsel %vm1196, 0.0, %v1093
      %v1205 = vsel %vm1197, 0.0, %v1092
      %v1206 = vsel %vm1196, 0.0, %v1091
      %v1207 = vsel %vm1197, 0.0, %v1090
      %v1208 = vsel %vm1196, 0.0, %v1089
      %v1209 = vsel %vm1197, 0.0, %v1088
      %v1210 = vsel %vm1196, 0.0, %v1087
      %v1211 = vsel %vm1197, 0.0, %v1086
      %v1212 = vsel %vm1196, 0.0, %v1085
      %v1213 = vsel %vm1197, 0.0, %v1084
      %v1214 = vsel %vm1196, 0.0, %v1083
      %v1215 = vsel %vm1197, 0.0, %v1082
      %v1216 = vsel %vm1196, 0.0, %v1081
      %v1217 = vsel %vm1197, 0.0, %v1080
      %v1218 = vsel %vm1196, 0.0, %v1079
      %v1219 = vsel %vm1197, 0.0, %v1078
      %v1220 = vsel %vm1196, 0.0, %v1077
      %v1221 = vsel %vm1197, 0.0, %v1076
      %v1222 = vsel %vm1196, 0.0, %v1075
      %v1223 = vsel %vm1197, 0.0, %v1074
      %v1224 = vsel %vm1196, 0.0, %v1073
      %v1225 = vsel %vm1197, 0.0, %v1072
      %v1226 = vsel %vm1196, 0.0, %v1071
      %v1227 = vsel %vm1197, 0.0, %v1070
      %v1228 = vsel %vm1196, 0.0, %v1069
      %v1229 = vsel %vm1197, 0.0, %v1068
      %v1230 = vsel %vm1196, 0.0, %v1067
      %v1231 = vsel %vm1197, 0.0, %v1066
      %v1232 = vsel %vm1196, 0.0, %v1065
      %v1233 = vsel %vm1197, 0.0, %v1064
      %v1234 = vpack.c.bf16 %v1199, %v1198
      %v1235 = vpack.c.bf16 %v1201, %v1200
      %v1236 = vpack.c.bf16 %v1203, %v1202
      %v1237 = vpack.c.bf16 %v1205, %v1204
      %v1238 = vpack.c.bf16 %v1207, %v1206
      %v1239 = vpack.c.bf16 %v1209, %v1208
      %v1240 = vpack.c.bf16 %v1211, %v1210
      %v1241 = vpack.c.bf16 %v1213, %v1212
      %v1242 = vpack.c.bf16 %v1215, %v1214
      %v1243 = vpack.c.bf16 %v1217, %v1216
      %v1244 = vpack.c.bf16 %v1219, %v1218
      %v1245 = vpack.c.bf16 %v1221, %v1220
      %v1246 = vpack.c.bf16 %v1223, %v1222
      %v1247 = vpack.c.bf16 %v1225, %v1224
      %v1248 = vpack.c.bf16 %v1227, %v1226
      %v1249 = vpack.c.bf16 %v1229, %v1228
      %v1250 = vpack.c.bf16 %v1231, %v1230
      %v1251 = vpack.c.bf16 %v1233, %v1232
      %vm1252 = vcmp.eq.s32.totalorder %v1062, 15
      %vm1253 = vcmp.eq.s32.totalorder %v1173, 15
      %v1254 = vsel %vm1252, 1, 0
      %v1255 = vsel %vm1253, 1, 0
      %vm1256 = vcmp.eq.s32.totalorder %v1254, 1
      %vm1257 = vcmp.eq.s32.totalorder %v1255, 1
      %v1258 = vsel %vm1256, 0.0, %v1171
      %v1259 = vsel %vm1257, 0.0, %v1170
      %v1260 = vsel %vm1256, 0.0, %v1169
      %v1261 = vsel %vm1257, 0.0, %v1168
      %v1262 = vsel %vm1256, 0.0, %v1167
      %v1263 = vsel %vm1257, 0.0, %v1166
      %v1264 = vsel %vm1256, 0.0, %v1165
      %v1265 = vsel %vm1257, 0.0, %v1164
      %v1266 = vsel %vm1256, 0.0, %v1163
      %v1267 = vsel %vm1257, 0.0, %v1162
      %v1268 = vsel %vm1256, 0.0, %v1161
      %v1269 = vsel %vm1257, 0.0, %v1160
      %v1270 = vsel %vm1256, 0.0, %v1159
      %v1271 = vsel %vm1257, 0.0, %v1158
      %v1272 = vsel %vm1256, 0.0, %v1157
      %v1273 = vsel %vm1257, 0.0, %v1156
      %v1274 = vsel %vm1256, 0.0, %v1155
      %v1275 = vsel %vm1257, 0.0, %v1154
      %v1276 = vsel %vm1256, 0.0, %v1153
      %v1277 = vsel %vm1257, 0.0, %v1152
      %v1278 = vsel %vm1256, 0.0, %v1151
      %v1279 = vsel %vm1257, 0.0, %v1150
      %v1280 = vsel %vm1256, 0.0, %v1149
      %v1281 = vsel %vm1257, 0.0, %v1148
      %v1282 = vsel %vm1256, 0.0, %v1147
      %v1283 = vsel %vm1257, 0.0, %v1146
      %v1284 = vsel %vm1256, 0.0, %v1145
      %v1285 = vsel %vm1257, 0.0, %v1144
      %v1286 = vsel %vm1256, 0.0, %v1143
      %v1287 = vsel %vm1257, 0.0, %v1142
      %v1288 = vsel %vm1256, 0.0, %v1141
      %v1289 = vsel %vm1257, 0.0, %v1140
      %v1290 = vsel %vm1256, 0.0, %v1139
      %v1291 = vsel %vm1257, 0.0, %v1138
      %v1292 = vsel %vm1256, 0.0, %v1137
      %v1293 = vsel %vm1257, 0.0, %v1172
      %v1294 = vpack.c.bf16 %v1259, %v1258
      %v1295 = vpack.c.bf16 %v1261, %v1260
      %v1296 = vpack.c.bf16 %v1263, %v1262
      %v1297 = vpack.c.bf16 %v1265, %v1264
      %v1298 = vpack.c.bf16 %v1267, %v1266
      %v1299 = vpack.c.bf16 %v1269, %v1268
      %v1300 = vpack.c.bf16 %v1271, %v1270
      %v1301 = vpack.c.bf16 %v1273, %v1272
      %v1302 = vpack.c.bf16 %v1275, %v1274
      %v1303 = vpack.c.bf16 %v1277, %v1276
      %v1304 = vpack.c.bf16 %v1279, %v1278
      %v1305 = vpack.c.bf16 %v1281, %v1280
      %v1306 = vpack.c.bf16 %v1283, %v1282
      %v1307 = vpack.c.bf16 %v1285, %v1284
      %v1308 = vpack.c.bf16 %v1287, %v1286
      %v1309 = vpack.c.bf16 %v1289, %v1288
      %v1310 = vpack.c.bf16 %v1291, %v1290
      %v1311 = vpack.c.bf16 %v1293, %v1292
      %v1312 = vld [vmem:[%s4] sm:$0x3]
      %s1313 = scalar_lea.vmem %s4, 2
      %v1314 = vld [vmem:[%s1313] sm:$0x3]
      %v1316 = vsel %vm871, %v1174, 0
      %v1319 = vsel %vm871, %v1175, 0
      %v1322 = vsel %vm871, %v1176, 0
      %v1325 = vsel %vm871, %v1177, 0
      %v1328 = vsel %vm871, %v1178, 0
      %v1331 = vsel %vm871, %v1179, 0
      %v1334 = vsel %vm871, %v1180, 0
      %v1337 = vsel %vm871, %v1181, 0
      %v1340 = vsel %vm871, %v1182, 0
      %v1343 = vsel %vm871, %v1183, 0
      %v1346 = vsel %vm871, %v1184, 0
      %v1349 = vsel %vm871, %v1185, 0
      %v1352 = vsel %vm871, %v1186, 0
      %v1355 = vsel %vm871, %v1187, 0
      %v1358 = vsel %vm871, %v1188, 0
      %v1361 = vsel %vm871, %v1189, 0
      %vm1363 = vcmask 1041408
      %v1365 = vsel %vm1363, %v1314, 0
      %1367 = vmatprep.subr.bf16.mxu0 0
      %1368 = vmatpush1.bf16.msra.mxu0 %v1365
      %1369 = vmatprep.subr.bf16.mxu0 0
      %1370 = vmatpush1.bf16.msra.mxu0 0
      %1371 = vmatprep.subr.bf16.mxu0 0
      %1372 = vmatpush1.bf16.msra.mxu0 0
      %1373 = vmatprep.subr.bf16.mxu0 0
      %1374 = vmatpush1.bf16.msra.mxu0 0
      %1375 = vmatprep.subr.bf16.mxu0 0
      %1376 = vmatpush1.bf16.msra.mxu0 0
      %1377 = vmatprep.subr.bf16.mxu0 0
      %1378 = vmatpush1.bf16.msra.mxu0 0
      %1379 = vmatprep.subr.bf16.mxu0 0
      %1380 = vmatpush1.bf16.msra.mxu0 0
      %1381 = vmatprep.subr.bf16.mxu0 0
      %1382 = vmatpush1.bf16.msra.mxu0 0
      %1383 = vmatprep.subr.bf16.mxu0 0
      %1384 = vmatpush1.bf16.msra.mxu0 0
      %1385 = vmatprep.subr.bf16.mxu0 0
      %1386 = vmatpush1.bf16.msra.mxu0 0
      %1387 = vmatprep.subr.bf16.mxu0 0
      %1388 = vmatpush1.bf16.msra.mxu0 0
      %1389 = vmatprep.subr.bf16.mxu0 0
      %1390 = vmatpush1.bf16.msra.mxu0 0
      %1391 = vmatprep.subr.bf16.mxu0 0
      %1392 = vmatpush1.bf16.msra.mxu0 0
      %1393 = vmatprep.subr.bf16.mxu0 0
      %1394 = vmatpush1.bf16.msra.mxu0 0
      %1395 = vmatprep.subr.bf16.mxu0 0
      %1396 = vmatpush1.bf16.msra.mxu0 0
      %1397 = vmatprep.subr.bf16.mxu0 0
      %1398 = vmatpush1.bf16.msra.mxu0 0
      %1399 = vmatprep.mubr.bf16.mxu0 0
      %1400 = vmatmul.mubr.bf16.gmra.mrb[0].mxu0 %v1316
      %v1401 = vpop.f32.mrb[0].mxu0
      %v1402 = vadd.f32 0.0, %v1401
      %v1403 = vpop.f32.mrb[0].mxu0
      %v1404 = vpop.f32.mrb[0].mxu0
      %v1405 = vadd.f32 0.0, %v1404
      %v1406 = vpop.f32.mrb[0].mxu0
      %1407 = vmatprep.mubr.bf16.mxu0 0
      %1408 = vmatmul.mubr.bf16.gmra.mrb[0].mxu0 %v1319
      %v1409 = vpop.f32.mrb[0].mxu0
      %v1410 = vadd.f32 0.0, %v1409
      %v1411 = vpop.f32.mrb[0].mxu0
      %v1412 = vpop.f32.mrb[0].mxu0
      %v1413 = vadd.f32 0.0, %v1412
      %v1414 = vpop.f32.mrb[0].mxu0
      %1415 = vmatprep.mubr.bf16.mxu0 0
      %1416 = vmatmul.mubr.bf16.gmra.mrb[0].mxu0 %v1322
      %v1417 = vpop.f32.mrb[0].mxu0
      %v1418 = vadd.f32 0.0, %v1417
      %v1419 = vpop.f32.mrb[0].mxu0
      %v1420 = vpop.f32.mrb[0].mxu0
      %v1421 = vadd.f32 0.0, %v1420
      %v1422 = vpop.f32.mrb[0].mxu0
      %1423 = vmatprep.mubr.bf16.mxu0 0
      %1424 = vmatmul.mubr.bf16.gmra.mrb[0].mxu0 %v1325
      %v1425 = vpop.f32.mrb[0].mxu0
      %v1426 = vadd.f32 0.0, %v1425
      %v1427 = vpop.f32.mrb[0].mxu0
      %v1428 = vpop.f32.mrb[0].mxu0
      %v1429 = vadd.f32 0.0, %v1428
      %v1430 = vpop.f32.mrb[0].mxu0
      %1431 = vmatprep.mubr.bf16.mxu0 0
      %1432 = vmatmul.mubr.bf16.gmra.mrb[0].mxu0 %v1328
      %v1433 = vpop.f32.mrb[0].mxu0
      %v1434 = vadd.f32 0.0, %v1433
      %v1435 = vpop.f32.mrb[0].mxu0
      %v1436 = vpop.f32.mrb[0].mxu0
      %v1437 = vadd.f32 0.0, %v1436
      %v1438 = vpop.f32.mrb[0].mxu0
      %1439 = vmatprep.mubr.bf16.mxu0 0
      %1440 = vmatmul.mubr.bf16.gmra.mrb[0].mxu0 %v1331
      %v1441 = vpop.f32.mrb[0].mxu0
      %v1442 = vadd.f32 0.0, %v1441
      %v1443 = vpop.f32.mrb[0].mxu0
      %v1444 = vpop.f32.mrb[0].mxu0
      %v1445 = vadd.f32 0.0, %v1444
      %v1446 = vpop.f32.mrb[0].mxu0
      %1447 = vmatprep.mubr.bf16.mxu0 0
      %1448 = vmatmul.mubr.bf16.gmra.mrb[0].mxu0 %v1334
      %v1449 = vpop.f32.mrb[0].mxu0
      %v1450 = vadd.f32 0.0, %v1449
      %v1451 = vpop.f32.mrb[0].mxu0
      %v1452 = vpop.f32.mrb[0].mxu0
      %v1453 = vadd.f32 0.0, %v1452
      %v1454 = vpop.f32.mrb[0].mxu0
      %1455 = vmatprep.mubr.bf16.mxu0 0
      %1456 = vmatmul.mubr.bf16.gmra.mrb[0].mxu0 %v1337
      %v1457 = vpop.f32.mrb[0].mxu0
      %v1458 = vadd.f32 0.0, %v1457
      %v1459 = vpop.f32.mrb[0].mxu0
      %v1460 = vpop.f32.mrb[0].mxu0
      %v1461 = vadd.f32 0.0, %v1460
      %v1462 = vpop.f32.mrb[0].mxu0
      %1463 = vmatprep.mubr.bf16.mxu0 0
      %1464 = vmatmul.mubr.bf16.gmra.mrb[0].mxu0 %v1340
      %v1465 = vpop.f32.mrb[0].mxu0
      %v1466 = vadd.f32 0.0, %v1465
      %v1467 = vpop.f32.mrb[0].mxu0
      %v1468 = vpop.f32.mrb[0].mxu0
      %v1469 = vadd.f32 0.0, %v1468
      %v1470 = vpop.f32.mrb[0].mxu0
      %1471 = vmatprep.mubr.bf16.mxu0 0
      %1472 = vmatmul.mubr.bf16.gmra.mrb[0].mxu0 %v1343
      %v1473 = vpop.f32.mrb[0].mxu0
      %v1474 = vadd.f32 0.0, %v1473
      %v1475 = vpop.f32.mrb[0].mxu0
      %v1476 = vpop.f32.mrb[0].mxu0
      %v1477 = vadd.f32 0.0, %v1476
      %v1478 = vpop.f32.mrb[0].mxu0
      %1479 = vmatprep.mubr.bf16.mxu0 0
      %1480 = vmatmul.mubr.bf16.gmra.mrb[0].mxu0 %v1346
      %v1481 = vpop.f32.mrb[0].mxu0
      %v1482 = vadd.f32 0.0, %v1481
      %v1483 = vpop.f32.mrb[0].mxu0
      %v1484 = vpop.f32.mrb[0].mxu0
      %v1485 = vadd.f32 0.0, %v1484
      %v1486 = vpop.f32.mrb[0].mxu0
      %1487 = vmatprep.mubr.bf16.mxu0 0
      %1488 = vmatmul.mubr.bf16.gmra.mrb[0].mxu0 %v1349
      %v1489 = vpop.f32.mrb[0].mxu0
      %v1490 = vadd.f32 0.0, %v1489
      %v1491 = vpop.f32.mrb[0].mxu0
      %v1492 = vpop.f32.mrb[0].mxu0
      %v1493 = vadd.f32 0.0, %v1492
      %v1494 = vpop.f32.mrb[0].mxu0
      %1495 = vmatprep.mubr.bf16.mxu0 0
      %1496 = vmatmul.mubr.bf16.gmra.mrb[0].mxu0 %v1352
      %v1497 = vpop.f32.mrb[0].mxu0
      %v1498 = vadd.f32 0.0, %v1497
      %v1499 = vpop.f32.mrb[0].mxu0
      %v1500 = vpop.f32.mrb[0].mxu0
      %v1501 = vadd.f32 0.0, %v1500
      %v1502 = vpop.f32.mrb[0].mxu0
      %1503 = vmatprep.mubr.bf16.mxu0 0
      %1504 = vmatmul.mubr.bf16.gmra.mrb[0].mxu0 %v1355
      %v1505 = vpop.f32.mrb[0].mxu0
      %v1506 = vadd.f32 0.0, %v1505
      %v1507 = vpop.f32.mrb[0].mxu0
      %v1508 = vpop.f32.mrb[0].mxu0
      %v1509 = vadd.f32 0.0, %v1508
      %v1510 = vpop.f32.mrb[0].mxu0
      %1511 = vmatprep.mubr.bf16.mxu0 0
      %1512 = vmatmul.mubr.bf16.gmra.mrb[0].mxu0 %v1358
      %v1513 = vpop.f32.mrb[0].mxu0
      %v1514 = vadd.f32 0.0, %v1513
      %v1515 = vpop.f32.mrb[0].mxu0
      %v1516 = vpop.f32.mrb[0].mxu0
      %v1517 = vadd.f32 0.0, %v1516
      %v1518 = vpop.f32.mrb[0].mxu0
      %1519 = vmatprep.mubr.bf16.mxu0 0
      %1520 = vmatmul.mubr.bf16.gmra.mrb[0].mxu0 %v1361
      %v1521 = vpop.f32.mrb[0].mxu0
      %v1522 = vadd.f32 0.0, %v1521
      %v1523 = vpop.f32.mrb[0].mxu0
      %v1524 = vpop.f32.mrb[0].mxu0
      %v1525 = vadd.f32 0.0, %v1524
      %v1526 = vpop.f32.mrb[0].mxu0
      %1527 = vdwg.mxu0
      %v1529 = vsel %vm871, %v1234, 0
      %v1532 = vsel %vm871, %v1235, 0
      %v1535 = vsel %vm871, %v1236, 0
      %v1538 = vsel %vm871, %v1237, 0
      %v1541 = vsel %vm871, %v1238, 0
      %v1544 = vsel %vm871, %v1239, 0
      %v1547 = vsel %vm871, %v1240, 0
      %v1550 = vsel %vm871, %v1241, 0
      %v1553 = vsel %vm871, %v1242, 0
      %v1556 = vsel %vm871, %v1243, 0
      %v1559 = vsel %vm871, %v1244, 0
      %v1562 = vsel %vm871, %v1245, 0
      %v1565 = vsel %vm871, %v1246, 0
      %v1568 = vsel %vm871, %v1247, 0
      %v1571 = vsel %vm871, %v1248, 0
      %v1574 = vsel %vm871, %v1249, 0
      %v1577 = vsel %vm1363, %v1312, 0
      %1579 = vmatprep.subr.bf16.mxu0 0
      %1580 = vmatpush1.bf16.msra.mxu0 %v1577
      %1581 = vmatprep.subr.bf16.mxu0 0
      %1582 = vmatpush1.bf16.msra.mxu0 0
      %1583 = vmatprep.subr.bf16.mxu0 0
      %1584 = vmatpush1.bf16.msra.mxu0 0
      %1585 = vmatprep.subr.bf16.mxu0 0
      %1586 = vmatpush1.bf16.msra.mxu0 0
      %1587 = vmatprep.subr.bf16.mxu0 0
      %1588 = vmatpush1.bf16.msra.mxu0 0
      %1589 = vmatprep.subr.bf16.mxu0 0
      %1590 = vmatpush1.bf16.msra.mxu0 0
      %1591 = vmatprep.subr.bf16.mxu0 0
      %1592 = vmatpush1.bf16.msra.mxu0 0
      %1593 = vmatprep.subr.bf16.mxu0 0
      %1594 = vmatpush1.bf16.msra.mxu0 0
      %1595 = vmatprep.subr.bf16.mxu0 0
      %1596 = vmatpush1.bf16.msra.mxu0 0
      %1597 = vmatprep.subr.bf16.mxu0 0
      %1598 = vmatpush1.bf16.msra.mxu0 0
      %1599 = vmatprep.subr.bf16.mxu0 0
      %1600 = vmatpush1.bf16.msra.mxu0 0
      %1601 = vmatprep.subr.bf16.mxu0 0
      %1602 = vmatpush1.bf16.msra.mxu0 0
      %1603 = vmatprep.subr.bf16.mxu0 0
      %1604 = vmatpush1.bf16.msra.mxu0 0
      %1605 = vmatprep.subr.bf16.mxu0 0
      %1606 = vmatpush1.bf16.msra.mxu0 0
      %1607 = vmatprep.subr.bf16.mxu0 0
      %1608 = vmatpush1.bf16.msra.mxu0 0
      %1609 = vmatprep.subr.bf16.mxu0 0
      %1610 = vmatpush1.bf16.msra.mxu0 0
      %1611 = vmatprep.mubr.bf16.mxu0 0
      %1612 = vmatmul.mubr.bf16.gmra.mrb[0].mxu0 %v1529
      %v1613 = vpop.f32.mrb[0].mxu0
      %v1614 = vadd.f32 %v1402, %v1613
      %v1615 = vpop.f32.mrb[0].mxu0
      %v1616 = vpop.f32.mrb[0].mxu0
      %v1617 = vadd.f32 %v1405, %v1616
      %v1618 = vpop.f32.mrb[0].mxu0
      %1619 = vmatprep.mubr.bf16.mxu0 0
      %1620 = vmatmul.mubr.bf16.gmra.mrb[0].mxu0 %v1532
      %v1621 = vpop.f32.mrb[0].mxu0
      %v1622 = vadd.f32 %v1410, %v1621
      %v1623 = vpop.f32.mrb[0].mxu0
      %v1624 = vpop.f32.mrb[0].mxu0
      %v1625 = vadd.f32 %v1413, %v1624
      %v1626 = vpop.f32.mrb[0].mxu0
      %1627 = vmatprep.mubr.bf16.mxu0 0
      %1628 = vmatmul.mubr.bf16.gmra.mrb[0].mxu0 %v1535
      %v1629 = vpop.f32.mrb[0].mxu0
      %v1630 = vadd.f32 %v1418, %v1629
      %v1631 = vpop.f32.mrb[0].mxu0
      %v1632 = vpop.f32.mrb[0].mxu0
      %v1633 = vadd.f32 %v1421, %v1632
      %v1634 = vpop.f32.mrb[0].mxu0
      %1635 = vmatprep.mubr.bf16.mxu0 0
      %1636 = vmatmul.mubr.bf16.gmra.mrb[0].mxu0 %v1538
      %v1637 = vpop.f32.mrb[0].mxu0
      %v1638 = vadd.f32 %v1426, %v1637
      %v1639 = vpop.f32.mrb[0].mxu0
      %v1640 = vpop.f32.mrb[0].mxu0
      %v1641 = vadd.f32 %v1429, %v1640
      %v1642 = vpop.f32.mrb[0].mxu0
      %1643 = vmatprep.mubr.bf16.mxu0 0
      %1644 = vmatmul.mubr.bf16.gmra.mrb[0].mxu0 %v1541
      %v1645 = vpop.f32.mrb[0].mxu0
      %v1646 = vadd.f32 %v1434, %v1645
      %v1647 = vpop.f32.mrb[0].mxu0
      %v1648 = vpop.f32.mrb[0].mxu0
      %v1649 = vadd.f32 %v1437, %v1648
      %v1650 = vpop.f32.mrb[0].mxu0
      %1651 = vmatprep.mubr.bf16.mxu0 0
      %1652 = vmatmul.mubr.bf16.gmra.mrb[0].mxu0 %v1544
      %v1653 = vpop.f32.mrb[0].mxu0
      %v1654 = vadd.f32 %v1442, %v1653
      %v1655 = vpop.f32.mrb[0].mxu0
      %v1656 = vpop.f32.mrb[0].mxu0
      %v1657 = vadd.f32 %v1445, %v1656
      %v1658 = vpop.f32.mrb[0].mxu0
      %1659 = vmatprep.mubr.bf16.mxu0 0
      %1660 = vmatmul.mubr.bf16.gmra.mrb[0].mxu0 %v1547
      %v1661 = vpop.f32.mrb[0].mxu0
      %v1662 = vadd.f32 %v1450, %v1661
      %v1663 = vpop.f32.mrb[0].mxu0
      %v1664 = vpop.f32.mrb[0].mxu0
      %v1665 = vadd.f32 %v1453, %v1664
      %v1666 = vpop.f32.mrb[0].mxu0
      %1667 = vmatprep.mubr.bf16.mxu0 0
      %1668 = vmatmul.mubr.bf16.gmra.mrb[0].mxu0 %v1550
      %v1669 = vpop.f32.mrb[0].mxu0
      %v1670 = vadd.f32 %v1458, %v1669
      %v1671 = vpop.f32.mrb[0].mxu0
      %v1672 = vpop.f32.mrb[0].mxu0
      %v1673 = vadd.f32 %v1461, %v1672
      %v1674 = vpop.f32.mrb[0].mxu0
      %1675 = vmatprep.mubr.bf16.mxu0 0
      %1676 = vmatmul.mubr.bf16.gmra.mrb[0].mxu0 %v1553
      %v1677 = vpop.f32.mrb[0].mxu0
      %v1678 = vadd.f32 %v1466, %v1677
      %v1679 = vpop.f32.mrb[0].mxu0
      %v1680 = vpop.f32.mrb[0].mxu0
      %v1681 = vadd.f32 %v1469, %v1680
      %v1682 = vpop.f32.mrb[0].mxu0
      %1683 = vmatprep.mubr.bf16.mxu0 0
      %1684 = vmatmul.mubr.bf16.gmra.mrb[0].mxu0 %v1556
      %v1685 = vpop.f32.mrb[0].mxu0
      %v1686 = vadd.f32 %v1474, %v1685
      %v1687 = vpop.f32.mrb[0].mxu0
      %v1688 = vpop.f32.mrb[0].mxu0
      %v1689 = vadd.f32 %v1477, %v1688
      %v1690 = vpop.f32.mrb[0].mxu0
      %1691 = vmatprep.mubr.bf16.mxu0 0
      %1692 = vmatmul.mubr.bf16.gmra.mrb[0].mxu0 %v1559
      %v1693 = vpop.f32.mrb[0].mxu0
      %v1694 = vadd.f32 %v1482, %v1693
      %v1695 = vpop.f32.mrb[0].mxu0
      %v1696 = vpop.f32.mrb[0].mxu0
      %v1697 = vadd.f32 %v1485, %v1696
      %v1698 = vpop.f32.mrb[0].mxu0
      %1699 = vmatprep.mubr.bf16.mxu0 0
      %1700 = vmatmul.mubr.bf16.gmra.mrb[0].mxu0 %v1562
      %v1701 = vpop.f32.mrb[0].mxu0
      %v1702 = vadd.f32 %v1490, %v1701
      %v1703 = vpop.f32.mrb[0].mxu0
      %v1704 = vpop.f32.mrb[0].mxu0
      %v1705 = vadd.f32 %v1493, %v1704
      %v1706 = vpop.f32.mrb[0].mxu0
      %1707 = vmatprep.mubr.bf16.mxu0 0
      %1708 = vmatmul.mubr.bf16.gmra.mrb[0].mxu0 %v1565
      %v1709 = vpop.f32.mrb[0].mxu0
      %v1710 = vadd.f32 %v1498, %v1709
      %v1711 = vpop.f32.mrb[0].mxu0
      %v1712 = vpop.f32.mrb[0].mxu0
      %v1713 = vadd.f32 %v1501, %v1712
      %v1714 = vpop.f32.mrb[0].mxu0
      %1715 = vmatprep.mubr.bf16.mxu0 0
      %1716 = vmatmul.mubr.bf16.gmra.mrb[0].mxu0 %v1568
      %v1717 = vpop.f32.mrb[0].mxu0
      %v1718 = vadd.f32 %v1506, %v1717
      %v1719 = vpop.f32.mrb[0].mxu0
      %v1720 = vpop.f32.mrb[0].mxu0
      %v1721 = vadd.f32 %v1509, %v1720
      %v1722 = vpop.f32.mrb[0].mxu0
      %1723 = vmatprep.mubr.bf16.mxu0 0
      %1724 = vmatmul.mubr.bf16.gmra.mrb[0].mxu0 %v1571
      %v1725 = vpop.f32.mrb[0].mxu0
      %v1726 = vadd.f32 %v1514, %v1725
      %v1727 = vpop.f32.mrb[0].mxu0
      %v1728 = vpop.f32.mrb[0].mxu0
      %v1729 = vadd.f32 %v1517, %v1728
      %v1730 = vpop.f32.mrb[0].mxu0
      %1731 = vmatprep.mubr.bf16.mxu0 0
      %1732 = vmatmul.mubr.bf16.gmra.mrb[0].mxu0 %v1574
      %v1733 = vpop.f32.mrb[0].mxu0
      %v1734 = vadd.f32 %v1522, %v1733
      %v1735 = vpop.f32.mrb[0].mxu0
      %v1736 = vpop.f32.mrb[0].mxu0
      %v1737 = vadd.f32 %v1525, %v1736
      %v1738 = vpop.f32.mrb[0].mxu0
      %1739 = vdwg.mxu0
      %s1740 = scalar_lea.vmem %s4, 4
      %v1741 = vld [vmem:[%s1740] sm:$0x3]
      %v1743 = vsel %vm871, %v1294, 0
      %v1746 = vsel %vm871, %v1295, 0
      %v1749 = vsel %vm871, %v1296, 0
      %v1752 = vsel %vm871, %v1297, 0
      %v1755 = vsel %vm871, %v1298, 0
      %v1758 = vsel %vm871, %v1299, 0
      %v1761 = vsel %vm871, %v1300, 0
      %v1764 = vsel %vm871, %v1301, 0
      %v1767 = vsel %vm871, %v1302, 0
      %v1770 = vsel %vm871, %v1303, 0
      %v1773 = vsel %vm871, %v1304, 0
      %v1776 = vsel %vm871, %v1305, 0
      %v1779 = vsel %vm871, %v1306, 0
      %v1782 = vsel %vm871, %v1307, 0
      %v1785 = vsel %vm871, %v1308, 0
      %v1788 = vsel %vm871, %v1309, 0
      %v1791 = vsel %vm1363, %v1741, 0
      %1793 = vmatprep.subr.bf16.mxu0 0
      %1794 = vmatpush1.bf16.msra.mxu0 %v1791
      %1795 = vmatprep.subr.bf16.mxu0 0
      %1796 = vmatpush1.bf16.msra.mxu0 0
      %1797 = vmatprep.subr.bf16.mxu0 0
      %1798 = vmatpush1.bf16.msra.mxu0 0
      %1799 = vmatprep.subr.bf16.mxu0 0
      %1800 = vmatpush1.bf16.msra.mxu0 0
      %1801 = vmatprep.subr.bf16.mxu0 0
      %1802 = vmatpush1.bf16.msra.mxu0 0
      %1803 = vmatprep.subr.bf16.mxu0 0
      %1804 = vmatpush1.bf16.msra.mxu0 0
      %1805 = vmatprep.subr.bf16.mxu0 0
      %1806 = vmatpush1.bf16.msra.mxu0 0
      %1807 = vmatprep.subr.bf16.mxu0 0
      %1808 = vmatpush1.bf16.msra.mxu0 0
      %1809 = vmatprep.subr.bf16.mxu0 0
      %1810 = vmatpush1.bf16.msra.mxu0 0
      %1811 = vmatprep.subr.bf16.mxu0 0
      %1812 = vmatpush1.bf16.msra.mxu0 0
      %1813 = vmatprep.subr.bf16.mxu0 0
      %1814 = vmatpush1.bf16.msra.mxu0 0
      %1815 = vmatprep.subr.bf16.mxu0 0
      %1816 = vmatpush1.bf16.msra.mxu0 0
      %1817 = vmatprep.subr.bf16.mxu0 0
      %1818 = vmatpush1.bf16.msra.mxu0 0
      %1819 = vmatprep.subr.bf16.mxu0 0
      %1820 = vmatpush1.bf16.msra.mxu0 0
      %1821 = vmatprep.subr.bf16.mxu0 0
      %1822 = vmatpush1.bf16.msra.mxu0 0
      %1823 = vmatprep.subr.bf16.mxu0 0
      %1824 = vmatpush1.bf16.msra.mxu0 0
      %1825 = vmatprep.mubr.bf16.mxu0 0
      %1826 = vmatmul.mubr.bf16.gmra.mrb[0].mxu0 %v1743
      %v1827 = vpop.f32.mrb[0].mxu0
      %v1828 = vadd.f32 0.0, %v1827
      %v1829 = vpop.f32.mrb[0].mxu0
      %v1830 = vpop.f32.mrb[0].mxu0
      %v1831 = vadd.f32 0.0, %v1830
      %v1832 = vpop.f32.mrb[0].mxu0
      %1833 = vmatprep.mubr.bf16.mxu0 0
      %1834 = vmatmul.mubr.bf16.gmra.mrb[0].mxu0 %v1746
      %v1835 = vpop.f32.mrb[0].mxu0
      %v1836 = vadd.f32 0.0, %v1835
      %v1837 = vpop.f32.mrb[0].mxu0
      %v1838 = vpop.f32.mrb[0].mxu0
      %v1839 = vadd.f32 0.0, %v1838
      %v1840 = vpop.f32.mrb[0].mxu0
      %1841 = vmatprep.mubr.bf16.mxu0 0
      %1842 = vmatmul.mubr.bf16.gmra.mrb[0].mxu0 %v1749
      %v1843 = vpop.f32.mrb[0].mxu0
      %v1844 = vadd.f32 0.0, %v1843
      %v1845 = vpop.f32.mrb[0].mxu0
      %v1846 = vpop.f32.mrb[0].mxu0
      %v1847 = vadd.f32 0.0, %v1846
      %v1848 = vpop.f32.mrb[0].mxu0
      %1849 = vmatprep.mubr.bf16.mxu0 0
      %1850 = vmatmul.mubr.bf16.gmra.mrb[0].mxu0 %v1752
      %v1851 = vpop.f32.mrb[0].mxu0
      %v1852 = vadd.f32 0.0, %v1851
      %v1853 = vpop.f32.mrb[0].mxu0
      %v1854 = vpop.f32.mrb[0].mxu0
      %v1855 = vadd.f32 0.0, %v1854
      %v1856 = vpop.f32.mrb[0].mxu0
      %1857 = vmatprep.mubr.bf16.mxu0 0
      %1858 = vmatmul.mubr.bf16.gmra.mrb[0].mxu0 %v1755
      %v1859 = vpop.f32.mrb[0].mxu0
      %v1860 = vadd.f32 0.0, %v1859
      %v1861 = vpop.f32.mrb[0].mxu0
      %v1862 = vpop.f32.mrb[0].mxu0
      %v1863 = vadd.f32 0.0, %v1862
      %v1864 = vpop.f32.mrb[0].mxu0
      %1865 = vmatprep.mubr.bf16.mxu0 0
      %1866 = vmatmul.mubr.bf16.gmra.mrb[0].mxu0 %v1758
      %v1867 = vpop.f32.mrb[0].mxu0
      %v1868 = vadd.f32 0.0, %v1867
      %v1869 = vpop.f32.mrb[0].mxu0
      %v1870 = vpop.f32.mrb[0].mxu0
      %v1871 = vadd.f32 0.0, %v1870
      %v1872 = vpop.f32.mrb[0].mxu0
      %1873 = vmatprep.mubr.bf16.mxu0 0
      %1874 = vmatmul.mubr.bf16.gmra.mrb[0].mxu0 %v1761
      %v1875 = vpop.f32.mrb[0].mxu0
      %v1876 = vadd.f32 0.0, %v1875
      %v1877 = vpop.f32.mrb[0].mxu0
      %v1878 = vpop.f32.mrb[0].mxu0
      %v1879 = vadd.f32 0.0, %v1878
      %v1880 = vpop.f32.mrb[0].mxu0
      %1881 = vmatprep.mubr.bf16.mxu0 0
      %1882 = vmatmul.mubr.bf16.gmra.mrb[0].mxu0 %v1764
      %v1883 = vpop.f32.mrb[0].mxu0
      %v1884 = vadd.f32 0.0, %v1883
      %v1885 = vpop.f32.mrb[0].mxu0
      %v1886 = vpop.f32.mrb[0].mxu0
      %v1887 = vadd.f32 0.0, %v1886
      %v1888 = vpop.f32.mrb[0].mxu0
      %1889 = vmatprep.mubr.bf16.mxu0 0
      %1890 = vmatmul.mubr.bf16.gmra.mrb[0].mxu0 %v1767
      %v1891 = vpop.f32.mrb[0].mxu0
      %v1892 = vadd.f32 0.0, %v1891
      %v1893 = vpop.f32.mrb[0].mxu0
      %v1894 = vpop.f32.mrb[0].mxu0
      %v1895 = vadd.f32 0.0, %v1894
      %v1896 = vpop.f32.mrb[0].mxu0
      %1897 = vmatprep.mubr.bf16.mxu0 0
      %1898 = vmatmul.mubr.bf16.gmra.mrb[0].mxu0 %v1770
      %v1899 = vpop.f32.mrb[0].mxu0
      %v1900 = vadd.f32 0.0, %v1899
      %v1901 = vpop.f32.mrb[0].mxu0
      %v1902 = vpop.f32.mrb[0].mxu0
      %v1903 = vadd.f32 0.0, %v1902
      %v1904 = vpop.f32.mrb[0].mxu0
      %1905 = vmatprep.mubr.bf16.mxu0 0
      %1906 = vmatmul.mubr.bf16.gmra.mrb[0].mxu0 %v1773
      %v1907 = vpop.f32.mrb[0].mxu0
      %v1908 = vadd.f32 0.0, %v1907
      %v1909 = vpop.f32.mrb[0].mxu0
      %v1910 = vpop.f32.mrb[0].mxu0
      %v1911 = vadd.f32 0.0, %v1910
      %v1912 = vpop.f32.mrb[0].mxu0
      %1913 = vmatprep.mubr.bf16.mxu0 0
      %1914 = vmatmul.mubr.bf16.gmra.mrb[0].mxu0 %v1776
      %v1915 = vpop.f32.mrb[0].mxu0
      %v1916 = vadd.f32 0.0, %v1915
      %v1917 = vpop.f32.mrb[0].mxu0
      %v1918 = vpop.f32.mrb[0].mxu0
      %v1919 = vadd.f32 0.0, %v1918
      %v1920 = vpop.f32.mrb[0].mxu0
      %1921 = vmatprep.mubr.bf16.mxu0 0
      %1922 = vmatmul.mubr.bf16.gmra.mrb[0].mxu0 %v1779
      %v1923 = vpop.f32.mrb[0].mxu0
      %v1924 = vadd.f32 0.0, %v1923
      %v1925 = vpop.f32.mrb[0].mxu0
      %v1926 = vpop.f32.mrb[0].mxu0
      %v1927 = vadd.f32 0.0, %v1926
      %v1928 = vpop.f32.mrb[0].mxu0
      %1929 = vmatprep.mubr.bf16.mxu0 0
      %1930 = vmatmul.mubr.bf16.gmra.mrb[0].mxu0 %v1782
      %v1931 = vpop.f32.mrb[0].mxu0
      %v1932 = vadd.f32 0.0, %v1931
      %v1933 = vpop.f32.mrb[0].mxu0
      %v1934 = vpop.f32.mrb[0].mxu0
      %v1935 = vadd.f32 0.0, %v1934
      %v1936 = vpop.f32.mrb[0].mxu0
      %1937 = vmatprep.mubr.bf16.mxu0 0
      %1938 = vmatmul.mubr.bf16.gmra.mrb[0].mxu0 %v1785
      %v1939 = vpop.f32.mrb[0].mxu0
      %v1940 = vadd.f32 0.0, %v1939
      %v1941 = vpop.f32.mrb[0].mxu0
      %v1942 = vpop.f32.mrb[0].mxu0
      %v1943 = vadd.f32 0.0, %v1942
      %v1944 = vpop.f32.mrb[0].mxu0
      %1945 = vmatprep.mubr.bf16.mxu0 0
      %1946 = vmatmul.mubr.bf16.gmra.mrb[0].mxu0 %v1788
      %v1947 = vpop.f32.mrb[0].mxu0
      %v1948 = vadd.f32 0.0, %v1947
      %v1949 = vpop.f32.mrb[0].mxu0
      %v1950 = vpop.f32.mrb[0].mxu0
      %v1951 = vadd.f32 0.0, %v1950
      %v1952 = vpop.f32.mrb[0].mxu0
      %1953 = vdwg.mxu0
      %v1954 = vadd.f32 %v1614, %v1828
      %v1955 = vadd.f32 %v1617, %v1831
      %v1956 = vadd.f32 %v1622, %v1836
      %v1957 = vadd.f32 %v1625, %v1839
      %v1958 = vadd.f32 %v1630, %v1844
      %v1959 = vadd.f32 %v1633, %v1847
      %v1960 = vadd.f32 %v1638, %v1852
      %v1961 = vadd.f32 %v1641, %v1855
      %v1962 = vadd.f32 %v1646, %v1860
      %v1963 = vadd.f32 %v1649, %v1863
      %v1964 = vadd.f32 %v1654, %v1868
      %v1965 = vadd.f32 %v1657, %v1871
      %v1966 = vadd.f32 %v1662, %v1876
      %v1967 = vadd.f32 %v1665, %v1879
      %v1968 = vadd.f32 %v1670, %v1884
      %v1969 = vadd.f32 %v1673, %v1887
      %v1970 = vadd.f32 %v1678, %v1892
      %v1971 = vadd.f32 %v1681, %v1895
      %v1972 = vadd.f32 %v1686, %v1900
      %v1973 = vadd.f32 %v1689, %v1903
      %v1974 = vadd.f32 %v1694, %v1908
      %v1975 = vadd.f32 %v1697, %v1911
      %v1976 = vadd.f32 %v1702, %v1916
      %v1977 = vadd.f32 %v1705, %v1919
      %v1978 = vadd.f32 %v1710, %v1924
      %v1979 = vadd.f32 %v1713, %v1927
      %v1980 = vadd.f32 %v1718, %v1932
      %v1981 = vadd.f32 %v1721, %v1935
      %v1982 = vadd.f32 %v1726, %v1940
      %v1983 = vadd.f32 %v1729, %v1943
      %v1984 = vadd.f32 %v1734, %v1948
      %v1985 = vadd.f32 %v1737, %v1951
      %s1986 = scalar_lea.vmem %s4, 6
      %v1987 = vld [vmem:[%s1986] sm:$0x3]
      %v1989 = vsel %vm871, %v1250, 0
      %v1992 = vsel %vm1363, %v1987, 0
      %1994 = vmatprep.subr.bf16.mxu0 0
      %1995 = vmatpush1.bf16.msra.mxu0 %v1992
      %1996 = vmatprep.subr.bf16.mxu0 0
      %1997 = vmatpush1.bf16.msra.mxu0 0
      %1998 = vmatprep.subr.bf16.mxu0 0
      %1999 = vmatpush1.bf16.msra.mxu0 0
      %2000 = vmatprep.subr.bf16.mxu0 0
      %2001 = vmatpush1.bf16.msra.mxu0 0
      %2002 = vmatprep.subr.bf16.mxu0 0
      %2003 = vmatpush1.bf16.msra.mxu0 0
      %2004 = vmatprep.subr.bf16.mxu0 0
      %2005 = vmatpush1.bf16.msra.mxu0 0
      %2006 = vmatprep.subr.bf16.mxu0 0
      %2007 = vmatpush1.bf16.msra.mxu0 0
      %2008 = vmatprep.subr.bf16.mxu0 0
      %2009 = vmatpush1.bf16.msra.mxu0 0
      %2010 = vmatprep.subr.bf16.mxu0 0
      %2011 = vmatpush1.bf16.msra.mxu0 0
      %2012 = vmatprep.subr.bf16.mxu0 0
      %2013 = vmatpush1.bf16.msra.mxu0 0
      %2014 = vmatprep.subr.bf16.mxu0 0
      %2015 = vmatpush1.bf16.msra.mxu0 0
      %2016 = vmatprep.subr.bf16.mxu0 0
      %2017 = vmatpush1.bf16.msra.mxu0 0
      %2018 = vmatprep.subr.bf16.mxu0 0
      %2019 = vmatpush1.bf16.msra.mxu0 0
      %2020 = vmatprep.subr.bf16.mxu0 0
      %2021 = vmatpush1.bf16.msra.mxu0 0
      %2022 = vmatprep.subr.bf16.mxu0 0
      %2023 = vmatpush1.bf16.msra.mxu0 0
      %2024 = vmatprep.subr.bf16.mxu0 0
      %2025 = vmatpush1.bf16.msra.mxu0 0
      %2026 = vmatprep.mubr.bf16.mxu0 0
      %2027 = vmatmul.mubr.bf16.gmra.mrb[0].mxu0 %v1532
      %v2028 = vpop.f32.mrb[0].mxu0
      %v2029 = vadd.f32 0.0, %v2028
      %v2030 = vpop.f32.mrb[0].mxu0
      %v2031 = vpop.f32.mrb[0].mxu0
      %v2032 = vadd.f32 0.0, %v2031
      %v2033 = vpop.f32.mrb[0].mxu0
      %2034 = vmatprep.mubr.bf16.mxu0 0
      %2035 = vmatmul.mubr.bf16.gmra.mrb[0].mxu0 %v1535
      %v2036 = vpop.f32.mrb[0].mxu0
      %v2037 = vadd.f32 0.0, %v2036
      %v2038 = vpop.f32.mrb[0].mxu0
      %v2039 = vpop.f32.mrb[0].mxu0
      %v2040 = vadd.f32 0.0, %v2039
      %v2041 = vpop.f32.mrb[0].mxu0
      %2042 = vmatprep.mubr.bf16.mxu0 0
      %2043 = vmatmul.mubr.bf16.gmra.mrb[0].mxu0 %v1538
      %v2044 = vpop.f32.mrb[0].mxu0
      %v2045 = vadd.f32 0.0, %v2044
      %v2046 = vpop.f32.mrb[0].mxu0
      %v2047 = vpop.f32.mrb[0].mxu0
      %v2048 = vadd.f32 0.0, %v2047
      %v2049 = vpop.f32.mrb[0].mxu0
      %2050 = vmatprep.mubr.bf16.mxu0 0
      %2051 = vmatmul.mubr.bf16.gmra.mrb[0].mxu0 %v1541
      %v2052 = vpop.f32.mrb[0].mxu0
      %v2053 = vadd.f32 0.0, %v2052
      %v2054 = vpop.f32.mrb[0].mxu0
      %v2055 = vpop.f32.mrb[0].mxu0
      %v2056 = vadd.f32 0.0, %v2055
      %v2057 = vpop.f32.mrb[0].mxu0
      %2058 = vmatprep.mubr.bf16.mxu0 0
      %2059 = vmatmul.mubr.bf16.gmra.mrb[0].mxu0 %v1544
      %v2060 = vpop.f32.mrb[0].mxu0
      %v2061 = vadd.f32 0.0, %v2060
      %v2062 = vpop.f32.mrb[0].mxu0
      %v2063 = vpop.f32.mrb[0].mxu0
      %v2064 = vadd.f32 0.0, %v2063
      %v2065 = vpop.f32.mrb[0].mxu0
      %2066 = vmatprep.mubr.bf16.mxu0 0
      %2067 = vmatmul.mubr.bf16.gmra.mrb[0].mxu0 %v1547
      %v2068 = vpop.f32.mrb[0].mxu0
      %v2069 = vadd.f32 0.0, %v2068
      %v2070 = vpop.f32.mrb[0].mxu0
      %v2071 = vpop.f32.mrb[0].mxu0
      %v2072 = vadd.f32 0.0, %v2071
      %v2073 = vpop.f32.mrb[0].mxu0
      %2074 = vmatprep.mubr.bf16.mxu0 0
      %2075 = vmatmul.mubr.bf16.gmra.mrb[0].mxu0 %v1550
      %v2076 = vpop.f32.mrb[0].mxu0
      %v2077 = vadd.f32 0.0, %v2076
      %v2078 = vpop.f32.mrb[0].mxu0
      %v2079 = vpop.f32.mrb[0].mxu0
      %v2080 = vadd.f32 0.0, %v2079
      %v2081 = vpop.f32.mrb[0].mxu0
      %2082 = vmatprep.mubr.bf16.mxu0 0
      %2083 = vmatmul.mubr.bf16.gmra.mrb[0].mxu0 %v1553
      %v2084 = vpop.f32.mrb[0].mxu0
      %v2085 = vadd.f32 0.0, %v2084
      %v2086 = vpop.f32.mrb[0].mxu0
      %v2087 = vpop.f32.mrb[0].mxu0
      %v2088 = vadd.f32 0.0, %v2087
      %v2089 = vpop.f32.mrb[0].mxu0
      %2090 = vmatprep.mubr.bf16.mxu0 0
      %2091 = vmatmul.mubr.bf16.gmra.mrb[0].mxu0 %v1556
      %v2092 = vpop.f32.mrb[0].mxu0
      %v2093 = vadd.f32 0.0, %v2092
      %v2094 = vpop.f32.mrb[0].mxu0
      %v2095 = vpop.f32.mrb[0].mxu0
      %v2096 = vadd.f32 0.0, %v2095
      %v2097 = vpop.f32.mrb[0].mxu0
      %2098 = vmatprep.mubr.bf16.mxu0 0
      %2099 = vmatmul.mubr.bf16.gmra.mrb[0].mxu0 %v1559
      %v2100 = vpop.f32.mrb[0].mxu0
      %v2101 = vadd.f32 0.0, %v2100
      %v2102 = vpop.f32.mrb[0].mxu0
      %v2103 = vpop.f32.mrb[0].mxu0
      %v2104 = vadd.f32 0.0, %v2103
      %v2105 = vpop.f32.mrb[0].mxu0
      %2106 = vmatprep.mubr.bf16.mxu0 0
      %2107 = vmatmul.mubr.bf16.gmra.mrb[0].mxu0 %v1562
      %v2108 = vpop.f32.mrb[0].mxu0
      %v2109 = vadd.f32 0.0, %v2108
      %v2110 = vpop.f32.mrb[0].mxu0
      %v2111 = vpop.f32.mrb[0].mxu0
      %v2112 = vadd.f32 0.0, %v2111
      %v2113 = vpop.f32.mrb[0].mxu0
      %2114 = vmatprep.mubr.bf16.mxu0 0
      %2115 = vmatmul.mubr.bf16.gmra.mrb[0].mxu0 %v1565
      %v2116 = vpop.f32.mrb[0].mxu0
      %v2117 = vadd.f32 0.0, %v2116
      %v2118 = vpop.f32.mrb[0].mxu0
      %v2119 = vpop.f32.mrb[0].mxu0
      %v2120 = vadd.f32 0.0, %v2119
      %v2121 = vpop.f32.mrb[0].mxu0
      %2122 = vmatprep.mubr.bf16.mxu0 0
      %2123 = vmatmul.mubr.bf16.gmra.mrb[0].mxu0 %v1568
      %v2124 = vpop.f32.mrb[0].mxu0
      %v2125 = vadd.f32 0.0, %v2124
      %v2126 = vpop.f32.mrb[0].mxu0
      %v2127 = vpop.f32.mrb[0].mxu0
      %v2128 = vadd.f32 0.0, %v2127
      %v2129 = vpop.f32.mrb[0].mxu0
      %2130 = vmatprep.mubr.bf16.mxu0 0
      %2131 = vmatmul.mubr.bf16.gmra.mrb[0].mxu0 %v1571
      %v2132 = vpop.f32.mrb[0].mxu0
      %v2133 = vadd.f32 0.0, %v2132
      %v2134 = vpop.f32.mrb[0].mxu0
      %v2135 = vpop.f32.mrb[0].mxu0
      %v2136 = vadd.f32 0.0, %v2135
      %v2137 = vpop.f32.mrb[0].mxu0
      %2138 = vmatprep.mubr.bf16.mxu0 0
      %2139 = vmatmul.mubr.bf16.gmra.mrb[0].mxu0 %v1574
      %v2140 = vpop.f32.mrb[0].mxu0
      %v2141 = vadd.f32 0.0, %v2140
      %v2142 = vpop.f32.mrb[0].mxu0
      %v2143 = vpop.f32.mrb[0].mxu0
      %v2144 = vadd.f32 0.0, %v2143
      %v2145 = vpop.f32.mrb[0].mxu0
      %2146 = vmatprep.mubr.bf16.mxu0 0
      %2147 = vmatmul.mubr.bf16.gmra.mrb[0].mxu0 %v1989
      %v2148 = vpop.f32.mrb[0].mxu0
      %v2149 = vadd.f32 0.0, %v2148
      %v2150 = vpop.f32.mrb[0].mxu0
      %v2151 = vpop.f32.mrb[0].mxu0
      %v2152 = vadd.f32 0.0, %v2151
      %v2153 = vpop.f32.mrb[0].mxu0
      %2154 = vdwg.mxu0
      %v2155 = vadd.f32 %v1954, %v2029
      %v2156 = vadd.f32 %v1955, %v2032
      %v2157 = vadd.f32 %v1956, %v2037
      %v2158 = vadd.f32 %v1957, %v2040
      %v2159 = vadd.f32 %v1958, %v2045
      %v2160 = vadd.f32 %v1959, %v2048
      %v2161 = vadd.f32 %v1960, %v2053
      %v2162 = vadd.f32 %v1961, %v2056
      %v2163 = vadd.f32 %v1962, %v2061
      %v2164 = vadd.f32 %v1963, %v2064
      %v2165 = vadd.f32 %v1964, %v2069
      %v2166 = vadd.f32 %v1965, %v2072
      %v2167 = vadd.f32 %v1966, %v2077
      %v2168 = vadd.f32 %v1967, %v2080
      %v2169 = vadd.f32 %v1968, %v2085
      %v2170 = vadd.f32 %v1969, %v2088
      %v2171 = vadd.f32 %v1970, %v2093
      %v2172 = vadd.f32 %v1971, %v2096
      %v2173 = vadd.f32 %v1972, %v2101
      %v2174 = vadd.f32 %v1973, %v2104
      %v2175 = vadd.f32 %v1974, %v2109
      %v2176 = vadd.f32 %v1975, %v2112
      %v2177 = vadd.f32 %v1976, %v2117
      %v2178 = vadd.f32 %v1977, %v2120
      %v2179 = vadd.f32 %v1978, %v2125
      %v2180 = vadd.f32 %v1979, %v2128
      %v2181 = vadd.f32 %v1980, %v2133
      %v2182 = vadd.f32 %v1981, %v2136
      %v2183 = vadd.f32 %v1982, %v2141
      %v2184 = vadd.f32 %v1983, %v2144
      %v2185 = vadd.f32 %v1984, %v2149
      %v2186 = vadd.f32 %v1985, %v2152
      %s2187 = scalar_lea.vmem %s4, 8
      %v2188 = vld [vmem:[%s2187] sm:$0x3]
      %v2190 = vsel %vm871, %v1190, 0
      %v2193 = vsel %vm1363, %v2188, 0
      %2195 = vmatprep.subr.bf16.mxu0 0
      %2196 = vmatpush1.bf16.msra.mxu0 %v2193
      %2197 = vmatprep.subr.bf16.mxu0 0
      %2198 = vmatpush1.bf16.msra.mxu0 0
      %2199 = vmatprep.subr.bf16.mxu0 0
      %2200 = vmatpush1.bf16.msra.mxu0 0
      %2201 = vmatprep.subr.bf16.mxu0 0
      %2202 = vmatpush1.bf16.msra.mxu0 0
      %2203 = vmatprep.subr.bf16.mxu0 0
      %2204 = vmatpush1.bf16.msra.mxu0 0
      %2205 = vmatprep.subr.bf16.mxu0 0
      %2206 = vmatpush1.bf16.msra.mxu0 0
      %2207 = vmatprep.subr.bf16.mxu0 0
      %2208 = vmatpush1.bf16.msra.mxu0 0
      %2209 = vmatprep.subr.bf16.mxu0 0
      %2210 = vmatpush1.bf16.msra.mxu0 0
      %2211 = vmatprep.subr.bf16.mxu0 0
      %2212 = vmatpush1.bf16.msra.mxu0 0
      %2213 = vmatprep.subr.bf16.mxu0 0
      %2214 = vmatpush1.bf16.msra.mxu0 0
      %2215 = vmatprep.subr.bf16.mxu0 0
      %2216 = vmatpush1.bf16.msra.mxu0 0
      %2217 = vmatprep.subr.bf16.mxu0 0
      %2218 = vmatpush1.bf16.msra.mxu0 0
      %2219 = vmatprep.subr.bf16.mxu0 0
      %2220 = vmatpush1.bf16.msra.mxu0 0
      %2221 = vmatprep.subr.bf16.mxu0 0
      %2222 = vmatpush1.bf16.msra.mxu0 0
      %2223 = vmatprep.subr.bf16.mxu0 0
      %2224 = vmatpush1.bf16.msra.mxu0 0
      %2225 = vmatprep.subr.bf16.mxu0 0
      %2226 = vmatpush1.bf16.msra.mxu0 0
      %2227 = vmatprep.mubr.bf16.mxu0 0
      %2228 = vmatmul.mubr.bf16.gmra.mrb[0].mxu0 %v1319
      %v2229 = vpop.f32.mrb[0].mxu0
      %v2230 = vadd.f32 0.0, %v2229
      %v2231 = vpop.f32.mrb[0].mxu0
      %v2232 = vpop.f32.mrb[0].mxu0
      %v2233 = vadd.f32 0.0, %v2232
      %v2234 = vpop.f32.mrb[0].mxu0
      %2235 = vmatprep.mubr.bf16.mxu0 0
      %2236 = vmatmul.mubr.bf16.gmra.mrb[0].mxu0 %v1322
      %v2237 = vpop.f32.mrb[0].mxu0
      %v2238 = vadd.f32 0.0, %v2237
      %v2239 = vpop.f32.mrb[0].mxu0
      %v2240 = vpop.f32.mrb[0].mxu0
      %v2241 = vadd.f32 0.0, %v2240
      %v2242 = vpop.f32.mrb[0].mxu0
      %2243 = vmatprep.mubr.bf16.mxu0 0
      %2244 = vmatmul.mubr.bf16.gmra.mrb[0].mxu0 %v1325
      %v2245 = vpop.f32.mrb[0].mxu0
      %v2246 = vadd.f32 0.0, %v2245
      %v2247 = vpop.f32.mrb[0].mxu0
      %v2248 = vpop.f32.mrb[0].mxu0
      %v2249 = vadd.f32 0.0, %v2248
      %v2250 = vpop.f32.mrb[0].mxu0
      %2251 = vmatprep.mubr.bf16.mxu0 0
      %2252 = vmatmul.mubr.bf16.gmra.mrb[0].mxu0 %v1328
      %v2253 = vpop.f32.mrb[0].mxu0
      %v2254 = vadd.f32 0.0, %v2253
      %v2255 = vpop.f32.mrb[0].mxu0
      %v2256 = vpop.f32.mrb[0].mxu0
      %v2257 = vadd.f32 0.0, %v2256
      %v2258 = vpop.f32.mrb[0].mxu0
      %2259 = vmatprep.mubr.bf16.mxu0 0
      %2260 = vmatmul.mubr.bf16.gmra.mrb[0].mxu0 %v1331
      %v2261 = vpop.f32.mrb[0].mxu0
      %v2262 = vadd.f32 0.0, %v2261
      %v2263 = vpop.f32.mrb[0].mxu0
      %v2264 = vpop.f32.mrb[0].mxu0
      %v2265 = vadd.f32 0.0, %v2264
      %v2266 = vpop.f32.mrb[0].mxu0
      %2267 = vmatprep.mubr.bf16.mxu0 0
      %2268 = vmatmul.mubr.bf16.gmra.mrb[0].mxu0 %v1334
      %v2269 = vpop.f32.mrb[0].mxu0
      %v2270 = vadd.f32 0.0, %v2269
      %v2271 = vpop.f32.mrb[0].mxu0
      %v2272 = vpop.f32.mrb[0].mxu0
      %v2273 = vadd.f32 0.0, %v2272
      %v2274 = vpop.f32.mrb[0].mxu0
      %2275 = vmatprep.mubr.bf16.mxu0 0
      %2276 = vmatmul.mubr.bf16.gmra.mrb[0].mxu0 %v1337
      %v2277 = vpop.f32.mrb[0].mxu0
      %v2278 = vadd.f32 0.0, %v2277
      %v2279 = vpop.f32.mrb[0].mxu0
      %v2280 = vpop.f32.mrb[0].mxu0
      %v2281 = vadd.f32 0.0, %v2280
      %v2282 = vpop.f32.mrb[0].mxu0
      %2283 = vmatprep.mubr.bf16.mxu0 0
      %2284 = vmatmul.mubr.bf16.gmra.mrb[0].mxu0 %v1340
      %v2285 = vpop.f32.mrb[0].mxu0
      %v2286 = vadd.f32 0.0, %v2285
      %v2287 = vpop.f32.mrb[0].mxu0
      %v2288 = vpop.f32.mrb[0].mxu0
      %v2289 = vadd.f32 0.0, %v2288
      %v2290 = vpop.f32.mrb[0].mxu0
      %2291 = vmatprep.mubr.bf16.mxu0 0
      %2292 = vmatmul.mubr.bf16.gmra.mrb[0].mxu0 %v1343
      %v2293 = vpop.f32.mrb[0].mxu0
      %v2294 = vadd.f32 0.0, %v2293
      %v2295 = vpop.f32.mrb[0].mxu0
      %v2296 = vpop.f32.mrb[0].mxu0
      %v2297 = vadd.f32 0.0, %v2296
      %v2298 = vpop.f32.mrb[0].mxu0
      %2299 = vmatprep.mubr.bf16.mxu0 0
      %2300 = vmatmul.mubr.bf16.gmra.mrb[0].mxu0 %v1346
      %v2301 = vpop.f32.mrb[0].mxu0
      %v2302 = vadd.f32 0.0, %v2301
      %v2303 = vpop.f32.mrb[0].mxu0
      %v2304 = vpop.f32.mrb[0].mxu0
      %v2305 = vadd.f32 0.0, %v2304
      %v2306 = vpop.f32.mrb[0].mxu0
      %2307 = vmatprep.mubr.bf16.mxu0 0
      %2308 = vmatmul.mubr.bf16.gmra.mrb[0].mxu0 %v1349
      %v2309 = vpop.f32.mrb[0].mxu0
      %v2310 = vadd.f32 0.0, %v2309
      %v2311 = vpop.f32.mrb[0].mxu0
      %v2312 = vpop.f32.mrb[0].mxu0
      %v2313 = vadd.f32 0.0, %v2312
      %v2314 = vpop.f32.mrb[0].mxu0
      %2315 = vmatprep.mubr.bf16.mxu0 0
      %2316 = vmatmul.mubr.bf16.gmra.mrb[0].mxu0 %v1352
      %v2317 = vpop.f32.mrb[0].mxu0
      %v2318 = vadd.f32 0.0, %v2317
      %v2319 = vpop.f32.mrb[0].mxu0
      %v2320 = vpop.f32.mrb[0].mxu0
      %v2321 = vadd.f32 0.0, %v2320
      %v2322 = vpop.f32.mrb[0].mxu0
      %2323 = vmatprep.mubr.bf16.mxu0 0
      %2324 = vmatmul.mubr.bf16.gmra.mrb[0].mxu0 %v1355
      %v2325 = vpop.f32.mrb[0].mxu0
      %v2326 = vadd.f32 0.0, %v2325
      %v2327 = vpop.f32.mrb[0].mxu0
      %v2328 = vpop.f32.mrb[0].mxu0
      %v2329 = vadd.f32 0.0, %v2328
      %v2330 = vpop.f32.mrb[0].mxu0
      %2331 = vmatprep.mubr.bf16.mxu0 0
      %2332 = vmatmul.mubr.bf16.gmra.mrb[0].mxu0 %v1358
      %v2333 = vpop.f32.mrb[0].mxu0
      %v2334 = vadd.f32 0.0, %v2333
      %v2335 = vpop.f32.mrb[0].mxu0
      %v2336 = vpop.f32.mrb[0].mxu0
      %v2337 = vadd.f32 0.0, %v2336
      %v2338 = vpop.f32.mrb[0].mxu0
      %2339 = vmatprep.mubr.bf16.mxu0 0
      %2340 = vmatmul.mubr.bf16.gmra.mrb[0].mxu0 %v1361
      %v2341 = vpop.f32.mrb[0].mxu0
      %v2342 = vadd.f32 0.0, %v2341
      %v2343 = vpop.f32.mrb[0].mxu0
      %v2344 = vpop.f32.mrb[0].mxu0
      %v2345 = vadd.f32 0.0, %v2344
      %v2346 = vpop.f32.mrb[0].mxu0
      %2347 = vmatprep.mubr.bf16.mxu0 0
      %2348 = vmatmul.mubr.bf16.gmra.mrb[0].mxu0 %v2190
      %v2349 = vpop.f32.mrb[0].mxu0
      %v2350 = vadd.f32 0.0, %v2349
      %v2351 = vpop.f32.mrb[0].mxu0
      %v2352 = vpop.f32.mrb[0].mxu0
      %v2353 = vadd.f32 0.0, %v2352
      %v2354 = vpop.f32.mrb[0].mxu0
      %2355 = vdwg.mxu0
      %v2356 = vadd.f32 %v2155, %v2230
      %v2357 = vadd.f32 %v2156, %v2233
      %v2358 = vadd.f32 %v2157, %v2238
      %v2359 = vadd.f32 %v2158, %v2241
      %v2360 = vadd.f32 %v2159, %v2246
      %v2361 = vadd.f32 %v2160, %v2249
      %v2362 = vadd.f32 %v2161, %v2254
      %v2363 = vadd.f32 %v2162, %v2257
      %v2364 = vadd.f32 %v2163, %v2262
      %v2365 = vadd.f32 %v2164, %v2265
      %v2366 = vadd.f32 %v2165, %v2270
      %v2367 = vadd.f32 %v2166, %v2273
      %v2368 = vadd.f32 %v2167, %v2278
      %v2369 = vadd.f32 %v2168, %v2281
      %v2370 = vadd.f32 %v2169, %v2286
      %v2371 = vadd.f32 %v2170, %v2289
      %v2372 = vadd.f32 %v2171, %v2294
      %v2373 = vadd.f32 %v2172, %v2297
      %v2374 = vadd.f32 %v2173, %v2302
      %v2375 = vadd.f32 %v2174, %v2305
      %v2376 = vadd.f32 %v2175, %v2310
      %v2377 = vadd.f32 %v2176, %v2313
      %v2378 = vadd.f32 %v2177, %v2318
      %v2379 = vadd.f32 %v2178, %v2321
      %v2380 = vadd.f32 %v2179, %v2326
      %v2381 = vadd.f32 %v2180, %v2329
      %v2382 = vadd.f32 %v2181, %v2334
      %v2383 = vadd.f32 %v2182, %v2337
      %v2384 = vadd.f32 %v2183, %v2342
      %v2385 = vadd.f32 %v2184, %v2345
      %v2386 = vadd.f32 %v2185, %v2350
      %v2387 = vadd.f32 %v2186, %v2353
      %s2388 = scalar_lea.vmem %s4, 10
      %v2389 = vld [vmem:[%s2388] sm:$0x3]
      %v2391 = vsel %vm871, %v1310, 0
      %v2394 = vsel %vm1363, %v2389, 0
      %2396 = vmatprep.subr.bf16.mxu0 0
      %2397 = vmatpush1.bf16.msra.mxu0 %v2394
      %2398 = vmatprep.subr.bf16.mxu0 0
      %2399 = vmatpush1.bf16.msra.mxu0 0
      %2400 = vmatprep.subr.bf16.mxu0 0
      %2401 = vmatpush1.bf16.msra.mxu0 0
      %2402 = vmatprep.subr.bf16.mxu0 0
      %2403 = vmatpush1.bf16.msra.mxu0 0
      %2404 = vmatprep.subr.bf16.mxu0 0
      %2405 = vmatpush1.bf16.msra.mxu0 0
      %2406 = vmatprep.subr.bf16.mxu0 0
      %2407 = vmatpush1.bf16.msra.mxu0 0
      %2408 = vmatprep.subr.bf16.mxu0 0
      %2409 = vmatpush1.bf16.msra.mxu0 0
      %2410 = vmatprep.subr.bf16.mxu0 0
      %2411 = vmatpush1.bf16.msra.mxu0 0
      %2412 = vmatprep.subr.bf16.mxu0 0
      %2413 = vmatpush1.bf16.msra.mxu0 0
      %2414 = vmatprep.subr.bf16.mxu0 0
      %2415 = vmatpush1.bf16.msra.mxu0 0
      %2416 = vmatprep.subr.bf16.mxu0 0
      %2417 = vmatpush1.bf16.msra.mxu0 0
      %2418 = vmatprep.subr.bf16.mxu0 0
      %2419 = vmatpush1.bf16.msra.mxu0 0
      %2420 = vmatprep.subr.bf16.mxu0 0
      %2421 = vmatpush1.bf16.msra.mxu0 0
      %2422 = vmatprep.subr.bf16.mxu0 0
      %2423 = vmatpush1.bf16.msra.mxu0 0
      %2424 = vmatprep.subr.bf16.mxu0 0
      %2425 = vmatpush1.bf16.msra.mxu0 0
      %2426 = vmatprep.subr.bf16.mxu0 0
      %2427 = vmatpush1.bf16.msra.mxu0 0
      %2428 = vmatprep.mubr.bf16.mxu0 0
      %2429 = vmatmul.mubr.bf16.gmra.mrb[0].mxu0 %v1746
      %v2430 = vpop.f32.mrb[0].mxu0
      %v2431 = vadd.f32 0.0, %v2430
      %v2432 = vpop.f32.mrb[0].mxu0
      %v2433 = vpop.f32.mrb[0].mxu0
      %v2434 = vadd.f32 0.0, %v2433
      %v2435 = vpop.f32.mrb[0].mxu0
      %2436 = vmatprep.mubr.bf16.mxu0 0
      %2437 = vmatmul.mubr.bf16.gmra.mrb[0].mxu0 %v1749
      %v2438 = vpop.f32.mrb[0].mxu0
      %v2439 = vadd.f32 0.0, %v2438
      %v2440 = vpop.f32.mrb[0].mxu0
      %v2441 = vpop.f32.mrb[0].mxu0
      %v2442 = vadd.f32 0.0, %v2441
      %v2443 = vpop.f32.mrb[0].mxu0
      %2444 = vmatprep.mubr.bf16.mxu0 0
      %2445 = vmatmul.mubr.bf16.gmra.mrb[0].mxu0 %v1752
      %v2446 = vpop.f32.mrb[0].mxu0
      %v2447 = vadd.f32 0.0, %v2446
      %v2448 = vpop.f32.mrb[0].mxu0
      %v2449 = vpop.f32.mrb[0].mxu0
      %v2450 = vadd.f32 0.0, %v2449
      %v2451 = vpop.f32.mrb[0].mxu0
      %2452 = vmatprep.mubr.bf16.mxu0 0
      %2453 = vmatmul.mubr.bf16.gmra.mrb[0].mxu0 %v1755
      %v2454 = vpop.f32.mrb[0].mxu0
      %v2455 = vadd.f32 0.0, %v2454
      %v2456 = vpop.f32.mrb[0].mxu0
      %v2457 = vpop.f32.mrb[0].mxu0
      %v2458 = vadd.f32 0.0, %v2457
      %v2459 = vpop.f32.mrb[0].mxu0
      %2460 = vmatprep.mubr.bf16.mxu0 0
      %2461 = vmatmul.mubr.bf16.gmra.mrb[0].mxu0 %v1758
      %v2462 = vpop.f32.mrb[0].mxu0
      %v2463 = vadd.f32 0.0, %v2462
      %v2464 = vpop.f32.mrb[0].mxu0
      %v2465 = vpop.f32.mrb[0].mxu0
      %v2466 = vadd.f32 0.0, %v2465
      %v2467 = vpop.f32.mrb[0].mxu0
      %2468 = vmatprep.mubr.bf16.mxu0 0
      %2469 = vmatmul.mubr.bf16.gmra.mrb[0].mxu0 %v1761
      %v2470 = vpop.f32.mrb[0].mxu0
      %v2471 = vadd.f32 0.0, %v2470
      %v2472 = vpop.f32.mrb[0].mxu0
      %v2473 = vpop.f32.mrb[0].mxu0
      %v2474 = vadd.f32 0.0, %v2473
      %v2475 = vpop.f32.mrb[0].mxu0
      %2476 = vmatprep.mubr.bf16.mxu0 0
      %2477 = vmatmul.mubr.bf16.gmra.mrb[0].mxu0 %v1764
      %v2478 = vpop.f32.mrb[0].mxu0
      %v2479 = vadd.f32 0.0, %v2478
      %v2480 = vpop.f32.mrb[0].mxu0
      %v2481 = vpop.f32.mrb[0].mxu0
      %v2482 = vadd.f32 0.0, %v2481
      %v2483 = vpop.f32.mrb[0].mxu0
      %2484 = vmatprep.mubr.bf16.mxu0 0
      %2485 = vmatmul.mubr.bf16.gmra.mrb[0].mxu0 %v1767
      %v2486 = vpop.f32.mrb[0].mxu0
      %v2487 = vadd.f32 0.0, %v2486
      %v2488 = vpop.f32.mrb[0].mxu0
      %v2489 = vpop.f32.mrb[0].mxu0
      %v2490 = vadd.f32 0.0, %v2489
      %v2491 = vpop.f32.mrb[0].mxu0
      %2492 = vmatprep.mubr.bf16.mxu0 0
      %2493 = vmatmul.mubr.bf16.gmra.mrb[0].mxu0 %v1770
      %v2494 = vpop.f32.mrb[0].mxu0
      %v2495 = vadd.f32 0.0, %v2494
      %v2496 = vpop.f32.mrb[0].mxu0
      %v2497 = vpop.f32.mrb[0].mxu0
      %v2498 = vadd.f32 0.0, %v2497
      %v2499 = vpop.f32.mrb[0].mxu0
      %2500 = vmatprep.mubr.bf16.mxu0 0
      %2501 = vmatmul.mubr.bf16.gmra.mrb[0].mxu0 %v1773
      %v2502 = vpop.f32.mrb[0].mxu0
      %v2503 = vadd.f32 0.0, %v2502
      %v2504 = vpop.f32.mrb[0].mxu0
      %v2505 = vpop.f32.mrb[0].mxu0
      %v2506 = vadd.f32 0.0, %v2505
      %v2507 = vpop.f32.mrb[0].mxu0
      %2508 = vmatprep.mubr.bf16.mxu0 0
      %2509 = vmatmul.mubr.bf16.gmra.mrb[0].mxu0 %v1776
      %v2510 = vpop.f32.mrb[0].mxu0
      %v2511 = vadd.f32 0.0, %v2510
      %v2512 = vpop.f32.mrb[0].mxu0
      %v2513 = vpop.f32.mrb[0].mxu0
      %v2514 = vadd.f32 0.0, %v2513
      %v2515 = vpop.f32.mrb[0].mxu0
      %2516 = vmatprep.mubr.bf16.mxu0 0
      %2517 = vmatmul.mubr.bf16.gmra.mrb[0].mxu0 %v1779
      %v2518 = vpop.f32.mrb[0].mxu0
      %v2519 = vadd.f32 0.0, %v2518
      %v2520 = vpop.f32.mrb[0].mxu0
      %v2521 = vpop.f32.mrb[0].mxu0
      %v2522 = vadd.f32 0.0, %v2521
      %v2523 = vpop.f32.mrb[0].mxu0
      %2524 = vmatprep.mubr.bf16.mxu0 0
      %2525 = vmatmul.mubr.bf16.gmra.mrb[0].mxu0 %v1782
      %v2526 = vpop.f32.mrb[0].mxu0
      %v2527 = vadd.f32 0.0, %v2526
      %v2528 = vpop.f32.mrb[0].mxu0
      %v2529 = vpop.f32.mrb[0].mxu0
      %v2530 = vadd.f32 0.0, %v2529
      %v2531 = vpop.f32.mrb[0].mxu0
      %2532 = vmatprep.mubr.bf16.mxu0 0
      %2533 = vmatmul.mubr.bf16.gmra.mrb[0].mxu0 %v1785
      %v2534 = vpop.f32.mrb[0].mxu0
      %v2535 = vadd.f32 0.0, %v2534
      %v2536 = vpop.f32.mrb[0].mxu0
      %v2537 = vpop.f32.mrb[0].mxu0
      %v2538 = vadd.f32 0.0, %v2537
      %v2539 = vpop.f32.mrb[0].mxu0
      %2540 = vmatprep.mubr.bf16.mxu0 0
      %2541 = vmatmul.mubr.bf16.gmra.mrb[0].mxu0 %v1788
      %v2542 = vpop.f32.mrb[0].mxu0
      %v2543 = vadd.f32 0.0, %v2542
      %v2544 = vpop.f32.mrb[0].mxu0
      %v2545 = vpop.f32.mrb[0].mxu0
      %v2546 = vadd.f32 0.0, %v2545
      %v2547 = vpop.f32.mrb[0].mxu0
      %2548 = vmatprep.mubr.bf16.mxu0 0
      %2549 = vmatmul.mubr.bf16.gmra.mrb[0].mxu0 %v2391
      %v2550 = vpop.f32.mrb[0].mxu0
      %v2551 = vadd.f32 0.0, %v2550
      %v2552 = vpop.f32.mrb[0].mxu0
      %v2553 = vpop.f32.mrb[0].mxu0
      %v2554 = vadd.f32 0.0, %v2553
      %v2555 = vpop.f32.mrb[0].mxu0
      %2556 = vdwg.mxu0
      %v2557 = vadd.f32 %v2356, %v2431
      %v2558 = vadd.f32 %v2357, %v2434
      %v2559 = vadd.f32 %v2358, %v2439
      %v2560 = vadd.f32 %v2359, %v2442
      %v2561 = vadd.f32 %v2360, %v2447
      %v2562 = vadd.f32 %v2361, %v2450
      %v2563 = vadd.f32 %v2362, %v2455
      %v2564 = vadd.f32 %v2363, %v2458
      %v2565 = vadd.f32 %v2364, %v2463
      %v2566 = vadd.f32 %v2365, %v2466
      %v2567 = vadd.f32 %v2366, %v2471
      %v2568 = vadd.f32 %v2367, %v2474
      %v2569 = vadd.f32 %v2368, %v2479
      %v2570 = vadd.f32 %v2369, %v2482
      %v2571 = vadd.f32 %v2370, %v2487
      %v2572 = vadd.f32 %v2371, %v2490
      %v2573 = vadd.f32 %v2372, %v2495
      %v2574 = vadd.f32 %v2373, %v2498
      %v2575 = vadd.f32 %v2374, %v2503
      %v2576 = vadd.f32 %v2375, %v2506
      %v2577 = vadd.f32 %v2376, %v2511
      %v2578 = vadd.f32 %v2377, %v2514
      %v2579 = vadd.f32 %v2378, %v2519
      %v2580 = vadd.f32 %v2379, %v2522
      %v2581 = vadd.f32 %v2380, %v2527
      %v2582 = vadd.f32 %v2381, %v2530
      %v2583 = vadd.f32 %v2382, %v2535
      %v2584 = vadd.f32 %v2383, %v2538
      %v2585 = vadd.f32 %v2384, %v2543
      %v2586 = vadd.f32 %v2385, %v2546
      %v2587 = vadd.f32 %v2386, %v2551
      %v2588 = vadd.f32 %v2387, %v2554
      %s2589 = scalar_lea.vmem %s4, 12
      %v2590 = vld [vmem:[%s2589] sm:$0x3]
      %v2592 = vsel %vm871, %v1251, 0
      %v2595 = vsel %vm1363, %v2590, 0
      %2597 = vmatprep.subr.bf16.mxu0 0
      %2598 = vmatpush1.bf16.msra.mxu0 %v2595
      %2599 = vmatprep.subr.bf16.mxu0 0
      %2600 = vmatpush1.bf16.msra.mxu0 0
      %2601 = vmatprep.subr.bf16.mxu0 0
      %2602 = vmatpush1.bf16.msra.mxu0 0
      %2603 = vmatprep.subr.bf16.mxu0 0
      %2604 = vmatpush1.bf16.msra.mxu0 0
      %2605 = vmatprep.subr.bf16.mxu0 0
      %2606 = vmatpush1.bf16.msra.mxu0 0
      %2607 = vmatprep.subr.bf16.mxu0 0
      %2608 = vmatpush1.bf16.msra.mxu0 0
      %2609 = vmatprep.subr.bf16.mxu0 0
      %2610 = vmatpush1.bf16.msra.mxu0 0
      %2611 = vmatprep.subr.bf16.mxu0 0
      %2612 = vmatpush1.bf16.msra.mxu0 0
      %2613 = vmatprep.subr.bf16.mxu0 0
      %2614 = vmatpush1.bf16.msra.mxu0 0
      %2615 = vmatprep.subr.bf16.mxu0 0
      %2616 = vmatpush1.bf16.msra.mxu0 0
      %2617 = vmatprep.subr.bf16.mxu0 0
      %2618 = vmatpush1.bf16.msra.mxu0 0
      %2619 = vmatprep.subr.bf16.mxu0 0
      %2620 = vmatpush1.bf16.msra.mxu0 0
      %2621 = vmatprep.subr.bf16.mxu0 0
      %2622 = vmatpush1.bf16.msra.mxu0 0
      %2623 = vmatprep.subr.bf16.mxu0 0
      %2624 = vmatpush1.bf16.msra.mxu0 0
      %2625 = vmatprep.subr.bf16.mxu0 0
      %2626 = vmatpush1.bf16.msra.mxu0 0
      %2627 = vmatprep.subr.bf16.mxu0 0
      %2628 = vmatpush1.bf16.msra.mxu0 0
      %2629 = vmatprep.mubr.bf16.mxu0 0
      %2630 = vmatmul.mubr.bf16.gmra.mrb[0].mxu0 %v1535
      %v2631 = vpop.f32.mrb[0].mxu0
      %v2632 = vadd.f32 0.0, %v2631
      %v2633 = vpop.f32.mrb[0].mxu0
      %v2634 = vpop.f32.mrb[0].mxu0
      %v2635 = vadd.f32 0.0, %v2634
      %v2636 = vpop.f32.mrb[0].mxu0
      %2637 = vmatprep.mubr.bf16.mxu0 0
      %2638 = vmatmul.mubr.bf16.gmra.mrb[0].mxu0 %v1538
      %v2639 = vpop.f32.mrb[0].mxu0
      %v2640 = vadd.f32 0.0, %v2639
      %v2641 = vpop.f32.mrb[0].mxu0
      %v2642 = vpop.f32.mrb[0].mxu0
      %v2643 = vadd.f32 0.0, %v2642
      %v2644 = vpop.f32.mrb[0].mxu0
      %2645 = vmatprep.mubr.bf16.mxu0 0
      %2646 = vmatmul.mubr.bf16.gmra.mrb[0].mxu0 %v1541
      %v2647 = vpop.f32.mrb[0].mxu0
      %v2648 = vadd.f32 0.0, %v2647
      %v2649 = vpop.f32.mrb[0].mxu0
      %v2650 = vpop.f32.mrb[0].mxu0
      %v2651 = vadd.f32 0.0, %v2650
      %v2652 = vpop.f32.mrb[0].mxu0
      %2653 = vmatprep.mubr.bf16.mxu0 0
      %2654 = vmatmul.mubr.bf16.gmra.mrb[0].mxu0 %v1544
      %v2655 = vpop.f32.mrb[0].mxu0
      %v2656 = vadd.f32 0.0, %v2655
      %v2657 = vpop.f32.mrb[0].mxu0
      %v2658 = vpop.f32.mrb[0].mxu0
      %v2659 = vadd.f32 0.0, %v2658
      %v2660 = vpop.f32.mrb[0].mxu0
      %2661 = vmatprep.mubr.bf16.mxu0 0
      %2662 = vmatmul.mubr.bf16.gmra.mrb[0].mxu0 %v1547
      %v2663 = vpop.f32.mrb[0].mxu0
      %v2664 = vadd.f32 0.0, %v2663
      %v2665 = vpop.f32.mrb[0].mxu0
      %v2666 = vpop.f32.mrb[0].mxu0
      %v2667 = vadd.f32 0.0, %v2666
      %v2668 = vpop.f32.mrb[0].mxu0
      %2669 = vmatprep.mubr.bf16.mxu0 0
      %2670 = vmatmul.mubr.bf16.gmra.mrb[0].mxu0 %v1550
      %v2671 = vpop.f32.mrb[0].mxu0
      %v2672 = vadd.f32 0.0, %v2671
      %v2673 = vpop.f32.mrb[0].mxu0
      %v2674 = vpop.f32.mrb[0].mxu0
      %v2675 = vadd.f32 0.0, %v2674
      %v2676 = vpop.f32.mrb[0].mxu0
      %2677 = vmatprep.mubr.bf16.mxu0 0
      %2678 = vmatmul.mubr.bf16.gmra.mrb[0].mxu0 %v1553
      %v2679 = vpop.f32.mrb[0].mxu0
      %v2680 = vadd.f32 0.0, %v2679
      %v2681 = vpop.f32.mrb[0].mxu0
      %v2682 = vpop.f32.mrb[0].mxu0
      %v2683 = vadd.f32 0.0, %v2682
      %v2684 = vpop.f32.mrb[0].mxu0
      %2685 = vmatprep.mubr.bf16.mxu0 0
      %2686 = vmatmul.mubr.bf16.gmra.mrb[0].mxu0 %v1556
      %v2687 = vpop.f32.mrb[0].mxu0
      %v2688 = vadd.f32 0.0, %v2687
      %v2689 = vpop.f32.mrb[0].mxu0
      %v2690 = vpop.f32.mrb[0].mxu0
      %v2691 = vadd.f32 0.0, %v2690
      %v2692 = vpop.f32.mrb[0].mxu0
      %2693 = vmatprep.mubr.bf16.mxu0 0
      %2694 = vmatmul.mubr.bf16.gmra.mrb[0].mxu0 %v1559
      %v2695 = vpop.f32.mrb[0].mxu0
      %v2696 = vadd.f32 0.0, %v2695
      %v2697 = vpop.f32.mrb[0].mxu0
      %v2698 = vpop.f32.mrb[0].mxu0
      %v2699 = vadd.f32 0.0, %v2698
      %v2700 = vpop.f32.mrb[0].mxu0
      %2701 = vmatprep.mubr.bf16.mxu0 0
      %2702 = vmatmul.mubr.bf16.gmra.mrb[0].mxu0 %v1562
      %v2703 = vpop.f32.mrb[0].mxu0
      %v2704 = vadd.f32 0.0, %v2703
      %v2705 = vpop.f32.mrb[0].mxu0
      %v2706 = vpop.f32.mrb[0].mxu0
      %v2707 = vadd.f32 0.0, %v2706
      %v2708 = vpop.f32.mrb[0].mxu0
      %2709 = vmatprep.mubr.bf16.mxu0 0
      %2710 = vmatmul.mubr.bf16.gmra.mrb[0].mxu0 %v1565
      %v2711 = vpop.f32.mrb[0].mxu0
      %v2712 = vadd.f32 0.0, %v2711
      %v2713 = vpop.f32.mrb[0].mxu0
      %v2714 = vpop.f32.mrb[0].mxu0
      %v2715 = vadd.f32 0.0, %v2714
      %v2716 = vpop.f32.mrb[0].mxu0
      %2717 = vmatprep.mubr.bf16.mxu0 0
      %2718 = vmatmul.mubr.bf16.gmra.mrb[0].mxu0 %v1568
      %v2719 = vpop.f32.mrb[0].mxu0
      %v2720 = vadd.f32 0.0, %v2719
      %v2721 = vpop.f32.mrb[0].mxu0
      %v2722 = vpop.f32.mrb[0].mxu0
      %v2723 = vadd.f32 0.0, %v2722
      %v2724 = vpop.f32.mrb[0].mxu0
      %2725 = vmatprep.mubr.bf16.mxu0 0
      %2726 = vmatmul.mubr.bf16.gmra.mrb[0].mxu0 %v1571
      %v2727 = vpop.f32.mrb[0].mxu0
      %v2728 = vadd.f32 0.0, %v2727
      %v2729 = vpop.f32.mrb[0].mxu0
      %v2730 = vpop.f32.mrb[0].mxu0
      %v2731 = vadd.f32 0.0, %v2730
      %v2732 = vpop.f32.mrb[0].mxu0
      %2733 = vmatprep.mubr.bf16.mxu0 0
      %2734 = vmatmul.mubr.bf16.gmra.mrb[0].mxu0 %v1574
      %v2735 = vpop.f32.mrb[0].mxu0
      %v2736 = vadd.f32 0.0, %v2735
      %v2737 = vpop.f32.mrb[0].mxu0
      %v2738 = vpop.f32.mrb[0].mxu0
      %v2739 = vadd.f32 0.0, %v2738
      %v2740 = vpop.f32.mrb[0].mxu0
      %2741 = vmatprep.mubr.bf16.mxu0 0
      %2742 = vmatmul.mubr.bf16.gmra.mrb[0].mxu0 %v1989
      %v2743 = vpop.f32.mrb[0].mxu0
      %v2744 = vadd.f32 0.0, %v2743
      %v2745 = vpop.f32.mrb[0].mxu0
      %v2746 = vpop.f32.mrb[0].mxu0
      %v2747 = vadd.f32 0.0, %v2746
      %v2748 = vpop.f32.mrb[0].mxu0
      %2749 = vmatprep.mubr.bf16.mxu0 0
      %2750 = vmatmul.mubr.bf16.gmra.mrb[0].mxu0 %v2592
      %v2751 = vpop.f32.mrb[0].mxu0
      %v2752 = vadd.f32 0.0, %v2751
      %v2753 = vpop.f32.mrb[0].mxu0
      %v2754 = vpop.f32.mrb[0].mxu0
      %v2755 = vadd.f32 0.0, %v2754
      %v2756 = vpop.f32.mrb[0].mxu0
      %2757 = vdwg.mxu0
      %v2758 = vadd.f32 %v2557, %v2632
      %v2759 = vadd.f32 %v2558, %v2635
      %v2760 = vadd.f32 %v2559, %v2640
      %v2761 = vadd.f32 %v2560, %v2643
      %v2762 = vadd.f32 %v2561, %v2648
      %v2763 = vadd.f32 %v2562, %v2651
      %v2764 = vadd.f32 %v2563, %v2656
      %v2765 = vadd.f32 %v2564, %v2659
      %v2766 = vadd.f32 %v2565, %v2664
      %v2767 = vadd.f32 %v2566, %v2667
      %v2768 = vadd.f32 %v2567, %v2672
      %v2769 = vadd.f32 %v2568, %v2675
      %v2770 = vadd.f32 %v2569, %v2680
      %v2771 = vadd.f32 %v2570, %v2683
      %v2772 = vadd.f32 %v2571, %v2688
      %v2773 = vadd.f32 %v2572, %v2691
      %v2774 = vadd.f32 %v2573, %v2696
      %v2775 = vadd.f32 %v2574, %v2699
      %v2776 = vadd.f32 %v2575, %v2704
      %v2777 = vadd.f32 %v2576, %v2707
      %v2778 = vadd.f32 %v2577, %v2712
      %v2779 = vadd.f32 %v2578, %v2715
      %v2780 = vadd.f32 %v2579, %v2720
      %v2781 = vadd.f32 %v2580, %v2723
      %v2782 = vadd.f32 %v2581, %v2728
      %v2783 = vadd.f32 %v2582, %v2731
      %v2784 = vadd.f32 %v2583, %v2736
      %v2785 = vadd.f32 %v2584, %v2739
      %v2786 = vadd.f32 %v2585, %v2744
      %v2787 = vadd.f32 %v2586, %v2747
      %v2788 = vadd.f32 %v2587, %v2752
      %v2789 = vadd.f32 %v2588, %v2755
      %s2790 = scalar_lea.vmem %s4, 14
      %v2791 = vld [vmem:[%s2790] sm:$0x3]
      %v2793 = vsel %vm871, %v1191, 0
      %v2796 = vsel %vm1363, %v2791, 0
      %2798 = vmatprep.subr.bf16.mxu0 0
      %2799 = vmatpush1.bf16.msra.mxu0 %v2796
      %2800 = vmatprep.subr.bf16.mxu0 0
      %2801 = vmatpush1.bf16.msra.mxu0 0
      %2802 = vmatprep.subr.bf16.mxu0 0
      %2803 = vmatpush1.bf16.msra.mxu0 0
      %2804 = vmatprep.subr.bf16.mxu0 0
      %2805 = vmatpush1.bf16.msra.mxu0 0
      %2806 = vmatprep.subr.bf16.mxu0 0
      %2807 = vmatpush1.bf16.msra.mxu0 0
      %2808 = vmatprep.subr.bf16.mxu0 0
      %2809 = vmatpush1.bf16.msra.mxu0 0
      %2810 = vmatprep.subr.bf16.mxu0 0
      %2811 = vmatpush1.bf16.msra.mxu0 0
      %2812 = vmatprep.subr.bf16.mxu0 0
      %2813 = vmatpush1.bf16.msra.mxu0 0
      %2814 = vmatprep.subr.bf16.mxu0 0
      %2815 = vmatpush1.bf16.msra.mxu0 0
      %2816 = vmatprep.subr.bf16.mxu0 0
      %2817 = vmatpush1.bf16.msra.mxu0 0
      %2818 = vmatprep.subr.bf16.mxu0 0
      %2819 = vmatpush1.bf16.msra.mxu0 0
      %2820 = vmatprep.subr.bf16.mxu0 0
      %2821 = vmatpush1.bf16.msra.mxu0 0
      %2822 = vmatprep.subr.bf16.mxu0 0
      %2823 = vmatpush1.bf16.msra.mxu0 0
      %2824 = vmatprep.subr.bf16.mxu0 0
      %2825 = vmatpush1.bf16.msra.mxu0 0
      %2826 = vmatprep.subr.bf16.mxu0 0
      %2827 = vmatpush1.bf16.msra.mxu0 0
      %2828 = vmatprep.subr.bf16.mxu0 0
      %2829 = vmatpush1.bf16.msra.mxu0 0
      %2830 = vmatprep.mubr.bf16.mxu0 0
      %2831 = vmatmul.mubr.bf16.gmra.mrb[0].mxu0 %v1322
      %v2832 = vpop.f32.mrb[0].mxu0
      %v2833 = vadd.f32 0.0, %v2832
      %v2834 = vpop.f32.mrb[0].mxu0
      %v2835 = vpop.f32.mrb[0].mxu0
      %v2836 = vadd.f32 0.0, %v2835
      %v2837 = vpop.f32.mrb[0].mxu0
      %2838 = vmatprep.mubr.bf16.mxu0 0
      %2839 = vmatmul.mubr.bf16.gmra.mrb[0].mxu0 %v1325
      %v2840 = vpop.f32.mrb[0].mxu0
      %v2841 = vadd.f32 0.0, %v2840
      %v2842 = vpop.f32.mrb[0].mxu0
      %v2843 = vpop.f32.mrb[0].mxu0
      %v2844 = vadd.f32 0.0, %v2843
      %v2845 = vpop.f32.mrb[0].mxu0
      %2846 = vmatprep.mubr.bf16.mxu0 0
      %2847 = vmatmul.mubr.bf16.gmra.mrb[0].mxu0 %v1328
      %v2848 = vpop.f32.mrb[0].mxu0
      %v2849 = vadd.f32 0.0, %v2848
      %v2850 = vpop.f32.mrb[0].mxu0
      %v2851 = vpop.f32.mrb[0].mxu0
      %v2852 = vadd.f32 0.0, %v2851
      %v2853 = vpop.f32.mrb[0].mxu0
      %2854 = vmatprep.mubr.bf16.mxu0 0
      %2855 = vmatmul.mubr.bf16.gmra.mrb[0].mxu0 %v1331
      %v2856 = vpop.f32.mrb[0].mxu0
      %v2857 = vadd.f32 0.0, %v2856
      %v2858 = vpop.f32.mrb[0].mxu0
      %v2859 = vpop.f32.mrb[0].mxu0
      %v2860 = vadd.f32 0.0, %v2859
      %v2861 = vpop.f32.mrb[0].mxu0
      %2862 = vmatprep.mubr.bf16.mxu0 0
      %2863 = vmatmul.mubr.bf16.gmra.mrb[0].mxu0 %v1334
      %v2864 = vpop.f32.mrb[0].mxu0
      %v2865 = vadd.f32 0.0, %v2864
      %v2866 = vpop.f32.mrb[0].mxu0
      %v2867 = vpop.f32.mrb[0].mxu0
      %v2868 = vadd.f32 0.0, %v2867
      %v2869 = vpop.f32.mrb[0].mxu0
      %2870 = vmatprep.mubr.bf16.mxu0 0
      %2871 = vmatmul.mubr.bf16.gmra.mrb[0].mxu0 %v1337
      %v2872 = vpop.f32.mrb[0].mxu0
      %v2873 = vadd.f32 0.0, %v2872
      %v2874 = vpop.f32.mrb[0].mxu0
      %v2875 = vpop.f32.mrb[0].mxu0
      %v2876 = vadd.f32 0.0, %v2875
      %v2877 = vpop.f32.mrb[0].mxu0
      %2878 = vmatprep.mubr.bf16.mxu0 0
      %2879 = vmatmul.mubr.bf16.gmra.mrb[0].mxu0 %v1340
      %v2880 = vpop.f32.mrb[0].mxu0
      %v2881 = vadd.f32 0.0, %v2880
      %v2882 = vpop.f32.mrb[0].mxu0
      %v2883 = vpop.f32.mrb[0].mxu0
      %v2884 = vadd.f32 0.0, %v2883
      %v2885 = vpop.f32.mrb[0].mxu0
      %2886 = vmatprep.mubr.bf16.mxu0 0
      %2887 = vmatmul.mubr.bf16.gmra.mrb[0].mxu0 %v1343
      %v2888 = vpop.f32.mrb[0].mxu0
      %v2889 = vadd.f32 0.0, %v2888
      %v2890 = vpop.f32.mrb[0].mxu0
      %v2891 = vpop.f32.mrb[0].mxu0
      %v2892 = vadd.f32 0.0, %v2891
      %v2893 = vpop.f32.mrb[0].mxu0
      %2894 = vmatprep.mubr.bf16.mxu0 0
      %2895 = vmatmul.mubr.bf16.gmra.mrb[0].mxu0 %v1346
      %v2896 = vpop.f32.mrb[0].mxu0
      %v2897 = vadd.f32 0.0, %v2896
      %v2898 = vpop.f32.mrb[0].mxu0
      %v2899 = vpop.f32.mrb[0].mxu0
      %v2900 = vadd.f32 0.0, %v2899
      %v2901 = vpop.f32.mrb[0].mxu0
      %2902 = vmatprep.mubr.bf16.mxu0 0
      %2903 = vmatmul.mubr.bf16.gmra.mrb[0].mxu0 %v1349
      %v2904 = vpop.f32.mrb[0].mxu0
      %v2905 = vadd.f32 0.0, %v2904
      %v2906 = vpop.f32.mrb[0].mxu0
      %v2907 = vpop.f32.mrb[0].mxu0
      %v2908 = vadd.f32 0.0, %v2907
      %v2909 = vpop.f32.mrb[0].mxu0
      %2910 = vmatprep.mubr.bf16.mxu0 0
      %2911 = vmatmul.mubr.bf16.gmra.mrb[0].mxu0 %v1352
      %v2912 = vpop.f32.mrb[0].mxu0
      %v2913 = vadd.f32 0.0, %v2912
      %v2914 = vpop.f32.mrb[0].mxu0
      %v2915 = vpop.f32.mrb[0].mxu0
      %v2916 = vadd.f32 0.0, %v2915
      %v2917 = vpop.f32.mrb[0].mxu0
      %2918 = vmatprep.mubr.bf16.mxu0 0
      %2919 = vmatmul.mubr.bf16.gmra.mrb[0].mxu0 %v1355
      %v2920 = vpop.f32.mrb[0].mxu0
      %v2921 = vadd.f32 0.0, %v2920
      %v2922 = vpop.f32.mrb[0].mxu0
      %v2923 = vpop.f32.mrb[0].mxu0
      %v2924 = vadd.f32 0.0, %v2923
      %v2925 = vpop.f32.mrb[0].mxu0
      %2926 = vmatprep.mubr.bf16.mxu0 0
      %2927 = vmatmul.mubr.bf16.gmra.mrb[0].mxu0 %v1358
      %v2928 = vpop.f32.mrb[0].mxu0
      %v2929 = vadd.f32 0.0, %v2928
      %v2930 = vpop.f32.mrb[0].mxu0
      %v2931 = vpop.f32.mrb[0].mxu0
      %v2932 = vadd.f32 0.0, %v2931
      %v2933 = vpop.f32.mrb[0].mxu0
      %2934 = vmatprep.mubr.bf16.mxu0 0
      %2935 = vmatmul.mubr.bf16.gmra.mrb[0].mxu0 %v1361
      %v2936 = vpop.f32.mrb[0].mxu0
      %v2937 = vadd.f32 0.0, %v2936
      %v2938 = vpop.f32.mrb[0].mxu0
      %v2939 = vpop.f32.mrb[0].mxu0
      %v2940 = vadd.f32 0.0, %v2939
      %v2941 = vpop.f32.mrb[0].mxu0
      %2942 = vmatprep.mubr.bf16.mxu0 0
      %2943 = vmatmul.mubr.bf16.gmra.mrb[0].mxu0 %v2190
      %v2944 = vpop.f32.mrb[0].mxu0
      %v2945 = vadd.f32 0.0, %v2944
      %v2946 = vpop.f32.mrb[0].mxu0
      %v2947 = vpop.f32.mrb[0].mxu0
      %v2948 = vadd.f32 0.0, %v2947
      %v2949 = vpop.f32.mrb[0].mxu0
      %2950 = vmatprep.mubr.bf16.mxu0 0
      %2951 = vmatmul.mubr.bf16.gmra.mrb[0].mxu0 %v2793
      %v2952 = vpop.f32.mrb[0].mxu0
      %v2953 = vadd.f32 0.0, %v2952
      %v2954 = vpop.f32.mrb[0].mxu0
      %v2955 = vpop.f32.mrb[0].mxu0
      %v2956 = vadd.f32 0.0, %v2955
      %v2957 = vpop.f32.mrb[0].mxu0
      %2958 = vdwg.mxu0
      %v2959 = vadd.f32 %v2758, %v2833
      %v2960 = vadd.f32 %v2759, %v2836
      %v2961 = vadd.f32 %v2760, %v2841
      %v2962 = vadd.f32 %v2761, %v2844
      %v2963 = vadd.f32 %v2762, %v2849
      %v2964 = vadd.f32 %v2763, %v2852
      %v2965 = vadd.f32 %v2764, %v2857
      %v2966 = vadd.f32 %v2765, %v2860
      %v2967 = vadd.f32 %v2766, %v2865
      %v2968 = vadd.f32 %v2767, %v2868
      %v2969 = vadd.f32 %v2768, %v2873
      %v2970 = vadd.f32 %v2769, %v2876
      %v2971 = vadd.f32 %v2770, %v2881
      %v2972 = vadd.f32 %v2771, %v2884
      %v2973 = vadd.f32 %v2772, %v2889
      %v2974 = vadd.f32 %v2773, %v2892
      %v2975 = vadd.f32 %v2774, %v2897
      %v2976 = vadd.f32 %v2775, %v2900
      %v2977 = vadd.f32 %v2776, %v2905
      %v2978 = vadd.f32 %v2777, %v2908
      %v2979 = vadd.f32 %v2778, %v2913
      %v2980 = vadd.f32 %v2779, %v2916
      %v2981 = vadd.f32 %v2780, %v2921
      %v2982 = vadd.f32 %v2781, %v2924
      %v2983 = vadd.f32 %v2782, %v2929
      %v2984 = vadd.f32 %v2783, %v2932
      %v2985 = vadd.f32 %v2784, %v2937
      %v2986 = vadd.f32 %v2785, %v2940
      %v2987 = vadd.f32 %v2786, %v2945
      %v2988 = vadd.f32 %v2787, %v2948
      %v2989 = vadd.f32 %v2788, %v2953
      %v2990 = vadd.f32 %v2789, %v2956
      %s2991 = scalar_lea.vmem %s4, 16
      %v2992 = vld [vmem:[%s2991] sm:$0x3]
      %v2994 = vsel %vm871, %v1311, 0
      %v2997 = vsel %vm1363, %v2992, 0
      %2999 = vmatprep.subr.bf16.mxu0 0
      %3000 = vmatpush1.bf16.msra.mxu0 %v2997
      %3001 = vmatprep.subr.bf16.mxu0 0
      %3002 = vmatpush1.bf16.msra.mxu0 0
      %3003 = vmatprep.subr.bf16.mxu0 0
      %3004 = vmatpush1.bf16.msra.mxu0 0
      %3005 = vmatprep.subr.bf16.mxu0 0
      %3006 = vmatpush1.bf16.msra.mxu0 0
      %3007 = vmatprep.subr.bf16.mxu0 0
      %3008 = vmatpush1.bf16.msra.mxu0 0
      %3009 = vmatprep.subr.bf16.mxu0 0
      %3010 = vmatpush1.bf16.msra.mxu0 0
      %3011 = vmatprep.subr.bf16.mxu0 0
      %3012 = vmatpush1.bf16.msra.mxu0 0
      %3013 = vmatprep.subr.bf16.mxu0 0
      %3014 = vmatpush1.bf16.msra.mxu0 0
      %3015 = vmatprep.subr.bf16.mxu0 0
      %3016 = vmatpush1.bf16.msra.mxu0 0
      %3017 = vmatprep.subr.bf16.mxu0 0
      %3018 = vmatpush1.bf16.msra.mxu0 0
      %3019 = vmatprep.subr.bf16.mxu0 0
      %3020 = vmatpush1.bf16.msra.mxu0 0
      %3021 = vmatprep.subr.bf16.mxu0 0
      %3022 = vmatpush1.bf16.msra.mxu0 0
      %3023 = vmatprep.subr.bf16.mxu0 0
      %3024 = vmatpush1.bf16.msra.mxu0 0
      %3025 = vmatprep.subr.bf16.mxu0 0
      %3026 = vmatpush1.bf16.msra.mxu0 0
      %3027 = vmatprep.subr.bf16.mxu0 0
      %3028 = vmatpush1.bf16.msra.mxu0 0
      %3029 = vmatprep.subr.bf16.mxu0 0
      %3030 = vmatpush1.bf16.msra.mxu0 0
      %3031 = vmatprep.mubr.bf16.mxu0 0
      %3032 = vmatmul.mubr.bf16.gmra.mrb[0].mxu0 %v1749
      %v3033 = vpop.f32.mrb[0].mxu0
      %v3034 = vadd.f32 0.0, %v3033
      %v3035 = vpop.f32.mrb[0].mxu0
      %v3036 = vpop.f32.mrb[0].mxu0
      %v3037 = vadd.f32 0.0, %v3036
      %v3038 = vpop.f32.mrb[0].mxu0
      %3039 = vmatprep.mubr.bf16.mxu0 0
      %3040 = vmatmul.mubr.bf16.gmra.mrb[0].mxu0 %v1752
      %v3041 = vpop.f32.mrb[0].mxu0
      %v3042 = vadd.f32 0.0, %v3041
      %v3043 = vpop.f32.mrb[0].mxu0
      %v3044 = vpop.f32.mrb[0].mxu0
      %v3045 = vadd.f32 0.0, %v3044
      %v3046 = vpop.f32.mrb[0].mxu0
      %3047 = vmatprep.mubr.bf16.mxu0 0
      %3048 = vmatmul.mubr.bf16.gmra.mrb[0].mxu0 %v1755
      %v3049 = vpop.f32.mrb[0].mxu0
      %v3050 = vadd.f32 0.0, %v3049
      %v3051 = vpop.f32.mrb[0].mxu0
      %v3052 = vpop.f32.mrb[0].mxu0
      %v3053 = vadd.f32 0.0, %v3052
      %v3054 = vpop.f32.mrb[0].mxu0
      %3055 = vmatprep.mubr.bf16.mxu0 0
      %3056 = vmatmul.mubr.bf16.gmra.mrb[0].mxu0 %v1758
      %v3057 = vpop.f32.mrb[0].mxu0
      %v3058 = vadd.f32 0.0, %v3057
      %v3059 = vpop.f32.mrb[0].mxu0
      %v3060 = vpop.f32.mrb[0].mxu0
      %v3061 = vadd.f32 0.0, %v3060
      %v3062 = vpop.f32.mrb[0].mxu0
      %3063 = vmatprep.mubr.bf16.mxu0 0
      %3064 = vmatmul.mubr.bf16.gmra.mrb[0].mxu0 %v1761
      %v3065 = vpop.f32.mrb[0].mxu0
      %v3066 = vadd.f32 0.0, %v3065
      %v3067 = vpop.f32.mrb[0].mxu0
      %v3068 = vpop.f32.mrb[0].mxu0
      %v3069 = vadd.f32 0.0, %v3068
      %v3070 = vpop.f32.mrb[0].mxu0
      %3071 = vmatprep.mubr.bf16.mxu0 0
      %3072 = vmatmul.mubr.bf16.gmra.mrb[0].mxu0 %v1764
      %v3073 = vpop.f32.mrb[0].mxu0
      %v3074 = vadd.f32 0.0, %v3073
      %v3075 = vpop.f32.mrb[0].mxu0
      %v3076 = vpop.f32.mrb[0].mxu0
      %v3077 = vadd.f32 0.0, %v3076
      %v3078 = vpop.f32.mrb[0].mxu0
      %3079 = vmatprep.mubr.bf16.mxu0 0
      %3080 = vmatmul.mubr.bf16.gmra.mrb[0].mxu0 %v1767
      %v3081 = vpop.f32.mrb[0].mxu0
      %v3082 = vadd.f32 0.0, %v3081
      %v3083 = vpop.f32.mrb[0].mxu0
      %v3084 = vpop.f32.mrb[0].mxu0
      %v3085 = vadd.f32 0.0, %v3084
      %v3086 = vpop.f32.mrb[0].mxu0
      %3087 = vmatprep.mubr.bf16.mxu0 0
      %3088 = vmatmul.mubr.bf16.gmra.mrb[0].mxu0 %v1770
      %v3089 = vpop.f32.mrb[0].mxu0
      %v3090 = vadd.f32 0.0, %v3089
      %v3091 = vpop.f32.mrb[0].mxu0
      %v3092 = vpop.f32.mrb[0].mxu0
      %v3093 = vadd.f32 0.0, %v3092
      %v3094 = vpop.f32.mrb[0].mxu0
      %3095 = vmatprep.mubr.bf16.mxu0 0
      %3096 = vmatmul.mubr.bf16.gmra.mrb[0].mxu0 %v1773
      %v3097 = vpop.f32.mrb[0].mxu0
      %v3098 = vadd.f32 0.0, %v3097
      %v3099 = vpop.f32.mrb[0].mxu0
      %v3100 = vpop.f32.mrb[0].mxu0
      %v3101 = vadd.f32 0.0, %v3100
      %v3102 = vpop.f32.mrb[0].mxu0
      %3103 = vmatprep.mubr.bf16.mxu0 0
      %3104 = vmatmul.mubr.bf16.gmra.mrb[0].mxu0 %v1776
      %v3105 = vpop.f32.mrb[0].mxu0
      %v3106 = vadd.f32 0.0, %v3105
      %v3107 = vpop.f32.mrb[0].mxu0
      %v3108 = vpop.f32.mrb[0].mxu0
      %v3109 = vadd.f32 0.0, %v3108
      %v3110 = vpop.f32.mrb[0].mxu0
      %3111 = vmatprep.mubr.bf16.mxu0 0
      %3112 = vmatmul.mubr.bf16.gmra.mrb[0].mxu0 %v1779
      %v3113 = vpop.f32.mrb[0].mxu0
      %v3114 = vadd.f32 0.0, %v3113
      %v3115 = vpop.f32.mrb[0].mxu0
      %v3116 = vpop.f32.mrb[0].mxu0
      %v3117 = vadd.f32 0.0, %v3116
      %v3118 = vpop.f32.mrb[0].mxu0
      %3119 = vmatprep.mubr.bf16.mxu0 0
      %3120 = vmatmul.mubr.bf16.gmra.mrb[0].mxu0 %v1782
      %v3121 = vpop.f32.mrb[0].mxu0
      %v3122 = vadd.f32 0.0, %v3121
      %v3123 = vpop.f32.mrb[0].mxu0
      %v3124 = vpop.f32.mrb[0].mxu0
      %v3125 = vadd.f32 0.0, %v3124
      %v3126 = vpop.f32.mrb[0].mxu0
      %3127 = vmatprep.mubr.bf16.mxu0 0
      %3128 = vmatmul.mubr.bf16.gmra.mrb[0].mxu0 %v1785
      %v3129 = vpop.f32.mrb[0].mxu0
      %v3130 = vadd.f32 0.0, %v3129
      %v3131 = vpop.f32.mrb[0].mxu0
      %v3132 = vpop.f32.mrb[0].mxu0
      %v3133 = vadd.f32 0.0, %v3132
      %v3134 = vpop.f32.mrb[0].mxu0
      %3135 = vmatprep.mubr.bf16.mxu0 0
      %3136 = vmatmul.mubr.bf16.gmra.mrb[0].mxu0 %v1788
      %v3137 = vpop.f32.mrb[0].mxu0
      %v3138 = vadd.f32 0.0, %v3137
      %v3139 = vpop.f32.mrb[0].mxu0
      %v3140 = vpop.f32.mrb[0].mxu0
      %v3141 = vadd.f32 0.0, %v3140
      %v3142 = vpop.f32.mrb[0].mxu0
      %3143 = vmatprep.mubr.bf16.mxu0 0
      %3144 = vmatmul.mubr.bf16.gmra.mrb[0].mxu0 %v2391
      %v3145 = vpop.f32.mrb[0].mxu0
      %v3146 = vadd.f32 0.0, %v3145
      %v3147 = vpop.f32.mrb[0].mxu0
      %v3148 = vpop.f32.mrb[0].mxu0
      %v3149 = vadd.f32 0.0, %v3148
      %v3150 = vpop.f32.mrb[0].mxu0
      %3151 = vmatprep.mubr.bf16.mxu0 0
      %3152 = vmatmul.mubr.bf16.gmra.mrb[0].mxu0 %v2994
      %v3153 = vpop.f32.mrb[0].mxu0
      %v3154 = vadd.f32 0.0, %v3153
      %v3155 = vpop.f32.mrb[0].mxu0
      %v3156 = vpop.f32.mrb[0].mxu0
      %v3157 = vadd.f32 0.0, %v3156
      %v3158 = vpop.f32.mrb[0].mxu0
      %3159 = vdwg.mxu0
      %v3160 = vadd.f32 %v2959, %v3034
      %v3161 = vadd.f32 %v2960, %v3037
      %v3162 = vadd.f32 %v2961, %v3042
      %v3163 = vadd.f32 %v2962, %v3045
      %v3164 = vadd.f32 %v2963, %v3050
      %v3165 = vadd.f32 %v2964, %v3053
      %v3166 = vadd.f32 %v2965, %v3058
      %v3167 = vadd.f32 %v2966, %v3061
      %v3168 = vadd.f32 %v2967, %v3066
      %v3169 = vadd.f32 %v2968, %v3069
      %v3170 = vadd.f32 %v2969, %v3074
      %v3171 = vadd.f32 %v2970, %v3077
      %v3172 = vadd.f32 %v2971, %v3082
      %v3173 = vadd.f32 %v2972, %v3085
      %v3174 = vadd.f32 %v2973, %v3090
      %v3175 = vadd.f32 %v2974, %v3093
      %v3176 = vadd.f32 %v2975, %v3098
      %v3177 = vadd.f32 %v2976, %v3101
      %v3178 = vadd.f32 %v2977, %v3106
      %v3179 = vadd.f32 %v2978, %v3109
      %v3180 = vadd.f32 %v2979, %v3114
      %v3181 = vadd.f32 %v2980, %v3117
      %v3182 = vadd.f32 %v2981, %v3122
      %v3183 = vadd.f32 %v2982, %v3125
      %v3184 = vadd.f32 %v2983, %v3130
      %v3185 = vadd.f32 %v2984, %v3133
      %v3186 = vadd.f32 %v2985, %v3138
      %v3187 = vadd.f32 %v2986, %v3141
      %v3188 = vadd.f32 %v2987, %v3146
      %v3189 = vadd.f32 %v2988, %v3149
      %v3190 = vadd.f32 %v2989, %v3154
      %v3191 = vadd.f32 %v2990, %v3157
      %v3192 = vld [vmem:[%s7] sm:$0x1]
      %v3194 = vlaneseq
      %v3195 = vshrl.u32 %v3194, 7
      %v3196 = vsub.s32 0, %v3195
      %v3197 = vrot.slane %v3192, %v3196
      %v3199 = vadd.f32 %v3160, %v3197
      %v3200 = vadd.f32 %v3161, %v3197
      %v3201 = vadd.f32 %v3162, %v3197
      %v3202 = vadd.f32 %v3163, %v3197
      %v3203 = vadd.f32 %v3164, %v3197
      %v3204 = vadd.f32 %v3165, %v3197
      %v3205 = vadd.f32 %v3166, %v3197
      %v3206 = vadd.f32 %v3167, %v3197
      %v3207 = vadd.f32 %v3168, %v3197
      %v3208 = vadd.f32 %v3169, %v3197
      %v3209 = vadd.f32 %v3170, %v3197
      %v3210 = vadd.f32 %v3171, %v3197
      %v3211 = vadd.f32 %v3172, %v3197
      %v3212 = vadd.f32 %v3173, %v3197
      %v3213 = vadd.f32 %v3174, %v3197
      %v3214 = vadd.f32 %v3175, %v3197
      %v3215 = vadd.f32 %v3176, %v3197
      %v3216 = vadd.f32 %v3177, %v3197
      %v3217 = vadd.f32 %v3178, %v3197
      %v3218 = vadd.f32 %v3179, %v3197
      %v3219 = vadd.f32 %v3180, %v3197
      %v3220 = vadd.f32 %v3181, %v3197
      %v3221 = vadd.f32 %v3182, %v3197
      %v3222 = vadd.f32 %v3183, %v3197
      %v3223 = vadd.f32 %v3184, %v3197
      %v3224 = vadd.f32 %v3185, %v3197
      %v3225 = vadd.f32 %v3186, %v3197
      %v3226 = vadd.f32 %v3187, %v3197
      %v3227 = vadd.f32 %v3188, %v3197
      %v3228 = vadd.f32 %v3189, %v3197
      %v3229 = vadd.f32 %v3190, %v3197
      %v3230 = vadd.f32 %v3191, %v3197
      %v3231 = vmax.f32 %v3199, 0.0
      %v3232 = vmax.f32 %v3200, 0.0
      %v3233 = vmax.f32 %v3201, 0.0
      %v3234 = vmax.f32 %v3202, 0.0
      %v3235 = vmax.f32 %v3203, 0.0
      %v3236 = vmax.f32 %v3204, 0.0
      %v3237 = vmax.f32 %v3205, 0.0
      %v3238 = vmax.f32 %v3206, 0.0
      %v3239 = vmax.f32 %v3207, 0.0
      %v3240 = vmax.f32 %v3208, 0.0
      %v3241 = vmax.f32 %v3209, 0.0
      %v3242 = vmax.f32 %v3210, 0.0
      %v3243 = vmax.f32 %v3211, 0.0
      %v3244 = vmax.f32 %v3212, 0.0
      %v3245 = vmax.f32 %v3213, 0.0
      %v3246 = vmax.f32 %v3214, 0.0
      %v3247 = vmax.f32 %v3215, 0.0
      %v3248 = vmax.f32 %v3216, 0.0
      %v3249 = vmax.f32 %v3217, 0.0
      %v3250 = vmax.f32 %v3218, 0.0
      %v3251 = vmax.f32 %v3219, 0.0
      %v3252 = vmax.f32 %v3220, 0.0
      %v3253 = vmax.f32 %v3221, 0.0
      %v3254 = vmax.f32 %v3222, 0.0
      %v3255 = vmax.f32 %v3223, 0.0
      %v3256 = vmax.f32 %v3224, 0.0
      %v3257 = vmax.f32 %v3225, 0.0
      %v3258 = vmax.f32 %v3226, 0.0
      %v3259 = vmax.f32 %v3227, 0.0
      %v3260 = vmax.f32 %v3228, 0.0
      %v3261 = vmax.f32 %v3229, 0.0
      %v3262 = vmax.f32 %v3230, 0.0
      %v3263 = vpack.c.bf16 %v3232, %v3231
      %v3264 = vpack.c.bf16 %v3234, %v3233
      %v3265 = vpack.c.bf16 %v3236, %v3235
      %v3266 = vpack.c.bf16 %v3238, %v3237
      %v3267 = vpack.c.bf16 %v3240, %v3239
      %v3268 = vpack.c.bf16 %v3242, %v3241
      %v3269 = vpack.c.bf16 %v3244, %v3243
      %v3270 = vpack.c.bf16 %v3246, %v3245
      %v3271 = vpack.c.bf16 %v3248, %v3247
      %v3272 = vpack.c.bf16 %v3250, %v3249
      %v3273 = vpack.c.bf16 %v3252, %v3251
      %v3274 = vpack.c.bf16 %v3254, %v3253
      %v3275 = vpack.c.bf16 %v3256, %v3255
      %v3276 = vpack.c.bf16 %v3258, %v3257
      %v3277 = vpack.c.bf16 %v3260, %v3259
      %v3278 = vpack.c.bf16 %v3262, %v3261
      %v3279 = vld [vmem:[%s5] sm:$0x3]
      %v3280 = vunpack.c.l.bf16 %v505
      %v3281 = vunpack.c.l.bf16 %v506
      %v3282 = vunpack.c.l.bf16 %v507
      %v3283 = vunpack.c.l.bf16 %v508
      %v3284 = vunpack.c.l.bf16 %v509
      %v3285 = vunpack.c.l.bf16 %v510
      %v3286 = vunpack.c.l.bf16 %v511
      %v3287 = vunpack.c.l.bf16 %v512
      %v3288 = vunpack.c.l.bf16 %v513
      %v3289 = vunpack.c.l.bf16 %v514
      %v3290 = vunpack.c.l.bf16 %v515
      %v3291 = vunpack.c.l.bf16 %v516
      %v3292 = vunpack.c.l.bf16 %v517
      %v3293 = vunpack.c.l.bf16 %v518
      %v3294 = vunpack.c.l.bf16 %v519
      %v3295 = vunpack.c.l.bf16 %v520
      %v3296 = vunpack.c.l.bf16 %v521
      %v3297 = vunpack.c.l.bf16 %v522
      %v3298 = vunpack.c.l.bf16 %v523
      %v3299 = vunpack.c.l.bf16 %v524
      %v3300 = vunpack.c.l.bf16 %v525
      %v3301 = vunpack.c.l.bf16 %v526
      %v3302 = vunpack.c.l.bf16 %v527
      %v3303 = vunpack.c.l.bf16 %v528
      %v3304 = vunpack.c.l.bf16 %v529
      %v3305 = vunpack.c.l.bf16 %v530
      %v3306 = vunpack.c.l.bf16 %v531
      %v3307 = vunpack.c.l.bf16 %v532
      %v3308 = vunpack.c.l.bf16 %v533
      %v3309 = vunpack.c.l.bf16 %v534
      %v3310 = vunpack.c.l.bf16 %v535
      %v3311 = vunpack.c.l.bf16 %v536
      %v3312 = vld [vmem:[%s8] sm:$0x1]
      %v3314 = vlaneseq
      %v3315 = vshrl.u32 %v3314, 7
      %v3316 = vsub.s32 0, %v3315
      %v3317 = vrot.slane %v3312, %v3316
      %v3320 = vsel %vm871, %v3263, 0
      %v3323 = vsel %vm871, %v3264, 0
      %v3326 = vsel %vm871, %v3265, 0
      %v3329 = vsel %vm871, %v3266, 0
      %v3332 = vsel %vm871, %v3267, 0
      %v3335 = vsel %vm871, %v3268, 0
      %v3338 = vsel %vm871, %v3269, 0
      %v3341 = vsel %vm871, %v3270, 0
      %v3344 = vsel %vm871, %v3271, 0
      %v3347 = vsel %vm871, %v3272, 0
      %v3350 = vsel %vm871, %v3273, 0
      %v3353 = vsel %vm871, %v3274, 0
      %v3356 = vsel %vm871, %v3275, 0
      %v3359 = vsel %vm871, %v3276, 0
      %v3362 = vsel %vm871, %v3277, 0
      %v3365 = vsel %vm871, %v3278, 0
      %v3368 = vsel %vm1363, %v3279, 0
      %3370 = vmatprep.subr.bf16.mxu0 0
      %3371 = vmatpush1.bf16.msra.mxu0 %v3368
      %3372 = vmatprep.subr.bf16.mxu0 0
      %3373 = vmatpush1.bf16.msra.mxu0 0
      %3374 = vmatprep.subr.bf16.mxu0 0
      %3375 = vmatpush1.bf16.msra.mxu0 0
      %3376 = vmatprep.subr.bf16.mxu0 0
      %3377 = vmatpush1.bf16.msra.mxu0 0
      %3378 = vmatprep.subr.bf16.mxu0 0
      %3379 = vmatpush1.bf16.msra.mxu0 0
      %3380 = vmatprep.subr.bf16.mxu0 0
      %3381 = vmatpush1.bf16.msra.mxu0 0
      %3382 = vmatprep.subr.bf16.mxu0 0
      %3383 = vmatpush1.bf16.msra.mxu0 0
      %3384 = vmatprep.subr.bf16.mxu0 0
      %3385 = vmatpush1.bf16.msra.mxu0 0
      %3386 = vmatprep.subr.bf16.mxu0 0
      %3387 = vmatpush1.bf16.msra.mxu0 0
      %3388 = vmatprep.subr.bf16.mxu0 0
      %3389 = vmatpush1.bf16.msra.mxu0 0
      %3390 = vmatprep.subr.bf16.mxu0 0
      %3391 = vmatpush1.bf16.msra.mxu0 0
      %3392 = vmatprep.subr.bf16.mxu0 0
      %3393 = vmatpush1.bf16.msra.mxu0 0
      %3394 = vmatprep.subr.bf16.mxu0 0
      %3395 = vmatpush1.bf16.msra.mxu0 0
      %3396 = vmatprep.subr.bf16.mxu0 0
      %3397 = vmatpush1.bf16.msra.mxu0 0
      %3398 = vmatprep.subr.bf16.mxu0 0
      %3399 = vmatpush1.bf16.msra.mxu0 0
      %3400 = vmatprep.subr.bf16.mxu0 0
      %3401 = vmatpush1.bf16.msra.mxu0 0
      %3402 = vmatprep.mubr.bf16.mxu0 0
      %3403 = vmatmul.mubr.bf16.gmra.mrb[0].mxu0 %v3320
      %v3404 = vpop.f32.mrb[0].mxu0
      %v3405 = vadd.f32 %v3317, %v3404
      %v3406 = vpop.f32.mrb[0].mxu0
      %v3407 = vpop.f32.mrb[0].mxu0
      %v3408 = vadd.f32 %v3317, %v3407
      %v3409 = vpop.f32.mrb[0].mxu0
      %3410 = vmatprep.mubr.bf16.mxu0 0
      %3411 = vmatmul.mubr.bf16.gmra.mrb[0].mxu0 %v3323
      %v3412 = vpop.f32.mrb[0].mxu0
      %v3413 = vadd.f32 %v3317, %v3412
      %v3414 = vpop.f32.mrb[0].mxu0
      %v3415 = vpop.f32.mrb[0].mxu0
      %v3416 = vadd.f32 %v3317, %v3415
      %v3417 = vpop.f32.mrb[0].mxu0
      %3418 = vmatprep.mubr.bf16.mxu0 0
      %3419 = vmatmul.mubr.bf16.gmra.mrb[0].mxu0 %v3326
      %v3420 = vpop.f32.mrb[0].mxu0
      %v3421 = vadd.f32 %v3317, %v3420
      %v3422 = vpop.f32.mrb[0].mxu0
      %v3423 = vpop.f32.mrb[0].mxu0
      %v3424 = vadd.f32 %v3317, %v3423
      %v3425 = vpop.f32.mrb[0].mxu0
      %3426 = vmatprep.mubr.bf16.mxu0 0
      %3427 = vmatmul.mubr.bf16.gmra.mrb[0].mxu0 %v3329
      %v3428 = vpop.f32.mrb[0].mxu0
      %v3429 = vadd.f32 %v3317, %v3428
      %v3430 = vpop.f32.mrb[0].mxu0
      %v3431 = vpop.f32.mrb[0].mxu0
      %v3432 = vadd.f32 %v3317, %v3431
      %v3433 = vpop.f32.mrb[0].mxu0
      %3434 = vmatprep.mubr.bf16.mxu0 0
      %3435 = vmatmul.mubr.bf16.gmra.mrb[0].mxu0 %v3332
      %v3436 = vpop.f32.mrb[0].mxu0
      %v3437 = vadd.f32 %v3317, %v3436
      %v3438 = vpop.f32.mrb[0].mxu0
      %v3439 = vpop.f32.mrb[0].mxu0
      %v3440 = vadd.f32 %v3317, %v3439
      %v3441 = vpop.f32.mrb[0].mxu0
      %3442 = vmatprep.mubr.bf16.mxu0 0
      %3443 = vmatmul.mubr.bf16.gmra.mrb[0].mxu0 %v3335
      %v3444 = vpop.f32.mrb[0].mxu0
      %v3445 = vadd.f32 %v3317, %v3444
      %v3446 = vpop.f32.mrb[0].mxu0
      %v3447 = vpop.f32.mrb[0].mxu0
      %v3448 = vadd.f32 %v3317, %v3447
      %v3449 = vpop.f32.mrb[0].mxu0
      %3450 = vmatprep.mubr.bf16.mxu0 0
      %3451 = vmatmul.mubr.bf16.gmra.mrb[0].mxu0 %v3338
      %v3452 = vpop.f32.mrb[0].mxu0
      %v3453 = vadd.f32 %v3317, %v3452
      %v3454 = vpop.f32.mrb[0].mxu0
      %v3455 = vpop.f32.mrb[0].mxu0
      %v3456 = vadd.f32 %v3317, %v3455
      %v3457 = vpop.f32.mrb[0].mxu0
      %3458 = vmatprep.mubr.bf16.mxu0 0
      %3459 = vmatmul.mubr.bf16.gmra.mrb[0].mxu0 %v3341
      %v3460 = vpop.f32.mrb[0].mxu0
      %v3461 = vadd.f32 %v3317, %v3460
      %v3462 = vpop.f32.mrb[0].mxu0
      %v3463 = vpop.f32.mrb[0].mxu0
      %v3464 = vadd.f32 %v3317, %v3463
      %v3465 = vpop.f32.mrb[0].mxu0
      %3466 = vmatprep.mubr.bf16.mxu0 0
      %3467 = vmatmul.mubr.bf16.gmra.mrb[0].mxu0 %v3344
      %v3468 = vpop.f32.mrb[0].mxu0
      %v3469 = vadd.f32 %v3317, %v3468
      %v3470 = vpop.f32.mrb[0].mxu0
      %v3471 = vpop.f32.mrb[0].mxu0
      %v3472 = vadd.f32 %v3317, %v3471
      %v3473 = vpop.f32.mrb[0].mxu0
      %3474 = vmatprep.mubr.bf16.mxu0 0
      %3475 = vmatmul.mubr.bf16.gmra.mrb[0].mxu0 %v3347
      %v3476 = vpop.f32.mrb[0].mxu0
      %v3477 = vadd.f32 %v3317, %v3476
      %v3478 = vpop.f32.mrb[0].mxu0
      %v3479 = vpop.f32.mrb[0].mxu0
      %v3480 = vadd.f32 %v3317, %v3479
      %v3481 = vpop.f32.mrb[0].mxu0
      %3482 = vmatprep.mubr.bf16.mxu0 0
      %3483 = vmatmul.mubr.bf16.gmra.mrb[0].mxu0 %v3350
      %v3484 = vpop.f32.mrb[0].mxu0
      %v3485 = vadd.f32 %v3317, %v3484
      %v3486 = vpop.f32.mrb[0].mxu0
      %v3487 = vpop.f32.mrb[0].mxu0
      %v3488 = vadd.f32 %v3317, %v3487
      %v3489 = vpop.f32.mrb[0].mxu0
      %3490 = vmatprep.mubr.bf16.mxu0 0
      %3491 = vmatmul.mubr.bf16.gmra.mrb[0].mxu0 %v3353
      %v3492 = vpop.f32.mrb[0].mxu0
      %v3493 = vadd.f32 %v3317, %v3492
      %v3494 = vpop.f32.mrb[0].mxu0
      %v3495 = vpop.f32.mrb[0].mxu0
      %v3496 = vadd.f32 %v3317, %v3495
      %v3497 = vpop.f32.mrb[0].mxu0
      %3498 = vmatprep.mubr.bf16.mxu0 0
      %3499 = vmatmul.mubr.bf16.gmra.mrb[0].mxu0 %v3356
      %v3500 = vpop.f32.mrb[0].mxu0
      %v3501 = vadd.f32 %v3317, %v3500
      %v3502 = vpop.f32.mrb[0].mxu0
      %v3503 = vpop.f32.mrb[0].mxu0
      %v3504 = vadd.f32 %v3317, %v3503
      %v3505 = vpop.f32.mrb[0].mxu0
      %3506 = vmatprep.mubr.bf16.mxu0 0
      %3507 = vmatmul.mubr.bf16.gmra.mrb[0].mxu0 %v3359
      %v3508 = vpop.f32.mrb[0].mxu0
      %v3509 = vadd.f32 %v3317, %v3508
      %v3510 = vpop.f32.mrb[0].mxu0
      %v3511 = vpop.f32.mrb[0].mxu0
      %v3512 = vadd.f32 %v3317, %v3511
      %v3513 = vpop.f32.mrb[0].mxu0
      %3514 = vmatprep.mubr.bf16.mxu0 0
      %3515 = vmatmul.mubr.bf16.gmra.mrb[0].mxu0 %v3362
      %v3516 = vpop.f32.mrb[0].mxu0
      %v3517 = vadd.f32 %v3317, %v3516
      %v3518 = vpop.f32.mrb[0].mxu0
      %v3519 = vpop.f32.mrb[0].mxu0
      %v3520 = vadd.f32 %v3317, %v3519
      %v3521 = vpop.f32.mrb[0].mxu0
      %3522 = vmatprep.mubr.bf16.mxu0 0
      %3523 = vmatmul.mubr.bf16.gmra.mrb[0].mxu0 %v3365
      %v3524 = vpop.f32.mrb[0].mxu0
      %v3525 = vadd.f32 %v3317, %v3524
      %v3526 = vpop.f32.mrb[0].mxu0
      %v3527 = vpop.f32.mrb[0].mxu0
      %v3528 = vadd.f32 %v3317, %v3527
      %v3529 = vpop.f32.mrb[0].mxu0
      %3530 = vdwg.mxu0
      %v3531 = vadd.f32 %v3405, %v3280
      %v3532 = vadd.f32 %v3408, %v3281
      %v3533 = vadd.f32 %v3413, %v3282
      %v3534 = vadd.f32 %v3416, %v3283
      %v3535 = vadd.f32 %v3421, %v3284
      %v3536 = vadd.f32 %v3424, %v3285
      %v3537 = vadd.f32 %v3429, %v3286
      %v3538 = vadd.f32 %v3432, %v3287
      %v3539 = vadd.f32 %v3437, %v3288
      %v3540 = vadd.f32 %v3440, %v3289
      %v3541 = vadd.f32 %v3445, %v3290
      %v3542 = vadd.f32 %v3448, %v3291
      %v3543 = vadd.f32 %v3453, %v3292
      %v3544 = vadd.f32 %v3456, %v3293
      %v3545 = vadd.f32 %v3461, %v3294
      %v3546 = vadd.f32 %v3464, %v3295
      %v3547 = vadd.f32 %v3469, %v3296
      %v3548 = vadd.f32 %v3472, %v3297
      %v3549 = vadd.f32 %v3477, %v3298
      %v3550 = vadd.f32 %v3480, %v3299
      %v3551 = vadd.f32 %v3485, %v3300
      %v3552 = vadd.f32 %v3488, %v3301
      %v3553 = vadd.f32 %v3493, %v3302
      %v3554 = vadd.f32 %v3496, %v3303
      %v3555 = vadd.f32 %v3501, %v3304
      %v3556 = vadd.f32 %v3504, %v3305
      %v3557 = vadd.f32 %v3509, %v3306
      %v3558 = vadd.f32 %v3512, %v3307
      %v3559 = vadd.f32 %v3517, %v3308
      %v3560 = vadd.f32 %v3520, %v3309
      %v3561 = vadd.f32 %v3525, %v3310
      %v3562 = vadd.f32 %v3528, %v3311
      %v3563 = vmax.f32 %v3531, 0.0
      %v3564 = vmax.f32 %v3532, 0.0
      %v3565 = vmax.f32 %v3533, 0.0
      %v3566 = vmax.f32 %v3534, 0.0
      %v3567 = vmax.f32 %v3535, 0.0
      %v3568 = vmax.f32 %v3536, 0.0
      %v3569 = vmax.f32 %v3537, 0.0
      %v3570 = vmax.f32 %v3538, 0.0
      %v3571 = vmax.f32 %v3539, 0.0
      %v3572 = vmax.f32 %v3540, 0.0
      %v3573 = vmax.f32 %v3541, 0.0
      %v3574 = vmax.f32 %v3542, 0.0
      %v3575 = vmax.f32 %v3543, 0.0
      %v3576 = vmax.f32 %v3544, 0.0
      %v3577 = vmax.f32 %v3545, 0.0
      %v3578 = vmax.f32 %v3546, 0.0
      %v3579 = vmax.f32 %v3547, 0.0
      %v3580 = vmax.f32 %v3548, 0.0
      %v3581 = vmax.f32 %v3549, 0.0
      %v3582 = vmax.f32 %v3550, 0.0
      %v3583 = vmax.f32 %v3551, 0.0
      %v3584 = vmax.f32 %v3552, 0.0
      %v3585 = vmax.f32 %v3553, 0.0
      %v3586 = vmax.f32 %v3554, 0.0
      %v3587 = vmax.f32 %v3555, 0.0
      %v3588 = vmax.f32 %v3556, 0.0
      %v3589 = vmax.f32 %v3557, 0.0
      %v3590 = vmax.f32 %v3558, 0.0
      %v3591 = vmax.f32 %v3559, 0.0
      %v3592 = vmax.f32 %v3560, 0.0
      %v3593 = vmax.f32 %v3561, 0.0
      %v3594 = vmax.f32 %v3562, 0.0
      %v3595 = vpack.c.bf16 %v3564, %v3563
      %v3596 = vpack.c.bf16 %v3566, %v3565
      %v3597 = vpack.c.bf16 %v3568, %v3567
      %v3598 = vpack.c.bf16 %v3570, %v3569
      %v3599 = vpack.c.bf16 %v3572, %v3571
      %v3600 = vpack.c.bf16 %v3574, %v3573
      %v3601 = vpack.c.bf16 %v3576, %v3575
      %v3602 = vpack.c.bf16 %v3578, %v3577
      %v3603 = vpack.c.bf16 %v3580, %v3579
      %v3604 = vpack.c.bf16 %v3582, %v3581
      %v3605 = vpack.c.bf16 %v3584, %v3583
      %v3606 = vpack.c.bf16 %v3586, %v3585
      %v3607 = vpack.c.bf16 %v3588, %v3587
      %v3608 = vpack.c.bf16 %v3590, %v3589
      %v3609 = vpack.c.bf16 %v3592, %v3591
      %v3610 = vpack.c.bf16 %v3594, %v3593
      %v3627 = vunpack.c.l.b16 %v3595
      %v3628 = vunpack.c.h.b16 %v3595
      %v3629 = vunpack.c.l.b16 %v3596
      %v3630 = vunpack.c.h.b16 %v3596
      %v3631 = vunpack.c.l.b16 %v3597
      %v3632 = vunpack.c.h.b16 %v3597
      %v3633 = vunpack.c.l.b16 %v3598
      %v3634 = vunpack.c.h.b16 %v3598
      %v3635 = vunpack.c.l.b16 %v3599
      %v3636 = vunpack.c.h.b16 %v3599
      %v3637 = vunpack.c.l.b16 %v3600
      %v3638 = vunpack.c.h.b16 %v3600
      %v3639 = vunpack.c.l.b16 %v3601
      %v3640 = vunpack.c.h.b16 %v3601
      %v3641 = vunpack.c.l.b16 %v3602
      %v3642 = vunpack.c.h.b16 %v3602
      %v3643 = vunpack.c.l.b16 %v3603
      %v3644 = vunpack.c.h.b16 %v3603
      %v3645 = vunpack.c.l.b16 %v3604
      %v3646 = vunpack.c.h.b16 %v3604
      %v3647 = vunpack.c.l.b16 %v3605
      %v3648 = vunpack.c.h.b16 %v3605
      %v3649 = vunpack.c.l.b16 %v3606
      %v3650 = vunpack.c.h.b16 %v3606
      %v3651 = vunpack.c.l.b16 %v3607
      %v3652 = vunpack.c.h.b16 %v3607
      %v3653 = vunpack.c.l.b16 %v3608
      %v3654 = vunpack.c.h.b16 %v3608
      %v3655 = vunpack.c.l.b16 %v3609
      %v3656 = vunpack.c.h.b16 %v3609
      %v3657 = vunpack.c.l.b16 %v3610
      %v3658 = vunpack.c.h.b16 %v3610
      %v3659 = vpack.c.b16 %v3627, %v3627
      %v3660 = vpack.c.b16 %v3628, %v3628
      %v3661 = vpack.c.b16 %v3629, %v3629
      %v3662 = vpack.c.b16 %v3630, %v3630
      %v3663 = vpack.c.b16 %v3631, %v3631
      %v3664 = vpack.c.b16 %v3632, %v3632
      %v3665 = vpack.c.b16 %v3633, %v3633
      %v3666 = vpack.c.b16 %v3634, %v3634
      %v3667 = vpack.c.b16 %v3635, %v3635
      %v3668 = vpack.c.b16 %v3636, %v3636
      %v3669 = vpack.c.b16 %v3637, %v3637
      %v3670 = vpack.c.b16 %v3638, %v3638
      %v3671 = vpack.c.b16 %v3639, %v3639
      %v3672 = vpack.c.b16 %v3640, %v3640
      %v3673 = vpack.c.b16 %v3641, %v3641
      %v3674 = vpack.c.b16 %v3642, %v3642
      %v3675 = vpack.c.b16 %v3643, %v3643
      %v3676 = vpack.c.b16 %v3644, %v3644
      %v3677 = vpack.c.b16 %v3645, %v3645
      %v3678 = vpack.c.b16 %v3646, %v3646
      %v3679 = vpack.c.b16 %v3647, %v3647
      %v3680 = vpack.c.b16 %v3648, %v3648
      %v3681 = vpack.c.b16 %v3649, %v3649
      %v3682 = vpack.c.b16 %v3650, %v3650
      %v3683 = vpack.c.b16 %v3651, %v3651
      %v3684 = vpack.c.b16 %v3652, %v3652
      %v3685 = vpack.c.b16 %v3653, %v3653
      %v3686 = vpack.c.b16 %v3654, %v3654
      %v3687 = vpack.c.b16 %v3655, %v3655
      %v3688 = vpack.c.b16 %v3656, %v3656
      %v3689 = vpack.c.b16 %v3657, %v3657
      %v3690 = vpack.c.b16 %v3658, %v3658
      %vm3723 = vcmask 125952
      %3724 = vst.msk [vmem:[%s499] sm:$0xf] %vm3723, %v3659
      %3725 = vst.msk [vmem:[%s499 + $0x4] sm:$0xf] %vm3723, %v3660
      %3726 = vst.msk [vmem:[%s499 + $0x8] sm:$0xf] %vm3723, %v3661
      %3727 = vst.msk [vmem:[%s499 + $0xc] sm:$0xf] %vm3723, %v3662
      %3728 = vst.msk [vmem:[%s499 + $0x10] sm:$0xf] %vm3723, %v3663
      %3729 = vst.msk [vmem:[%s499 + $0x14] sm:$0xf] %vm3723, %v3664
      %3730 = vst.msk [vmem:[%s499 + $0x18] sm:$0xf] %vm3723, %v3665
      %3731 = vst.msk [vmem:[%s499 + $0x1c] sm:$0xf] %vm3723, %v3666
      %3732 = vst.msk [vmem:[%s499 + $0x20] sm:$0xf] %vm3723, %v3667
      %3733 = vst.msk [vmem:[%s499 + $0x24] sm:$0xf] %vm3723, %v3668
      %3734 = vst.msk [vmem:[%s499 + $0x28] sm:$0xf] %vm3723, %v3669
      %3735 = vst.msk [vmem:[%s499 + $0x2c] sm:$0xf] %vm3723, %v3670
      %3736 = vst.msk [vmem:[%s499 + $0x30] sm:$0xf] %vm3723, %v3671
      %3737 = vst.msk [vmem:[%s499 + $0x34] sm:$0xf] %vm3723, %v3672
      %3738 = vst.msk [vmem:[%s499 + $0x38] sm:$0xf] %vm3723, %v3673
      %3739 = vst.msk [vmem:[%s499 + $0x3c] sm:$0xf] %vm3723, %v3674
      %3740 = vst.msk [vmem:[%s499 + $0x40] sm:$0xf] %vm3723, %v3675
      %3741 = vst.msk [vmem:[%s499 + $0x44] sm:$0xf] %vm3723, %v3676
      %3742 = vst.msk [vmem:[%s499 + $0x48] sm:$0xf] %vm3723, %v3677
      %3743 = vst.msk [vmem:[%s499 + $0x4c] sm:$0xf] %vm3723, %v3678
      %3744 = vst.msk [vmem:[%s499 + $0x50] sm:$0xf] %vm3723, %v3679
      %3745 = vst.msk [vmem:[%s499 + $0x54] sm:$0xf] %vm3723, %v3680
      %3746 = vst.msk [vmem:[%s499 + $0x58] sm:$0xf] %vm3723, %v3681
      %3747 = vst.msk [vmem:[%s499 + $0x5c] sm:$0xf] %vm3723, %v3682
      %3748 = vst.msk [vmem:[%s499 + $0x60] sm:$0xf] %vm3723, %v3683
      %3749 = vst.msk [vmem:[%s499 + $0x64] sm:$0xf] %vm3723, %v3684
      %3750 = vst.msk [vmem:[%s499 + $0x68] sm:$0xf] %vm3723, %v3685
      %3751 = vst.msk [vmem:[%s499 + $0x6c] sm:$0xf] %vm3723, %v3686
      %3752 = vst.msk [vmem:[%s499 + $0x70] sm:$0xf] %vm3723, %v3687
      %3753 = vst.msk [vmem:[%s499 + $0x74] sm:$0xf] %vm3723, %v3688
      %3754 = vst.msk [vmem:[%s499 + $0x78] sm:$0xf] %vm3723, %v3689
      %3755 = vst.msk [vmem:[%s499 + $0x7c] sm:$0xf] %vm3723, %v3690
      %s3756 = smul.u32 16, %s25
      %p3757 = scmp.lt.s32.totalorder %s24, 1
      %s3758 = scalar_select %p3757, %s24, 1
      %p3759 = scmp.lt.s32.totalorder %s3756, 15
      %s3760 = scalar_select %p3759, %s3756, 15
      %s3761 = smul.addr %s3760, 2
      %s3762 = smul.addr %s3758, 32
      %s3763 = sadd.s32 %s3761, %s3762
      %s3764 = smul.addr %s3763, 4
      %s3765 = scalar_lea.vmem %s9, %s3764
      // Predicated region
      $region61: #{bottleneck_forward.1} parent=55 // pred_check
        %p3766 = pneg %p278
      $region62: #{bottleneck_forward.1} parent=55 // pred_check_branch
        %3768 = sbr.rel (%p3766) target = $region64
      $region63: #{bottleneck_forward.1} parent=55 // pred_region
        %s3769 = smul.u32 16, %s25
      $region64: #{bottleneck_forward.1} parent=55 // pred_fallthru
        _
    $region56: #{bottleneck_forward.1} parent=5 // pred_fallthru
      _
    %p3770 = scmp.le.s32.totalorder 2, %s15
    // Predicated region
    $region65: #{bottleneck_forward.1} parent=5 // pred_check
      %p3771 = pneg %p3770
    $region66: #{bottleneck_forward.1} parent=5 // pred_check_branch
      %3773 = sbr.rel (%p3771) target = $region68
    $region67: #{bottleneck_forward.1} parent=5 // pred_region
      %s3774 = ssub.s32 %s15, 2
      // Predicated region
      $region69: #{bottleneck_forward.1} parent=67 // pred_check
        %p3775 = pneg %p284
      $region70: #{bottleneck_forward.1} parent=67 // pred_check_branch
        %3777 = sbr.rel (%p3775) target = $region72
      $region71: #{bottleneck_forward.1} parent=67 // pred_region
        %s3778 = smul.u32 16, %s27
        %p3779 = scmp.lt.s32.totalorder %s26, 1
        %s3780 = scalar_select %p3779, %s26, 1
        %p3781 = scmp.lt.s32.totalorder %s3778, 15
        %s3782 = scalar_select %p3781, %s3778, 15
        %s3783 = smul.addr %s3782, 2
        %s3784 = smul.addr %s3780, 32
        %s3785 = sadd.s32 %s3783, %s3784
        %s3786 = smul.addr %s3785, 4
        %s3787 = scalar_lea.vmem %s9, %s3786
      $region72: #{bottleneck_forward.1} parent=67 // pred_fallthru
        _
    $region68: #{bottleneck_forward.1} parent=5 // pred_fallthru
      _
  $region6: #{bottleneck_forward.1} parent=0 // loop_footer
    %s19 = sadd.s32 1, %s15
  $region7: #{bottleneck_forward.1} parent=0 // loop_footer_branch
    %14 = sbr.rel target = $region3
  $region8: #{bottleneck_forward.1} parent=0 // loop_exit
    _

</llo_original>
